<compile_context>
chip_gen: v7x
topology: tpu7x:2x2x1
jax: 0.10.0
libtpu: 0.0.40
codegen_flags: <defaults>
</compile_context>

<pallas_src>
import functools

import jax
import jax.numpy as jnp
from jax import lax
from jax.experimental import pallas as pl
from jax.experimental.pallas import tpu as pltpu

IN_FEATURES = 30522
OUT_FEATURES = 2


def _mlp_kernel(x_ref, w_ref, b_ref, o_ref, *, chunk: int):
    """x_ref: (TB, K) bf16; w_ref: (2, K) bf16; b_ref: (2,) f32 SMEM; o_ref: (TB, 2) f32."""
    tb, k = x_ref.shape
    n_full = k // chunk
    tail = k - n_full * chunk

    def body(c, carry):
        z0, z1 = carry
        start = pl.multiple_of(c * chunk, chunk)  # lane-aligned dynamic start
        xc = x_ref[:, pl.ds(start, chunk)].astype(jnp.float32)   # (TB, C) f32
        w0 = w_ref[0:1, pl.ds(start, chunk)].astype(jnp.float32)  # (1, C)
        w1 = w_ref[1:2, pl.ds(start, chunk)].astype(jnp.float32)  # (1, C)
        # One chunk load feeds BOTH classes: halves vld traffic, keeps
        # temporaries to a single (TB, C) f32 product at a time.
        z0 = z0 + jnp.sum(xc * w0, axis=1, keepdims=True)
        z1 = z1 + jnp.sum(xc * w1, axis=1, keepdims=True)
        return z0, z1

    z0 = jnp.zeros((tb, 1), jnp.float32)
    z1 = jnp.zeros((tb, 1), jnp.float32)
    z0, z1 = lax.fori_loop(0, n_full, body, (z0, z1), unroll=True)

    if tail:  # static remainder (K = 30522 is not a multiple of the chunk)
        start = n_full * chunk
        xc = x_ref[:, pl.ds(start, tail)].astype(jnp.float32)
        w0 = w_ref[0:1, pl.ds(start, tail)].astype(jnp.float32)
        w1 = w_ref[1:2, pl.ds(start, tail)].astype(jnp.float32)
        z0 = z0 + jnp.sum(xc * w0, axis=1, keepdims=True)
        z1 = z1 + jnp.sum(xc * w1, axis=1, keepdims=True)

    z0 = z0 + b_ref[0]
    z1 = z1 + b_ref[1]

    # sigmoid(z); bounded in (0, 1) so no max-subtraction is needed for softmax.
    s0 = jax.nn.sigmoid(z0)
    s1 = jax.nn.sigmoid(z1)
    # softmax([s0, s1], axis=1) == [1 - sigmoid(s1 - s0), sigmoid(s1 - s0)] (exact)
    p1 = jax.nn.sigmoid(s1 - s0)
    p0 = 1.0 - p1
    o_ref[:, 0:1] = p0.astype(o_ref.dtype)
    o_ref[:, 1:2] = p1.astype(o_ref.dtype)


@functools.partial(jax.jit, static_argnames=("block_rows", "chunk"))
def mlp_forward(x, w, b, *, block_rows: int = 64, chunk: int = 2048):
    """x: (B, K); w: (N, K) (torch nn.Linear weight layout); b: (N,). Returns (B, N) f32.

    block_rows=64 keeps the double-buffered bf16 x tile (+resident w + chunk
    temporaries) under ~10 MB, inside every generation's scoped-VMEM default
    (16 MiB v5e, 32 MiB v6e/v7x).  On v6e one may raise block_rows to 128-256
    together with pltpu.CompilerParams(vmem_limit_bytes=...).
    """
    B, K = x.shape
    N = w.shape[0]

    # bf16 at the boundary halves HBM traffic (the binding resource).
    x = x.astype(jnp.bfloat16)
    w = w.astype(jnp.bfloat16)
    b = b.astype(jnp.float32)

    tb = min(block_rows, max(8, ((B + 7) // 8) * 8))  # multiple of 8 sublanes
    grid = (pl.cdiv(B, tb),)

    cost = pl.CostEstimate(
        flops=2 * B * K * N,
        transcendentals=3 * B,
        bytes_accessed=(x.size * x.dtype.itemsize
                        + w.size * w.dtype.itemsize
                        + b.size * b.dtype.itemsize
                        + B * N * 4),
    )

    return pl.pallas_call(
        functools.partial(_mlp_kernel, chunk=chunk),
        out_shape=jax.ShapeDtypeStruct((B, N), jnp.float32),
        grid=grid,
        in_specs=[
            # x: streamed row tiles, double-buffered by the pipeline.
            pl.BlockSpec((tb, K), lambda i: (i, 0)),
            # w: lane-dense (N, K) torch layout, constant index -> DMA'd once,
            # stays VMEM-resident across all row tiles.
            pl.BlockSpec((N, K), lambda i: (0, 0)),
            # bias: two scalars in SMEM.
            pl.BlockSpec(memory_space=pltpu.MemorySpace.SMEM),
        ],
        out_specs=pl.BlockSpec((tb, N), lambda i: (i, 0)),
        compiler_params=pltpu.CompilerParams(
            dimension_semantics=("parallel",),  # shards row tiles across TCs (v7x)
        ),
        cost_estimate=cost,
    )(x, w, b)


def reference_forward(x, w, b):
    # Mirror the kernel's bf16 input cast so tolerances are meaningful.
    xf = x.astype(jnp.bfloat16).astype(jnp.float32)
    wf = w.astype(jnp.bfloat16).astype(jnp.float32)
    z = xf @ wf.T + b.astype(jnp.float32)
    s = jax.nn.sigmoid(z)
    return jax.nn.softmax(s, axis=1)


if __name__ == "__main__":
    key = jax.random.PRNGKey(0)
    k_x, k_w, k_b = jax.random.split(key, 3)

    B = 8  # small batch; kernel tiles larger batches via the row grid
    bound = 1.0 / (IN_FEATURES ** 0.5)
    w = jax.random.uniform(
        k_w, (OUT_FEATURES, IN_FEATURES), jnp.float32, -bound, bound
    )
    b = jax.random.uniform(k_b, (OUT_FEATURES,), jnp.float32, -bound, bound)
    x = jax.random.normal(k_x, (B, IN_FEATURES), jnp.float32)

    out = jax.block_until_ready(mlp_forward(x, w, b))

    ref = reference_forward(x, w, b)
    assert out.shape == (B, OUT_FEATURES)
    assert jnp.allclose(out, ref, atol=2e-5, rtol=2e-5), "mismatch vs reference"
    assert jnp.allclose(jnp.sum(out, axis=1), 1.0, atol=1e-5)

    print("KERNEL_OK")
</pallas_src>

<mosaic_0001>
module attributes {stable_mosaic.version = 11 : i64} {
  func.func @_mlp_kernel(%arg0: i32, %arg1: memref<8x30522xbf16, #tpu.memory_space<vmem>>, %arg2: memref<2x30522xbf16, #tpu.memory_space<vmem>>, %arg3: memref<2xf32, #tpu.memory_space<smem>>, %arg4: memref<8x2xf32, #tpu.memory_space<vmem>>) attributes {dimension_semantics = [#tpu.dimension_semantics<parallel>], iteration_bounds = array<i64: 1>, scalar_prefetch = 0 : i64, scratch_operands = 0 : i64, tpu.core_type = #tpu.core_type<tc>, window_params = [{transform_indices = @transform_0, window_bounds = array<i64: 8, 30522>}, {pipeline_mode = #tpu.pipeline_mode<synchronous>, transform_indices = @transform_1, window_bounds = array<i64: 2, 30522>}, {transform_indices = @transform_2, window_bounds = array<i64: 2>}, {transform_indices = @transform_3, window_bounds = array<i64: 8, 2>}]} {
    %cst = arith.constant 0.000000e+00 : f32
    %0 = vector.broadcast %cst : f32 to vector<8x1xf32>
    %cst_0 = arith.constant 0.000000e+00 : f32
    %1 = vector.broadcast %cst_0 : f32 to vector<8x1xf32>
    %c0_i32 = arith.constant 0 : i32
    %c2048_i32 = arith.constant 2048 : i32
    %2 = arith.muli %c0_i32, %c2048_i32 : i32
    %3 = tpu.assume_multiple %2, 2048 : i32
    %c0 = arith.constant 0 : index
    %4 = arith.index_cast %3 : i32 to index
    %5 = vector.load %arg1[%c0, %4] : memref<8x30522xbf16, #tpu.memory_space<vmem>>, vector<8x2048xbf16>
    %6 = arith.extf %5 : vector<8x2048xbf16> to vector<8x2048xf32>
    %c0_1 = arith.constant 0 : index
    %7 = arith.index_cast %3 : i32 to index
    %8 = vector.load %arg2[%c0_1, %7] : memref<2x30522xbf16, #tpu.memory_space<vmem>>, vector<1x2048xbf16>
    %9 = arith.extf %8 : vector<1x2048xbf16> to vector<1x2048xf32>
    %c1 = arith.constant 1 : index
    %10 = arith.index_cast %3 : i32 to index
    %11 = vector.load %arg2[%c1, %10] : memref<2x30522xbf16, #tpu.memory_space<vmem>>, vector<1x2048xbf16>
    %12 = arith.extf %11 : vector<1x2048xbf16> to vector<1x2048xf32>
    %13 = vector.broadcast %9 : vector<1x2048xf32> to vector<8x2048xf32>
    %14 = arith.mulf %6, %13 : vector<8x2048xf32>
    %cst_2 = arith.constant dense<0.000000e+00> : vector<8xf32>
    %15 = vector.multi_reduction <add>, %14, %cst_2 [1] : vector<8x2048xf32> to vector<8xf32>
    %16 = vector.shape_cast %15 : vector<8xf32> to vector<8x1xf32>
    %17 = arith.addf %0, %16 : vector<8x1xf32>
    %18 = vector.broadcast %12 : vector<1x2048xf32> to vector<8x2048xf32>
    %19 = arith.mulf %6, %18 : vector<8x2048xf32>
    %cst_3 = arith.constant dense<0.000000e+00> : vector<8xf32>
    %20 = vector.multi_reduction <add>, %19, %cst_3 [1] : vector<8x2048xf32> to vector<8xf32>
    %21 = vector.shape_cast %20 : vector<8xf32> to vector<8x1xf32>
    %22 = arith.addf %1, %21 : vector<8x1xf32>
    %c1_i32 = arith.constant 1 : i32
    %c2048_i32_4 = arith.constant 2048 : i32
    %23 = arith.muli %c1_i32, %c2048_i32_4 : i32
    %24 = tpu.assume_multiple %23, 2048 : i32
    %c0_5 = arith.constant 0 : index
    %25 = arith.index_cast %24 : i32 to index
    %26 = vector.load %arg1[%c0_5, %25] : memref<8x30522xbf16, #tpu.memory_space<vmem>>, vector<8x2048xbf16>
    %27 = arith.extf %26 : vector<8x2048xbf16> to vector<8x2048xf32>
    %c0_6 = arith.constant 0 : index
    %28 = arith.index_cast %24 : i32 to index
    %29 = vector.load %arg2[%c0_6, %28] : memref<2x30522xbf16, #tpu.memory_space<vmem>>, vector<1x2048xbf16>
    %30 = arith.extf %29 : vector<1x2048xbf16> to vector<1x2048xf32>
    %c1_7 = arith.constant 1 : index
    %31 = arith.index_cast %24 : i32 to index
    %32 = vector.load %arg2[%c1_7, %31] : memref<2x30522xbf16, #tpu.memory_space<vmem>>, vector<1x2048xbf16>
    %33 = arith.extf %32 : vector<1x2048xbf16> to vector<1x2048xf32>
    %34 = vector.broadcast %30 : vector<1x2048xf32> to vector<8x2048xf32>
    %35 = arith.mulf %27, %34 : vector<8x2048xf32>
    %cst_8 = arith.constant dense<0.000000e+00> : vector<8xf32>
    %36 = vector.multi_reduction <add>, %35, %cst_8 [1] : vector<8x2048xf32> to vector<8xf32>
    %37 = vector.shape_cast %36 : vector<8xf32> to vector<8x1xf32>
    %38 = arith.addf %17, %37 : vector<8x1xf32>
    %39 = vector.broadcast %33 : vector<1x2048xf32> to vector<8x2048xf32>
    %40 = arith.mulf %27, %39 : vector<8x2048xf32>
    %cst_9 = arith.constant dense<0.000000e+00> : vector<8xf32>
    %41 = vector.multi_reduction <add>, %40, %cst_9 [1] : vector<8x2048xf32> to vector<8xf32>
    %42 = vector.shape_cast %41 : vector<8xf32> to vector<8x1xf32>
    %43 = arith.addf %22, %42 : vector<8x1xf32>
    %c2_i32 = arith.constant 2 : i32
    %c2048_i32_10 = arith.constant 2048 : i32
    %44 = arith.muli %c2_i32, %c2048_i32_10 : i32
    %45 = tpu.assume_multiple %44, 2048 : i32
    %c0_11 = arith.constant 0 : index
    %46 = arith.index_cast %45 : i32 to index
    %47 = vector.load %arg1[%c0_11, %46] : memref<8x30522xbf16, #tpu.memory_space<vmem>>, vector<8x2048xbf16>
    %48 = arith.extf %47 : vector<8x2048xbf16> to vector<8x2048xf32>
    %c0_12 = arith.constant 0 : index
    %49 = arith.index_cast %45 : i32 to index
    %50 = vector.load %arg2[%c0_12, %49] : memref<2x30522xbf16, #tpu.memory_space<vmem>>, vector<1x2048xbf16>
    %51 = arith.extf %50 : vector<1x2048xbf16> to vector<1x2048xf32>
    %c1_13 = arith.constant 1 : index
    %52 = arith.index_cast %45 : i32 to index
    %53 = vector.load %arg2[%c1_13, %52] : memref<2x30522xbf16, #tpu.memory_space<vmem>>, vector<1x2048xbf16>
    %54 = arith.extf %53 : vector<1x2048xbf16> to vector<1x2048xf32>
    %55 = vector.broadcast %51 : vector<1x2048xf32> to vector<8x2048xf32>
    %56 = arith.mulf %48, %55 : vector<8x2048xf32>
    %cst_14 = arith.constant dense<0.000000e+00> : vector<8xf32>
    %57 = vector.multi_reduction <add>, %56, %cst_14 [1] : vector<8x2048xf32> to vector<8xf32>
    %58 = vector.shape_cast %57 : vector<8xf32> to vector<8x1xf32>
    %59 = arith.addf %38, %58 : vector<8x1xf32>
    %60 = vector.broadcast %54 : vector<1x2048xf32> to vector<8x2048xf32>
    %61 = arith.mulf %48, %60 : vector<8x2048xf32>
    %cst_15 = arith.constant dense<0.000000e+00> : vector<8xf32>
    %62 = vector.multi_reduction <add>, %61, %cst_15 [1] : vector<8x2048xf32> to vector<8xf32>
    %63 = vector.shape_cast %62 : vector<8xf32> to vector<8x1xf32>
    %64 = arith.addf %43, %63 : vector<8x1xf32>
    %c3_i32 = arith.constant 3 : i32
    %c2048_i32_16 = arith.constant 2048 : i32
    %65 = arith.muli %c3_i32, %c2048_i32_16 : i32
    %66 = tpu.assume_multiple %65, 2048 : i32
    %c0_17 = arith.constant 0 : index
    %67 = arith.index_cast %66 : i32 to index
    %68 = vector.load %arg1[%c0_17, %67] : memref<8x30522xbf16, #tpu.memory_space<vmem>>, vector<8x2048xbf16>
    %69 = arith.extf %68 : vector<8x2048xbf16> to vector<8x2048xf32>
    %c0_18 = arith.constant 0 : index
    %70 = arith.index_cast %66 : i32 to index
    %71 = vector.load %arg2[%c0_18, %70] : memref<2x30522xbf16, #tpu.memory_space<vmem>>, vector<1x2048xbf16>
    %72 = arith.extf %71 : vector<1x2048xbf16> to vector<1x2048xf32>
    %c1_19 = arith.constant 1 : index
    %73 = arith.index_cast %66 : i32 to index
    %74 = vector.load %arg2[%c1_19, %73] : memref<2x30522xbf16, #tpu.memory_space<vmem>>, vector<1x2048xbf16>
    %75 = arith.extf %74 : vector<1x2048xbf16> to vector<1x2048xf32>
    %76 = vector.broadcast %72 : vector<1x2048xf32> to vector<8x2048xf32>
    %77 = arith.mulf %69, %76 : vector<8x2048xf32>
    %cst_20 = arith.constant dense<0.000000e+00> : vector<8xf32>
    %78 = vector.multi_reduction <add>, %77, %cst_20 [1] : vector<8x2048xf32> to vector<8xf32>
    %79 = vector.shape_cast %78 : vector<8xf32> to vector<8x1xf32>
    %80 = arith.addf %59, %79 : vector<8x1xf32>
    %81 = vector.broadcast %75 : vector<1x2048xf32> to vector<8x2048xf32>
    %82 = arith.mulf %69, %81 : vector<8x2048xf32>
    %cst_21 = arith.constant dense<0.000000e+00> : vector<8xf32>
    %83 = vector.multi_reduction <add>, %82, %cst_21 [1] : vector<8x2048xf32> to vector<8xf32>
    %84 = vector.shape_cast %83 : vector<8xf32> to vector<8x1xf32>
    %85 = arith.addf %64, %84 : vector<8x1xf32>
    %c4_i32 = arith.constant 4 : i32
    %c2048_i32_22 = arith.constant 2048 : i32
    %86 = arith.muli %c4_i32, %c2048_i32_22 : i32
    %87 = tpu.assume_multiple %86, 2048 : i32
    %c0_23 = arith.constant 0 : index
    %88 = arith.index_cast %87 : i32 to index
    %89 = vector.load %arg1[%c0_23, %88] : memref<8x30522xbf16, #tpu.memory_space<vmem>>, vector<8x2048xbf16>
    %90 = arith.extf %89 : vector<8x2048xbf16> to vector<8x2048xf32>
    %c0_24 = arith.constant 0 : index
    %91 = arith.index_cast %87 : i32 to index
    %92 = vector.load %arg2[%c0_24, %91] : memref<2x30522xbf16, #tpu.memory_space<vmem>>, vector<1x2048xbf16>
    %93 = arith.extf %92 : vector<1x2048xbf16> to vector<1x2048xf32>
    %c1_25 = arith.constant 1 : index
    %94 = arith.index_cast %87 : i32 to index
    %95 = vector.load %arg2[%c1_25, %94] : memref<2x30522xbf16, #tpu.memory_space<vmem>>, vector<1x2048xbf16>
    %96 = arith.extf %95 : vector<1x2048xbf16> to vector<1x2048xf32>
    %97 = vector.broadcast %93 : vector<1x2048xf32> to vector<8x2048xf32>
    %98 = arith.mulf %90, %97 : vector<8x2048xf32>
    %cst_26 = arith.constant dense<0.000000e+00> : vector<8xf32>
    %99 = vector.multi_reduction <add>, %98, %cst_26 [1] : vector<8x2048xf32> to vector<8xf32>
    %100 = vector.shape_cast %99 : vector<8xf32> to vector<8x1xf32>
    %101 = arith.addf %80, %100 : vector<8x1xf32>
    %102 = vector.broadcast %96 : vector<1x2048xf32> to vector<8x2048xf32>
    %103 = arith.mulf %90, %102 : vector<8x2048xf32>
    %cst_27 = arith.constant dense<0.000000e+00> : vector<8xf32>
    %104 = vector.multi_reduction <add>, %103, %cst_27 [1] : vector<8x2048xf32> to vector<8xf32>
    %105 = vector.shape_cast %104 : vector<8xf32> to vector<8x1xf32>
    %106 = arith.addf %85, %105 : vector<8x1xf32>
    %c5_i32 = arith.constant 5 : i32
    %c2048_i32_28 = arith.constant 2048 : i32
    %107 = arith.muli %c5_i32, %c2048_i32_28 : i32
    %108 = tpu.assume_multiple %107, 2048 : i32
    %c0_29 = arith.constant 0 : index
    %109 = arith.index_cast %108 : i32 to index
    %110 = vector.load %arg1[%c0_29, %109] : memref<8x30522xbf16, #tpu.memory_space<vmem>>, vector<8x2048xbf16>
    %111 = arith.extf %110 : vector<8x2048xbf16> to vector<8x2048xf32>
    %c0_30 = arith.constant 0 : index
    %112 = arith.index_cast %108 : i32 to index
    %113 = vector.load %arg2[%c0_30, %112] : memref<2x30522xbf16, #tpu.memory_space<vmem>>, vector<1x2048xbf16>
    %114 = arith.extf %113 : vector<1x2048xbf16> to vector<1x2048xf32>
    %c1_31 = arith.constant 1 : index
    %115 = arith.index_cast %108 : i32 to index
    %116 = vector.load %arg2[%c1_31, %115] : memref<2x30522xbf16, #tpu.memory_space<vmem>>, vector<1x2048xbf16>
    %117 = arith.extf %116 : vector<1x2048xbf16> to vector<1x2048xf32>
    %118 = vector.broadcast %114 : vector<1x2048xf32> to vector<8x2048xf32>
    %119 = arith.mulf %111, %118 : vector<8x2048xf32>
    %cst_32 = arith.constant dense<0.000000e+00> : vector<8xf32>
    %120 = vector.multi_reduction <add>, %119, %cst_32 [1] : vector<8x2048xf32> to vector<8xf32>
    %121 = vector.shape_cast %120 : vector<8xf32> to vector<8x1xf32>
    %122 = arith.addf %101, %121 : vector<8x1xf32>
    %123 = vector.broadcast %117 : vector<1x2048xf32> to vector<8x2048xf32>
    %124 = arith.mulf %111, %123 : vector<8x2048xf32>
    %cst_33 = arith.constant dense<0.000000e+00> : vector<8xf32>
    %125 = vector.multi_reduction <add>, %124, %cst_33 [1] : vector<8x2048xf32> to vector<8xf32>
    %126 = vector.shape_cast %125 : vector<8xf32> to vector<8x1xf32>
    %127 = arith.addf %106, %126 : vector<8x1xf32>
    %c6_i32 = arith.constant 6 : i32
    %c2048_i32_34 = arith.constant 2048 : i32
    %128 = arith.muli %c6_i32, %c2048_i32_34 : i32
    %129 = tpu.assume_multiple %128, 2048 : i32
    %c0_35 = arith.constant 0 : index
    %130 = arith.index_cast %129 : i32 to index
    %131 = vector.load %arg1[%c0_35, %130] : memref<8x30522xbf16, #tpu.memory_space<vmem>>, vector<8x2048xbf16>
    %132 = arith.extf %131 : vector<8x2048xbf16> to vector<8x2048xf32>
    %c0_36 = arith.constant 0 : index
    %133 = arith.index_cast %129 : i32 to index
    %134 = vector.load %arg2[%c0_36, %133] : memref<2x30522xbf16, #tpu.memory_space<vmem>>, vector<1x2048xbf16>
    %135 = arith.extf %134 : vector<1x2048xbf16> to vector<1x2048xf32>
    %c1_37 = arith.constant 1 : index
    %136 = arith.index_cast %129 : i32 to index
    %137 = vector.load %arg2[%c1_37, %136] : memref<2x30522xbf16, #tpu.memory_space<vmem>>, vector<1x2048xbf16>
    %138 = arith.extf %137 : vector<1x2048xbf16> to vector<1x2048xf32>
    %139 = vector.broadcast %135 : vector<1x2048xf32> to vector<8x2048xf32>
    %140 = arith.mulf %132, %139 : vector<8x2048xf32>
    %cst_38 = arith.constant dense<0.000000e+00> : vector<8xf32>
    %141 = vector.multi_reduction <add>, %140, %cst_38 [1] : vector<8x2048xf32> to vector<8xf32>
    %142 = vector.shape_cast %141 : vector<8xf32> to vector<8x1xf32>
    %143 = arith.addf %122, %142 : vector<8x1xf32>
    %144 = vector.broadcast %138 : vector<1x2048xf32> to vector<8x2048xf32>
    %145 = arith.mulf %132, %144 : vector<8x2048xf32>
    %cst_39 = arith.constant dense<0.000000e+00> : vector<8xf32>
    %146 = vector.multi_reduction <add>, %145, %cst_39 [1] : vector<8x2048xf32> to vector<8xf32>
    %147 = vector.shape_cast %146 : vector<8xf32> to vector<8x1xf32>
    %148 = arith.addf %127, %147 : vector<8x1xf32>
    %c7_i32 = arith.constant 7 : i32
    %c2048_i32_40 = arith.constant 2048 : i32
    %149 = arith.muli %c7_i32, %c2048_i32_40 : i32
    %150 = tpu.assume_multiple %149, 2048 : i32
    %c0_41 = arith.constant 0 : index
    %151 = arith.index_cast %150 : i32 to index
    %152 = vector.load %arg1[%c0_41, %151] : memref<8x30522xbf16, #tpu.memory_space<vmem>>, vector<8x2048xbf16>
    %153 = arith.extf %152 : vector<8x2048xbf16> to vector<8x2048xf32>
    %c0_42 = arith.constant 0 : index
    %154 = arith.index_cast %150 : i32 to index
    %155 = vector.load %arg2[%c0_42, %154] : memref<2x30522xbf16, #tpu.memory_space<vmem>>, vector<1x2048xbf16>
    %156 = arith.extf %155 : vector<1x2048xbf16> to vector<1x2048xf32>
    %c1_43 = arith.constant 1 : index
    %157 = arith.index_cast %150 : i32 to index
    %158 = vector.load %arg2[%c1_43, %157] : memref<2x30522xbf16, #tpu.memory_space<vmem>>, vector<1x2048xbf16>
    %159 = arith.extf %158 : vector<1x2048xbf16> to vector<1x2048xf32>
    %160 = vector.broadcast %156 : vector<1x2048xf32> to vector<8x2048xf32>
    %161 = arith.mulf %153, %160 : vector<8x2048xf32>
    %cst_44 = arith.constant dense<0.000000e+00> : vector<8xf32>
    %162 = vector.multi_reduction <add>, %161, %cst_44 [1] : vector<8x2048xf32> to vector<8xf32>
    %163 = vector.shape_cast %162 : vector<8xf32> to vector<8x1xf32>
    %164 = arith.addf %143, %163 : vector<8x1xf32>
    %165 = vector.broadcast %159 : vector<1x2048xf32> to vector<8x2048xf32>
    %166 = arith.mulf %153, %165 : vector<8x2048xf32>
    %cst_45 = arith.constant dense<0.000000e+00> : vector<8xf32>
    %167 = vector.multi_reduction <add>, %166, %cst_45 [1] : vector<8x2048xf32> to vector<8xf32>
    %168 = vector.shape_cast %167 : vector<8xf32> to vector<8x1xf32>
    %169 = arith.addf %148, %168 : vector<8x1xf32>
    %c8_i32 = arith.constant 8 : i32
    %c2048_i32_46 = arith.constant 2048 : i32
    %170 = arith.muli %c8_i32, %c2048_i32_46 : i32
    %171 = tpu.assume_multiple %170, 2048 : i32
    %c0_47 = arith.constant 0 : index
    %172 = arith.index_cast %171 : i32 to index
    %173 = vector.load %arg1[%c0_47, %172] : memref<8x30522xbf16, #tpu.memory_space<vmem>>, vector<8x2048xbf16>
    %174 = arith.extf %173 : vector<8x2048xbf16> to vector<8x2048xf32>
    %c0_48 = arith.constant 0 : index
    %175 = arith.index_cast %171 : i32 to index
    %176 = vector.load %arg2[%c0_48, %175] : memref<2x30522xbf16, #tpu.memory_space<vmem>>, vector<1x2048xbf16>
    %177 = arith.extf %176 : vector<1x2048xbf16> to vector<1x2048xf32>
    %c1_49 = arith.constant 1 : index
    %178 = arith.index_cast %171 : i32 to index
    %179 = vector.load %arg2[%c1_49, %178] : memref<2x30522xbf16, #tpu.memory_space<vmem>>, vector<1x2048xbf16>
    %180 = arith.extf %179 : vector<1x2048xbf16> to vector<1x2048xf32>
    %181 = vector.broadcast %177 : vector<1x2048xf32> to vector<8x2048xf32>
    %182 = arith.mulf %174, %181 : vector<8x2048xf32>
    %cst_50 = arith.constant dense<0.000000e+00> : vector<8xf32>
    %183 = vector.multi_reduction <add>, %182, %cst_50 [1] : vector<8x2048xf32> to vector<8xf32>
    %184 = vector.shape_cast %183 : vector<8xf32> to vector<8x1xf32>
    %185 = arith.addf %164, %184 : vector<8x1xf32>
    %186 = vector.broadcast %180 : vector<1x2048xf32> to vector<8x2048xf32>
    %187 = arith.mulf %174, %186 : vector<8x2048xf32>
    %cst_51 = arith.constant dense<0.000000e+00> : vector<8xf32>
    %188 = vector.multi_reduction <add>, %187, %cst_51 [1] : vector<8x2048xf32> to vector<8xf32>
    %189 = vector.shape_cast %188 : vector<8xf32> to vector<8x1xf32>
    %190 = arith.addf %169, %189 : vector<8x1xf32>
    %c9_i32 = arith.constant 9 : i32
    %c2048_i32_52 = arith.constant 2048 : i32
    %191 = arith.muli %c9_i32, %c2048_i32_52 : i32
    %192 = tpu.assume_multiple %191, 2048 : i32
    %c0_53 = arith.constant 0 : index
    %193 = arith.index_cast %192 : i32 to index
    %194 = vector.load %arg1[%c0_53, %193] : memref<8x30522xbf16, #tpu.memory_space<vmem>>, vector<8x2048xbf16>
    %195 = arith.extf %194 : vector<8x2048xbf16> to vector<8x2048xf32>
    %c0_54 = arith.constant 0 : index
    %196 = arith.index_cast %192 : i32 to index
    %197 = vector.load %arg2[%c0_54, %196] : memref<2x30522xbf16, #tpu.memory_space<vmem>>, vector<1x2048xbf16>
    %198 = arith.extf %197 : vector<1x2048xbf16> to vector<1x2048xf32>
    %c1_55 = arith.constant 1 : index
    %199 = arith.index_cast %192 : i32 to index
    %200 = vector.load %arg2[%c1_55, %199] : memref<2x30522xbf16, #tpu.memory_space<vmem>>, vector<1x2048xbf16>
    %201 = arith.extf %200 : vector<1x2048xbf16> to vector<1x2048xf32>
    %202 = vector.broadcast %198 : vector<1x2048xf32> to vector<8x2048xf32>
    %203 = arith.mulf %195, %202 : vector<8x2048xf32>
    %cst_56 = arith.constant dense<0.000000e+00> : vector<8xf32>
    %204 = vector.multi_reduction <add>, %203, %cst_56 [1] : vector<8x2048xf32> to vector<8xf32>
    %205 = vector.shape_cast %204 : vector<8xf32> to vector<8x1xf32>
    %206 = arith.addf %185, %205 : vector<8x1xf32>
    %207 = vector.broadcast %201 : vector<1x2048xf32> to vector<8x2048xf32>
    %208 = arith.mulf %195, %207 : vector<8x2048xf32>
    %cst_57 = arith.constant dense<0.000000e+00> : vector<8xf32>
    %209 = vector.multi_reduction <add>, %208, %cst_57 [1] : vector<8x2048xf32> to vector<8xf32>
    %210 = vector.shape_cast %209 : vector<8xf32> to vector<8x1xf32>
    %211 = arith.addf %190, %210 : vector<8x1xf32>
    %c10_i32 = arith.constant 10 : i32
    %c2048_i32_58 = arith.constant 2048 : i32
    %212 = arith.muli %c10_i32, %c2048_i32_58 : i32
    %213 = tpu.assume_multiple %212, 2048 : i32
    %c0_59 = arith.constant 0 : index
    %214 = arith.index_cast %213 : i32 to index
    %215 = vector.load %arg1[%c0_59, %214] : memref<8x30522xbf16, #tpu.memory_space<vmem>>, vector<8x2048xbf16>
    %216 = arith.extf %215 : vector<8x2048xbf16> to vector<8x2048xf32>
    %c0_60 = arith.constant 0 : index
    %217 = arith.index_cast %213 : i32 to index
    %218 = vector.load %arg2[%c0_60, %217] : memref<2x30522xbf16, #tpu.memory_space<vmem>>, vector<1x2048xbf16>
    %219 = arith.extf %218 : vector<1x2048xbf16> to vector<1x2048xf32>
    %c1_61 = arith.constant 1 : index
    %220 = arith.index_cast %213 : i32 to index
    %221 = vector.load %arg2[%c1_61, %220] : memref<2x30522xbf16, #tpu.memory_space<vmem>>, vector<1x2048xbf16>
    %222 = arith.extf %221 : vector<1x2048xbf16> to vector<1x2048xf32>
    %223 = vector.broadcast %219 : vector<1x2048xf32> to vector<8x2048xf32>
    %224 = arith.mulf %216, %223 : vector<8x2048xf32>
    %cst_62 = arith.constant dense<0.000000e+00> : vector<8xf32>
    %225 = vector.multi_reduction <add>, %224, %cst_62 [1] : vector<8x2048xf32> to vector<8xf32>
    %226 = vector.shape_cast %225 : vector<8xf32> to vector<8x1xf32>
    %227 = arith.addf %206, %226 : vector<8x1xf32>
    %228 = vector.broadcast %222 : vector<1x2048xf32> to vector<8x2048xf32>
    %229 = arith.mulf %216, %228 : vector<8x2048xf32>
    %cst_63 = arith.constant dense<0.000000e+00> : vector<8xf32>
    %230 = vector.multi_reduction <add>, %229, %cst_63 [1] : vector<8x2048xf32> to vector<8xf32>
    %231 = vector.shape_cast %230 : vector<8xf32> to vector<8x1xf32>
    %232 = arith.addf %211, %231 : vector<8x1xf32>
    %c11_i32 = arith.constant 11 : i32
    %c2048_i32_64 = arith.constant 2048 : i32
    %233 = arith.muli %c11_i32, %c2048_i32_64 : i32
    %234 = tpu.assume_multiple %233, 2048 : i32
    %c0_65 = arith.constant 0 : index
    %235 = arith.index_cast %234 : i32 to index
    %236 = vector.load %arg1[%c0_65, %235] : memref<8x30522xbf16, #tpu.memory_space<vmem>>, vector<8x2048xbf16>
    %237 = arith.extf %236 : vector<8x2048xbf16> to vector<8x2048xf32>
    %c0_66 = arith.constant 0 : index
    %238 = arith.index_cast %234 : i32 to index
    %239 = vector.load %arg2[%c0_66, %238] : memref<2x30522xbf16, #tpu.memory_space<vmem>>, vector<1x2048xbf16>
    %240 = arith.extf %239 : vector<1x2048xbf16> to vector<1x2048xf32>
    %c1_67 = arith.constant 1 : index
    %241 = arith.index_cast %234 : i32 to index
    %242 = vector.load %arg2[%c1_67, %241] : memref<2x30522xbf16, #tpu.memory_space<vmem>>, vector<1x2048xbf16>
    %243 = arith.extf %242 : vector<1x2048xbf16> to vector<1x2048xf32>
    %244 = vector.broadcast %240 : vector<1x2048xf32> to vector<8x2048xf32>
    %245 = arith.mulf %237, %244 : vector<8x2048xf32>
    %cst_68 = arith.constant dense<0.000000e+00> : vector<8xf32>
    %246 = vector.multi_reduction <add>, %245, %cst_68 [1] : vector<8x2048xf32> to vector<8xf32>
    %247 = vector.shape_cast %246 : vector<8xf32> to vector<8x1xf32>
    %248 = arith.addf %227, %247 : vector<8x1xf32>
    %249 = vector.broadcast %243 : vector<1x2048xf32> to vector<8x2048xf32>
    %250 = arith.mulf %237, %249 : vector<8x2048xf32>
    %cst_69 = arith.constant dense<0.000000e+00> : vector<8xf32>
    %251 = vector.multi_reduction <add>, %250, %cst_69 [1] : vector<8x2048xf32> to vector<8xf32>
    %252 = vector.shape_cast %251 : vector<8xf32> to vector<8x1xf32>
    %253 = arith.addf %232, %252 : vector<8x1xf32>
    %c12_i32 = arith.constant 12 : i32
    %c2048_i32_70 = arith.constant 2048 : i32
    %254 = arith.muli %c12_i32, %c2048_i32_70 : i32
    %255 = tpu.assume_multiple %254, 2048 : i32
    %c0_71 = arith.constant 0 : index
    %256 = arith.index_cast %255 : i32 to index
    %257 = vector.load %arg1[%c0_71, %256] : memref<8x30522xbf16, #tpu.memory_space<vmem>>, vector<8x2048xbf16>
    %258 = arith.extf %257 : vector<8x2048xbf16> to vector<8x2048xf32>
    %c0_72 = arith.constant 0 : index
    %259 = arith.index_cast %255 : i32 to index
    %260 = vector.load %arg2[%c0_72, %259] : memref<2x30522xbf16, #tpu.memory_space<vmem>>, vector<1x2048xbf16>
    %261 = arith.extf %260 : vector<1x2048xbf16> to vector<1x2048xf32>
    %c1_73 = arith.constant 1 : index
    %262 = arith.index_cast %255 : i32 to index
    %263 = vector.load %arg2[%c1_73, %262] : memref<2x30522xbf16, #tpu.memory_space<vmem>>, vector<1x2048xbf16>
    %264 = arith.extf %263 : vector<1x2048xbf16> to vector<1x2048xf32>
    %265 = vector.broadcast %261 : vector<1x2048xf32> to vector<8x2048xf32>
    %266 = arith.mulf %258, %265 : vector<8x2048xf32>
    %cst_74 = arith.constant dense<0.000000e+00> : vector<8xf32>
    %267 = vector.multi_reduction <add>, %266, %cst_74 [1] : vector<8x2048xf32> to vector<8xf32>
    %268 = vector.shape_cast %267 : vector<8xf32> to vector<8x1xf32>
    %269 = arith.addf %248, %268 : vector<8x1xf32>
    %270 = vector.broadcast %264 : vector<1x2048xf32> to vector<8x2048xf32>
    %271 = arith.mulf %258, %270 : vector<8x2048xf32>
    %cst_75 = arith.constant dense<0.000000e+00> : vector<8xf32>
    %272 = vector.multi_reduction <add>, %271, %cst_75 [1] : vector<8x2048xf32> to vector<8xf32>
    %273 = vector.shape_cast %272 : vector<8xf32> to vector<8x1xf32>
    %274 = arith.addf %253, %273 : vector<8x1xf32>
    %c13_i32 = arith.constant 13 : i32
    %c2048_i32_76 = arith.constant 2048 : i32
    %275 = arith.muli %c13_i32, %c2048_i32_76 : i32
    %276 = tpu.assume_multiple %275, 2048 : i32
    %c0_77 = arith.constant 0 : index
    %277 = arith.index_cast %276 : i32 to index
    %278 = vector.load %arg1[%c0_77, %277] : memref<8x30522xbf16, #tpu.memory_space<vmem>>, vector<8x2048xbf16>
    %279 = arith.extf %278 : vector<8x2048xbf16> to vector<8x2048xf32>
    %c0_78 = arith.constant 0 : index
    %280 = arith.index_cast %276 : i32 to index
    %281 = vector.load %arg2[%c0_78, %280] : memref<2x30522xbf16, #tpu.memory_space<vmem>>, vector<1x2048xbf16>
    %282 = arith.extf %281 : vector<1x2048xbf16> to vector<1x2048xf32>
    %c1_79 = arith.constant 1 : index
    %283 = arith.index_cast %276 : i32 to index
    %284 = vector.load %arg2[%c1_79, %283] : memref<2x30522xbf16, #tpu.memory_space<vmem>>, vector<1x2048xbf16>
    %285 = arith.extf %284 : vector<1x2048xbf16> to vector<1x2048xf32>
    %286 = vector.broadcast %282 : vector<1x2048xf32> to vector<8x2048xf32>
    %287 = arith.mulf %279, %286 : vector<8x2048xf32>
    %cst_80 = arith.constant dense<0.000000e+00> : vector<8xf32>
    %288 = vector.multi_reduction <add>, %287, %cst_80 [1] : vector<8x2048xf32> to vector<8xf32>
    %289 = vector.shape_cast %288 : vector<8xf32> to vector<8x1xf32>
    %290 = arith.addf %269, %289 : vector<8x1xf32>
    %291 = vector.broadcast %285 : vector<1x2048xf32> to vector<8x2048xf32>
    %292 = arith.mulf %279, %291 : vector<8x2048xf32>
    %cst_81 = arith.constant dense<0.000000e+00> : vector<8xf32>
    %293 = vector.multi_reduction <add>, %292, %cst_81 [1] : vector<8x2048xf32> to vector<8xf32>
    %294 = vector.shape_cast %293 : vector<8xf32> to vector<8x1xf32>
    %295 = arith.addf %274, %294 : vector<8x1xf32>
    %c14_i32 = arith.constant 14 : i32
    %c0_82 = arith.constant 0 : index
    %c28672 = arith.constant 28672 : index
    %296 = vector.load %arg1[%c0_82, %c28672] : memref<8x30522xbf16, #tpu.memory_space<vmem>>, vector<8x1850xbf16>
    %297 = arith.extf %296 : vector<8x1850xbf16> to vector<8x1850xf32>
    %c0_83 = arith.constant 0 : index
    %c28672_84 = arith.constant 28672 : index
    %298 = vector.load %arg2[%c0_83, %c28672_84] : memref<2x30522xbf16, #tpu.memory_space<vmem>>, vector<1x1850xbf16>
    %299 = arith.extf %298 : vector<1x1850xbf16> to vector<1x1850xf32>
    %c1_85 = arith.constant 1 : index
    %c28672_86 = arith.constant 28672 : index
    %300 = vector.load %arg2[%c1_85, %c28672_86] : memref<2x30522xbf16, #tpu.memory_space<vmem>>, vector<1x1850xbf16>
    %301 = arith.extf %300 : vector<1x1850xbf16> to vector<1x1850xf32>
    %302 = vector.broadcast %299 : vector<1x1850xf32> to vector<8x1850xf32>
    %303 = arith.mulf %297, %302 : vector<8x1850xf32>
    %cst_87 = arith.constant dense<0.000000e+00> : vector<8xf32>
    %304 = vector.multi_reduction <add>, %303, %cst_87 [1] : vector<8x1850xf32> to vector<8xf32>
    %305 = vector.shape_cast %304 : vector<8xf32> to vector<8x1xf32>
    %306 = arith.addf %290, %305 : vector<8x1xf32>
    %307 = vector.broadcast %301 : vector<1x1850xf32> to vector<8x1850xf32>
    %308 = arith.mulf %297, %307 : vector<8x1850xf32>
    %cst_88 = arith.constant dense<0.000000e+00> : vector<8xf32>
    %309 = vector.multi_reduction <add>, %308, %cst_88 [1] : vector<8x1850xf32> to vector<8xf32>
    %310 = vector.shape_cast %309 : vector<8xf32> to vector<8x1xf32>
    %311 = arith.addf %295, %310 : vector<8x1xf32>
    %c0_89 = arith.constant 0 : index
    %312 = memref.load %arg3[%c0_89] : memref<2xf32, #tpu.memory_space<smem>>
    %313 = vector.broadcast %312 : f32 to vector<8x1xf32>
    %314 = arith.addf %306, %313 : vector<8x1xf32>
    %c1_90 = arith.constant 1 : index
    %315 = memref.load %arg3[%c1_90] : memref<2xf32, #tpu.memory_space<smem>>
    %316 = vector.broadcast %315 : f32 to vector<8x1xf32>
    %317 = arith.addf %311, %316 : vector<8x1xf32>
    %318 = arith.negf %314 : vector<8x1xf32>
    %319 = math.exp %318 : vector<8x1xf32>
    %cst_91 = arith.constant 1.000000e+00 : f32
    %320 = vector.broadcast %cst_91 : f32 to vector<8x1xf32>
    %321 = arith.addf %320, %319 : vector<8x1xf32>
    %322 = arith.divf %320, %321 : vector<8x1xf32>
    %323 = arith.negf %317 : vector<8x1xf32>
    %324 = math.exp %323 : vector<8x1xf32>
    %cst_92 = arith.constant 1.000000e+00 : f32
    %325 = vector.broadcast %cst_92 : f32 to vector<8x1xf32>
    %326 = arith.addf %325, %324 : vector<8x1xf32>
    %327 = arith.divf %325, %326 : vector<8x1xf32>
    %328 = arith.subf %327, %322 : vector<8x1xf32>
    %329 = arith.negf %328 : vector<8x1xf32>
    %330 = math.exp %329 : vector<8x1xf32>
    %cst_93 = arith.constant 1.000000e+00 : f32
    %331 = vector.broadcast %cst_93 : f32 to vector<8x1xf32>
    %332 = arith.addf %331, %330 : vector<8x1xf32>
    %333 = arith.divf %331, %332 : vector<8x1xf32>
    %cst_94 = arith.constant 1.000000e+00 : f32
    %334 = vector.broadcast %cst_94 : f32 to vector<8x1xf32>
    %335 = arith.subf %334, %333 : vector<8x1xf32>
    %c0_95 = arith.constant 0 : index
    %c0_96 = arith.constant 0 : index
    %336 = vector.load %arg4[%c0_95, %c0_96] : memref<8x2xf32, #tpu.memory_space<vmem>>, vector<8x1xf32>
    tpu.vector_store %arg4[%c0_95, %c0_96], %335 {strides = array<i32>} : memref<8x2xf32, #tpu.memory_space<vmem>>, vector<8x1xf32>,
    %c0_97 = arith.constant 0 : index
    %c1_98 = arith.constant 1 : index
    %337 = vector.load %arg4[%c0_97, %c1_98] : memref<8x2xf32, #tpu.memory_space<vmem>>, vector<8x1xf32>
    tpu.vector_store %arg4[%c0_97, %c1_98], %333 {strides = array<i32>} : memref<8x2xf32, #tpu.memory_space<vmem>>, vector<8x1xf32>,
    return
  }
  func.func @transform_0(%arg0: i32) -> (i32, i32) {
    %c0_i32 = arith.constant 0 : i32
    %c0_i32_0 = arith.constant 0 : i32
    return %arg0, %c0_i32 : i32, i32
  }
  func.func @transform_1(%arg0: i32) -> (i32, i32) {
    %c0_i32 = arith.constant 0 : i32
    %c0_i32_0 = arith.constant 0 : i32
    %c0_i32_1 = arith.constant 0 : i32
    return %c0_i32, %c0_i32_0 : i32, i32
  }
  func.func @transform_2(%arg0: i32) -> i32 {
    %c0_i32 = arith.constant 0 : i32
    %c0_i32_0 = arith.constant 0 : i32
    return %c0_i32 : i32
  }
  func.func @transform_3(%arg0: i32) -> (i32, i32) {
    %c0_i32 = arith.constant 0 : i32
    %c0_i32_0 = arith.constant 0 : i32
    return %arg0, %c0_i32 : i32, i32
  }
}

</mosaic_0001>

<llo_original>
// kernel: mlp_forward.1
$region0: #{mlp_forward.1}
  #allocation0 [shape = 'u32[]', space=smem, size = 0x4, offset = 0x4, fixed_abs, tag = 'smem constant byte address 0x4 - core index']
  #allocation1 [shape = 'u32[144,128]{1,0:T(1,128)}', space=vmem, size = 0x12000, scoped, tag = 'internal scratch']
  %s0 = inlined_call_operand.vmem [shape: bf16[8,30522], index: 0, kind: input, shape index: {}]
  %s1 = inlined_call_operand.vmem [shape: bf16[2,30522], index: 1, kind: input, shape index: {}]
  %s2 = inlined_call_operand.vmem [shape: f32[2], index: 2, kind: input, shape index: {}]
  %s3 = inlined_call_operand.vmem [shape: f32[8,2], index: 3, kind: output, shape index: {}]
  %s4 = sld [smem:[#allocation0]]
  $region26: #{mlp_forward.1} parent=0
    _
  %s6 = ssub.s32 1, %s4
  %s7 = scalar_select 0, %s6, %s4
  $region1: #{mlp_forward.1} parent=0
    #allocation2 [shape = 'u8[512]{0}', space=smem, size = 0x200, scoped, tag = 'input window, operand 2, single buffered']
    #allocation3 [shape = 's32[1]{0}', space=sflag, size = 0x4, scoped, tag = 'scoped memory for mlp_forward.1']
    %8 = vsyncpa [#allocation3], 0
    // Predicated region
    $region2: #{mlp_forward.1} parent=1 // pred_check
      _
    $region3: #{mlp_forward.1} parent=1 // pred_check_branch
      %10 = sbr.rel (0) target = $region5
    $region4: #{mlp_forward.1} parent=1 // pred_region
      _
    $region5: #{mlp_forward.1} parent=1 // pred_fallthru
      _
    // Predicated region
    $region6: #{mlp_forward.1} parent=1 // pred_check
      _
    $region7: #{mlp_forward.1} parent=1 // pred_check_branch
      %12 = sbr.rel (0) target = $region9
    $region8: #{mlp_forward.1} parent=1 // pred_region
      _
    $region9: #{mlp_forward.1} parent=1 // pred_fallthru
      _
    // Predicated region
    $region10: #{mlp_forward.1} parent=1 // pred_check
      _
    $region11: #{mlp_forward.1} parent=1 // pred_check_branch
      %14 = sbr.rel (0) target = $region13
    $region12: #{mlp_forward.1} parent=1 // pred_region
      %s16 = ssub.s32 16, 16
      %17 = vsyncadd [#allocation3], %s16
      %s19 = sshll.u32 %s2, 4
      %s20 = int_to_ptr.vmem [resolvable:$true] %s19
      %22 = dma.vmem_to_smem %s20, 16, [#allocation2], [#allocation3]
    $region13: #{mlp_forward.1} parent=1 // pred_fallthru
      _
    // Predicated region
    $region14: #{mlp_forward.1} parent=1 // pred_check
      _
    $region15: #{mlp_forward.1} parent=1 // pred_check_branch
      %24 = sbr.rel (0) target = $region17
    $region16: #{mlp_forward.1} parent=1 // pred_region
      %25 = dma.done [#allocation3], 16
    $region17: #{mlp_forward.1} parent=1 // pred_fallthru
      _
    %26 = sfence
    %v27 = vld [vmem:[%s0] sm:$0xff]
    %v28 = vld [vmem:[%s0 + $0x8] sm:$0xff]
    %v29 = vld [vmem:[%s0 + $0x10] sm:$0xff]
    %v30 = vld [vmem:[%s0 + $0x18] sm:$0xff]
    %v31 = vld [vmem:[%s0 + $0x20] sm:$0xff]
    %v32 = vld [vmem:[%s0 + $0x28] sm:$0xff]
    %v33 = vld [vmem:[%s0 + $0x30] sm:$0xff]
    %v34 = vld [vmem:[%s0 + $0x38] sm:$0xff]
    %v35 = vunpack.c.l.bf16 %v27
    %v36 = vunpack.c.h.bf16 %v27
    %v37 = vunpack.c.l.bf16 %v28
    %v38 = vunpack.c.h.bf16 %v28
    %v39 = vunpack.c.l.bf16 %v29
    %v40 = vunpack.c.h.bf16 %v29
    %v41 = vunpack.c.l.bf16 %v30
    %v42 = vunpack.c.h.bf16 %v30
    %v43 = vunpack.c.l.bf16 %v31
    %v44 = vunpack.c.h.bf16 %v31
    %v45 = vunpack.c.l.bf16 %v32
    %v46 = vunpack.c.h.bf16 %v32
    %v47 = vunpack.c.l.bf16 %v33
    %v48 = vunpack.c.h.bf16 %v33
    %v49 = vunpack.c.l.bf16 %v34
    %v50 = vunpack.c.h.bf16 %v34
    %v51 = vld [vmem:[%s1] sm:$0xff]
    %v52 = vld [vmem:[%s1 + $0x8] sm:$0xff]
    %v53 = vunpack.c.l.bf16 %v51
    %v54 = vunpack.c.h.bf16 %v51
    %v55 = vunpack.c.l.bf16 %v52
    %v56 = vunpack.c.h.bf16 %v52
    %v61 = vlaneseq
    %v62 = vshrl.u32 %v61, 7
    %v63 = vsub.s32 0, %v62
    %v64 = vrot.slane %v53, %v63
    %v65 = vlaneseq
    %v66 = vshrl.u32 %v65, 7
    %v67 = vsub.s32 2, %v66
    %v68 = vrot.slane %v53, %v67
    %v69 = vlaneseq
    %v70 = vshrl.u32 %v69, 7
    %v71 = vsub.s32 4, %v70
    %v72 = vrot.slane %v53, %v71
    %v73 = vlaneseq
    %v74 = vshrl.u32 %v73, 7
    %v75 = vsub.s32 6, %v74
    %v76 = vrot.slane %v53, %v75
    %v77 = vlaneseq
    %v78 = vshrl.u32 %v77, 7
    %v79 = vsub.s32 0, %v78
    %v80 = vrot.slane %v54, %v79
    %v81 = vlaneseq
    %v82 = vshrl.u32 %v81, 7
    %v83 = vsub.s32 2, %v82
    %v84 = vrot.slane %v54, %v83
    %v85 = vlaneseq
    %v86 = vshrl.u32 %v85, 7
    %v87 = vsub.s32 4, %v86
    %v88 = vrot.slane %v54, %v87
    %v89 = vlaneseq
    %v90 = vshrl.u32 %v89, 7
    %v91 = vsub.s32 6, %v90
    %v92 = vrot.slane %v54, %v91
    %v93 = vlaneseq
    %v94 = vshrl.u32 %v93, 7
    %v95 = vsub.s32 0, %v94
    %v96 = vrot.slane %v55, %v95
    %v97 = vlaneseq
    %v98 = vshrl.u32 %v97, 7
    %v99 = vsub.s32 2, %v98
    %v100 = vrot.slane %v55, %v99
    %v101 = vlaneseq
    %v102 = vshrl.u32 %v101, 7
    %v103 = vsub.s32 4, %v102
    %v104 = vrot.slane %v55, %v103
    %v105 = vlaneseq
    %v106 = vshrl.u32 %v105, 7
    %v107 = vsub.s32 6, %v106
    %v108 = vrot.slane %v55, %v107
    %v109 = vlaneseq
    %v110 = vshrl.u32 %v109, 7
    %v111 = vsub.s32 0, %v110
    %v112 = vrot.slane %v56, %v111
    %v113 = vlaneseq
    %v114 = vshrl.u32 %v113, 7
    %v115 = vsub.s32 2, %v114
    %v116 = vrot.slane %v56, %v115
    %v117 = vlaneseq
    %v118 = vshrl.u32 %v117, 7
    %v119 = vsub.s32 4, %v118
    %v120 = vrot.slane %v56, %v119
    %v121 = vlaneseq
    %v122 = vshrl.u32 %v121, 7
    %v123 = vsub.s32 6, %v122
    %v124 = vrot.slane %v56, %v123
    %v141 = vlaneseq
    %v142 = vshrl.u32 %v141, 7
    %v143 = vsub.s32 0, %v142
    %v144 = vrot.slane %v64, %v143
    %v145 = vlaneseq
    %v146 = vshrl.u32 %v145, 7
    %v147 = vsub.s32 0, %v146
    %v148 = vrot.slane %v68, %v147
    %v149 = vlaneseq
    %v150 = vshrl.u32 %v149, 7
    %v151 = vsub.s32 0, %v150
    %v152 = vrot.slane %v72, %v151
    %v153 = vlaneseq
    %v154 = vshrl.u32 %v153, 7
    %v155 = vsub.s32 0, %v154
    %v156 = vrot.slane %v76, %v155
    %v157 = vlaneseq
    %v158 = vshrl.u32 %v157, 7
    %v159 = vsub.s32 0, %v158
    %v160 = vrot.slane %v80, %v159
    %v161 = vlaneseq
    %v162 = vshrl.u32 %v161, 7
    %v163 = vsub.s32 0, %v162
    %v164 = vrot.slane %v84, %v163
    %v165 = vlaneseq
    %v166 = vshrl.u32 %v165, 7
    %v167 = vsub.s32 0, %v166
    %v168 = vrot.slane %v88, %v167
    %v169 = vlaneseq
    %v170 = vshrl.u32 %v169, 7
    %v171 = vsub.s32 0, %v170
    %v172 = vrot.slane %v92, %v171
    %v173 = vlaneseq
    %v174 = vshrl.u32 %v173, 7
    %v175 = vsub.s32 0, %v174
    %v176 = vrot.slane %v96, %v175
    %v177 = vlaneseq
    %v178 = vshrl.u32 %v177, 7
    %v179 = vsub.s32 0, %v178
    %v180 = vrot.slane %v100, %v179
    %v181 = vlaneseq
    %v182 = vshrl.u32 %v181, 7
    %v183 = vsub.s32 0, %v182
    %v184 = vrot.slane %v104, %v183
    %v185 = vlaneseq
    %v186 = vshrl.u32 %v185, 7
    %v187 = vsub.s32 0, %v186
    %v188 = vrot.slane %v108, %v187
    %v189 = vlaneseq
    %v190 = vshrl.u32 %v189, 7
    %v191 = vsub.s32 0, %v190
    %v192 = vrot.slane %v112, %v191
    %v193 = vlaneseq
    %v194 = vshrl.u32 %v193, 7
    %v195 = vsub.s32 0, %v194
    %v196 = vrot.slane %v116, %v195
    %v197 = vlaneseq
    %v198 = vshrl.u32 %v197, 7
    %v199 = vsub.s32 0, %v198
    %v200 = vrot.slane %v120, %v199
    %v201 = vlaneseq
    %v202 = vshrl.u32 %v201, 7
    %v203 = vsub.s32 0, %v202
    %v204 = vrot.slane %v124, %v203
    %v205 = vmul.f32 %v35, %v144
    %v206 = vmul.f32 %v36, %v148
    %v207 = vmul.f32 %v37, %v152
    %v208 = vmul.f32 %v38, %v156
    %v209 = vmul.f32 %v39, %v160
    %v210 = vmul.f32 %v40, %v164
    %v211 = vmul.f32 %v41, %v168
    %v212 = vmul.f32 %v42, %v172
    %v213 = vmul.f32 %v43, %v176
    %v214 = vmul.f32 %v44, %v180
    %v215 = vmul.f32 %v45, %v184
    %v216 = vmul.f32 %v46, %v188
    %v217 = vmul.f32 %v47, %v192
    %v218 = vmul.f32 %v48, %v196
    %v219 = vmul.f32 %v49, %v200
    %v220 = vmul.f32 %v50, %v204
    %v221 = vadd.f32 %v205, %v206
    %v222 = vadd.f32 %v221, %v207
    %v223 = vadd.f32 %v222, %v208
    %v224 = vadd.f32 %v223, %v209
    %v225 = vadd.f32 %v224, %v210
    %v226 = vadd.f32 %v225, %v211
    %v227 = vadd.f32 %v226, %v212
    %v228 = vadd.f32 %v227, %v213
    %v229 = vadd.f32 %v228, %v214
    %v230 = vadd.f32 %v229, %v215
    %v231 = vadd.f32 %v230, %v216
    %v232 = vadd.f32 %v231, %v217
    %v233 = vadd.f32 %v232, %v218
    %v234 = vadd.f32 %v233, %v219
    %v235 = vadd.f32 %v234, %v220
    %236 = vadd.xlane.f32.xlu0 %v235
    %v237 = vpop.xlane.xlu0 %236
    %v238 = vadd.f32 %v237, 0.0
    %v239 = vlaneseq
    %v240 = vshrl.u32 %v239, 7
    %v241 = vsub.s32 1, %v240
    %v242 = vrot.slane %v53, %v241
    %v243 = vlaneseq
    %v244 = vshrl.u32 %v243, 7
    %v245 = vsub.s32 3, %v244
    %v246 = vrot.slane %v53, %v245
    %v247 = vlaneseq
    %v248 = vshrl.u32 %v247, 7
    %v249 = vsub.s32 5, %v248
    %v250 = vrot.slane %v53, %v249
    %v251 = vlaneseq
    %v252 = vshrl.u32 %v251, 7
    %v253 = vsub.s32 7, %v252
    %v254 = vrot.slane %v53, %v253
    %v255 = vlaneseq
    %v256 = vshrl.u32 %v255, 7
    %v257 = vsub.s32 1, %v256
    %v258 = vrot.slane %v54, %v257
    %v259 = vlaneseq
    %v260 = vshrl.u32 %v259, 7
    %v261 = vsub.s32 3, %v260
    %v262 = vrot.slane %v54, %v261
    %v263 = vlaneseq
    %v264 = vshrl.u32 %v263, 7
    %v265 = vsub.s32 5, %v264
    %v266 = vrot.slane %v54, %v265
    %v267 = vlaneseq
    %v268 = vshrl.u32 %v267, 7
    %v269 = vsub.s32 7, %v268
    %v270 = vrot.slane %v54, %v269
    %v271 = vlaneseq
    %v272 = vshrl.u32 %v271, 7
    %v273 = vsub.s32 1, %v272
    %v274 = vrot.slane %v55, %v273
    %v275 = vlaneseq
    %v276 = vshrl.u32 %v275, 7
    %v277 = vsub.s32 3, %v276
    %v278 = vrot.slane %v55, %v277
    %v279 = vlaneseq
    %v280 = vshrl.u32 %v279, 7
    %v281 = vsub.s32 5, %v280
    %v282 = vrot.slane %v55, %v281
    %v283 = vlaneseq
    %v284 = vshrl.u32 %v283, 7
    %v285 = vsub.s32 7, %v284
    %v286 = vrot.slane %v55, %v285
    %v287 = vlaneseq
    %v288 = vshrl.u32 %v287, 7
    %v289 = vsub.s32 1, %v288
    %v290 = vrot.slane %v56, %v289
    %v291 = vlaneseq
    %v292 = vshrl.u32 %v291, 7
    %v293 = vsub.s32 3, %v292
    %v294 = vrot.slane %v56, %v293
    %v295 = vlaneseq
    %v296 = vshrl.u32 %v295, 7
    %v297 = vsub.s32 5, %v296
    %v298 = vrot.slane %v56, %v297
    %v299 = vlaneseq
    %v300 = vshrl.u32 %v299, 7
    %v301 = vsub.s32 7, %v300
    %v302 = vrot.slane %v56, %v301
    %v319 = vlaneseq
    %v320 = vshrl.u32 %v319, 7
    %v321 = vsub.s32 1, %v320
    %v322 = vrot.slane %v242, %v321
    %v323 = vlaneseq
    %v324 = vshrl.u32 %v323, 7
    %v325 = vsub.s32 1, %v324
    %v326 = vrot.slane %v246, %v325
    %v327 = vlaneseq
    %v328 = vshrl.u32 %v327, 7
    %v329 = vsub.s32 1, %v328
    %v330 = vrot.slane %v250, %v329
    %v331 = vlaneseq
    %v332 = vshrl.u32 %v331, 7
    %v333 = vsub.s32 1, %v332
    %v334 = vrot.slane %v254, %v333
    %v335 = vlaneseq
    %v336 = vshrl.u32 %v335, 7
    %v337 = vsub.s32 1, %v336
    %v338 = vrot.slane %v258, %v337
    %v339 = vlaneseq
    %v340 = vshrl.u32 %v339, 7
    %v341 = vsub.s32 1, %v340
    %v342 = vrot.slane %v262, %v341
    %v343 = vlaneseq
    %v344 = vshrl.u32 %v343, 7
    %v345 = vsub.s32 1, %v344
    %v346 = vrot.slane %v266, %v345
    %v347 = vlaneseq
    %v348 = vshrl.u32 %v347, 7
    %v349 = vsub.s32 1, %v348
    %v350 = vrot.slane %v270, %v349
    %v351 = vlaneseq
    %v352 = vshrl.u32 %v351, 7
    %v353 = vsub.s32 1, %v352
    %v354 = vrot.slane %v274, %v353
    %v355 = vlaneseq
    %v356 = vshrl.u32 %v355, 7
    %v357 = vsub.s32 1, %v356
    %v358 = vrot.slane %v278, %v357
    %v359 = vlaneseq
    %v360 = vshrl.u32 %v359, 7
    %v361 = vsub.s32 1, %v360
    %v362 = vrot.slane %v282, %v361
    %v363 = vlaneseq
    %v364 = vshrl.u32 %v363, 7
    %v365 = vsub.s32 1, %v364
    %v366 = vrot.slane %v286, %v365
    %v367 = vlaneseq
    %v368 = vshrl.u32 %v367, 7
    %v369 = vsub.s32 1, %v368
    %v370 = vrot.slane %v290, %v369
    %v371 = vlaneseq
    %v372 = vshrl.u32 %v371, 7
    %v373 = vsub.s32 1, %v372
    %v374 = vrot.slane %v294, %v373
    %v375 = vlaneseq
    %v376 = vshrl.u32 %v375, 7
    %v377 = vsub.s32 1, %v376
    %v378 = vrot.slane %v298, %v377
    %v379 = vlaneseq
    %v380 = vshrl.u32 %v379, 7
    %v381 = vsub.s32 1, %v380
    %v382 = vrot.slane %v302, %v381
    %v383 = vmul.f32 %v35, %v322
    %v384 = vmul.f32 %v36, %v326
    %v385 = vmul.f32 %v37, %v330
    %v386 = vmul.f32 %v38, %v334
    %v387 = vmul.f32 %v39, %v338
    %v388 = vmul.f32 %v40, %v342
    %v389 = vmul.f32 %v41, %v346
    %v390 = vmul.f32 %v42, %v350
    %v391 = vmul.f32 %v43, %v354
    %v392 = vmul.f32 %v44, %v358
    %v393 = vmul.f32 %v45, %v362
    %v394 = vmul.f32 %v46, %v366
    %v395 = vmul.f32 %v47, %v370
    %v396 = vmul.f32 %v48, %v374
    %v397 = vmul.f32 %v49, %v378
    %v398 = vmul.f32 %v50, %v382
    %v399 = vadd.f32 %v383, %v384
    %v400 = vadd.f32 %v399, %v385
    %v401 = vadd.f32 %v400, %v386
    %v402 = vadd.f32 %v401, %v387
    %v403 = vadd.f32 %v402, %v388
    %v404 = vadd.f32 %v403, %v389
    %v405 = vadd.f32 %v404, %v390
    %v406 = vadd.f32 %v405, %v391
    %v407 = vadd.f32 %v406, %v392
    %v408 = vadd.f32 %v407, %v393
    %v409 = vadd.f32 %v408, %v394
    %v410 = vadd.f32 %v409, %v395
    %v411 = vadd.f32 %v410, %v396
    %v412 = vadd.f32 %v411, %v397
    %v413 = vadd.f32 %v412, %v398
    %414 = vadd.xlane.f32.xlu0 %v413
    %v415 = vpop.xlane.xlu0 %414
    %v416 = vadd.f32 %v415, 0.0
    %s417 = scalar_lea.vmem %s0, 64
    %v418 = vld [vmem:[%s417] sm:$0xff]
    %v419 = vld [vmem:[%s417 + $0x8] sm:$0xff]
    %v420 = vld [vmem:[%s417 + $0x10] sm:$0xff]
    %v421 = vld [vmem:[%s417 + $0x18] sm:$0xff]
    %v422 = vld [vmem:[%s417 + $0x20] sm:$0xff]
    %v423 = vld [vmem:[%s417 + $0x28] sm:$0xff]
    %v424 = vld [vmem:[%s417 + $0x30] sm:$0xff]
    %v425 = vld [vmem:[%s417 + $0x38] sm:$0xff]
    %v426 = vunpack.c.l.bf16 %v418
    %v427 = vunpack.c.h.bf16 %v418
    %v428 = vunpack.c.l.bf16 %v419
    %v429 = vunpack.c.h.bf16 %v419
    %v430 = vunpack.c.l.bf16 %v420
    %v431 = vunpack.c.h.bf16 %v420
    %v432 = vunpack.c.l.bf16 %v421
    %v433 = vunpack.c.h.bf16 %v421
    %v434 = vunpack.c.l.bf16 %v422
    %v435 = vunpack.c.h.bf16 %v422
    %v436 = vunpack.c.l.bf16 %v423
    %v437 = vunpack.c.h.bf16 %v423
    %v438 = vunpack.c.l.bf16 %v424
    %v439 = vunpack.c.h.bf16 %v424
    %v440 = vunpack.c.l.bf16 %v425
    %v441 = vunpack.c.h.bf16 %v425
    %s442 = scalar_lea.vmem %s1, 16
    %v443 = vld [vmem:[%s442] sm:$0xff]
    %v444 = vld [vmem:[%s442 + $0x8] sm:$0xff]
    %v445 = vunpack.c.l.bf16 %v443
    %v446 = vunpack.c.h.bf16 %v443
    %v447 = vunpack.c.l.bf16 %v444
    %v448 = vunpack.c.h.bf16 %v444
    %v453 = vlaneseq
    %v454 = vshrl.u32 %v453, 7
    %v455 = vsub.s32 0, %v454
    %v456 = vrot.slane %v445, %v455
    %v457 = vlaneseq
    %v458 = vshrl.u32 %v457, 7
    %v459 = vsub.s32 2, %v458
    %v460 = vrot.slane %v445, %v459
    %v461 = vlaneseq
    %v462 = vshrl.u32 %v461, 7
    %v463 = vsub.s32 4, %v462
    %v464 = vrot.slane %v445, %v463
    %v465 = vlaneseq
    %v466 = vshrl.u32 %v465, 7
    %v467 = vsub.s32 6, %v466
    %v468 = vrot.slane %v445, %v467
    %v469 = vlaneseq
    %v470 = vshrl.u32 %v469, 7
    %v471 = vsub.s32 0, %v470
    %v472 = vrot.slane %v446, %v471
    %v473 = vlaneseq
    %v474 = vshrl.u32 %v473, 7
    %v475 = vsub.s32 2, %v474
    %v476 = vrot.slane %v446, %v475
    %v477 = vlaneseq
    %v478 = vshrl.u32 %v477, 7
    %v479 = vsub.s32 4, %v478
    %v480 = vrot.slane %v446, %v479
    %v481 = vlaneseq
    %v482 = vshrl.u32 %v481, 7
    %v483 = vsub.s32 6, %v482
    %v484 = vrot.slane %v446, %v483
    %v485 = vlaneseq
    %v486 = vshrl.u32 %v485, 7
    %v487 = vsub.s32 0, %v486
    %v488 = vrot.slane %v447, %v487
    %v489 = vlaneseq
    %v490 = vshrl.u32 %v489, 7
    %v491 = vsub.s32 2, %v490
    %v492 = vrot.slane %v447, %v491
    %v493 = vlaneseq
    %v494 = vshrl.u32 %v493, 7
    %v495 = vsub.s32 4, %v494
    %v496 = vrot.slane %v447, %v495
    %v497 = vlaneseq
    %v498 = vshrl.u32 %v497, 7
    %v499 = vsub.s32 6, %v498
    %v500 = vrot.slane %v447, %v499
    %v501 = vlaneseq
    %v502 = vshrl.u32 %v501, 7
    %v503 = vsub.s32 0, %v502
    %v504 = vrot.slane %v448, %v503
    %v505 = vlaneseq
    %v506 = vshrl.u32 %v505, 7
    %v507 = vsub.s32 2, %v506
    %v508 = vrot.slane %v448, %v507
    %v509 = vlaneseq
    %v510 = vshrl.u32 %v509, 7
    %v511 = vsub.s32 4, %v510
    %v512 = vrot.slane %v448, %v511
    %v513 = vlaneseq
    %v514 = vshrl.u32 %v513, 7
    %v515 = vsub.s32 6, %v514
    %v516 = vrot.slane %v448, %v515
    %v533 = vlaneseq
    %v534 = vshrl.u32 %v533, 7
    %v535 = vsub.s32 0, %v534
    %v536 = vrot.slane %v456, %v535
    %v537 = vlaneseq
    %v538 = vshrl.u32 %v537, 7
    %v539 = vsub.s32 0, %v538
    %v540 = vrot.slane %v460, %v539
    %v541 = vlaneseq
    %v542 = vshrl.u32 %v541, 7
    %v543 = vsub.s32 0, %v542
    %v544 = vrot.slane %v464, %v543
    %v545 = vlaneseq
    %v546 = vshrl.u32 %v545, 7
    %v547 = vsub.s32 0, %v546
    %v548 = vrot.slane %v468, %v547
    %v549 = vlaneseq
    %v550 = vshrl.u32 %v549, 7
    %v551 = vsub.s32 0, %v550
    %v552 = vrot.slane %v472, %v551
    %v553 = vlaneseq
    %v554 = vshrl.u32 %v553, 7
    %v555 = vsub.s32 0, %v554
    %v556 = vrot.slane %v476, %v555
    %v557 = vlaneseq
    %v558 = vshrl.u32 %v557, 7
    %v559 = vsub.s32 0, %v558
    %v560 = vrot.slane %v480, %v559
    %v561 = vlaneseq
    %v562 = vshrl.u32 %v561, 7
    %v563 = vsub.s32 0, %v562
    %v564 = vrot.slane %v484, %v563
    %v565 = vlaneseq
    %v566 = vshrl.u32 %v565, 7
    %v567 = vsub.s32 0, %v566
    %v568 = vrot.slane %v488, %v567
    %v569 = vlaneseq
    %v570 = vshrl.u32 %v569, 7
    %v571 = vsub.s32 0, %v570
    %v572 = vrot.slane %v492, %v571
    %v573 = vlaneseq
    %v574 = vshrl.u32 %v573, 7
    %v575 = vsub.s32 0, %v574
    %v576 = vrot.slane %v496, %v575
    %v577 = vlaneseq
    %v578 = vshrl.u32 %v577, 7
    %v579 = vsub.s32 0, %v578
    %v580 = vrot.slane %v500, %v579
    %v581 = vlaneseq
    %v582 = vshrl.u32 %v581, 7
    %v583 = vsub.s32 0, %v582
    %v584 = vrot.slane %v504, %v583
    %v585 = vlaneseq
    %v586 = vshrl.u32 %v585, 7
    %v587 = vsub.s32 0, %v586
    %v588 = vrot.slane %v508, %v587
    %v589 = vlaneseq
    %v590 = vshrl.u32 %v589, 7
    %v591 = vsub.s32 0, %v590
    %v592 = vrot.slane %v512, %v591
    %v593 = vlaneseq
    %v594 = vshrl.u32 %v593, 7
    %v595 = vsub.s32 0, %v594
    %v596 = vrot.slane %v516, %v595
    %v597 = vmul.f32 %v426, %v536
    %v598 = vmul.f32 %v427, %v540
    %v599 = vmul.f32 %v428, %v544
    %v600 = vmul.f32 %v429, %v548
    %v601 = vmul.f32 %v430, %v552
    %v602 = vmul.f32 %v431, %v556
    %v603 = vmul.f32 %v432, %v560
    %v604 = vmul.f32 %v433, %v564
    %v605 = vmul.f32 %v434, %v568
    %v606 = vmul.f32 %v435, %v572
    %v607 = vmul.f32 %v436, %v576
    %v608 = vmul.f32 %v437, %v580
    %v609 = vmul.f32 %v438, %v584
    %v610 = vmul.f32 %v439, %v588
    %v611 = vmul.f32 %v440, %v592
    %v612 = vmul.f32 %v441, %v596
    %v613 = vadd.f32 %v597, %v598
    %v614 = vadd.f32 %v613, %v599
    %v615 = vadd.f32 %v614, %v600
    %v616 = vadd.f32 %v615, %v601
    %v617 = vadd.f32 %v616, %v602
    %v618 = vadd.f32 %v617, %v603
    %v619 = vadd.f32 %v618, %v604
    %v620 = vadd.f32 %v619, %v605
    %v621 = vadd.f32 %v620, %v606
    %v622 = vadd.f32 %v621, %v607
    %v623 = vadd.f32 %v622, %v608
    %v624 = vadd.f32 %v623, %v609
    %v625 = vadd.f32 %v624, %v610
    %v626 = vadd.f32 %v625, %v611
    %v627 = vadd.f32 %v626, %v612
    %628 = vadd.xlane.f32.xlu0 %v627
    %v629 = vpop.xlane.xlu0 %628
    %v630 = vadd.f32 %v238, %v629
    %v631 = vlaneseq
    %v632 = vshrl.u32 %v631, 7
    %v633 = vsub.s32 1, %v632
    %v634 = vrot.slane %v445, %v633
    %v635 = vlaneseq
    %v636 = vshrl.u32 %v635, 7
    %v637 = vsub.s32 3, %v636
    %v638 = vrot.slane %v445, %v637
    %v639 = vlaneseq
    %v640 = vshrl.u32 %v639, 7
    %v641 = vsub.s32 5, %v640
    %v642 = vrot.slane %v445, %v641
    %v643 = vlaneseq
    %v644 = vshrl.u32 %v643, 7
    %v645 = vsub.s32 7, %v644
    %v646 = vrot.slane %v445, %v645
    %v647 = vlaneseq
    %v648 = vshrl.u32 %v647, 7
    %v649 = vsub.s32 1, %v648
    %v650 = vrot.slane %v446, %v649
    %v651 = vlaneseq
    %v652 = vshrl.u32 %v651, 7
    %v653 = vsub.s32 3, %v652
    %v654 = vrot.slane %v446, %v653
    %v655 = vlaneseq
    %v656 = vshrl.u32 %v655, 7
    %v657 = vsub.s32 5, %v656
    %v658 = vrot.slane %v446, %v657
    %v659 = vlaneseq
    %v660 = vshrl.u32 %v659, 7
    %v661 = vsub.s32 7, %v660
    %v662 = vrot.slane %v446, %v661
    %v663 = vlaneseq
    %v664 = vshrl.u32 %v663, 7
    %v665 = vsub.s32 1, %v664
    %v666 = vrot.slane %v447, %v665
    %v667 = vlaneseq
    %v668 = vshrl.u32 %v667, 7
    %v669 = vsub.s32 3, %v668
    %v670 = vrot.slane %v447, %v669
    %v671 = vlaneseq
    %v672 = vshrl.u32 %v671, 7
    %v673 = vsub.s32 5, %v672
    %v674 = vrot.slane %v447, %v673
    %v675 = vlaneseq
    %v676 = vshrl.u32 %v675, 7
    %v677 = vsub.s32 7, %v676
    %v678 = vrot.slane %v447, %v677
    %v679 = vlaneseq
    %v680 = vshrl.u32 %v679, 7
    %v681 = vsub.s32 1, %v680
    %v682 = vrot.slane %v448, %v681
    %v683 = vlaneseq
    %v684 = vshrl.u32 %v683, 7
    %v685 = vsub.s32 3, %v684
    %v686 = vrot.slane %v448, %v685
    %v687 = vlaneseq
    %v688 = vshrl.u32 %v687, 7
    %v689 = vsub.s32 5, %v688
    %v690 = vrot.slane %v448, %v689
    %v691 = vlaneseq
    %v692 = vshrl.u32 %v691, 7
    %v693 = vsub.s32 7, %v692
    %v694 = vrot.slane %v448, %v693
    %v711 = vlaneseq
    %v712 = vshrl.u32 %v711, 7
    %v713 = vsub.s32 1, %v712
    %v714 = vrot.slane %v634, %v713
    %v715 = vlaneseq
    %v716 = vshrl.u32 %v715, 7
    %v717 = vsub.s32 1, %v716
    %v718 = vrot.slane %v638, %v717
    %v719 = vlaneseq
    %v720 = vshrl.u32 %v719, 7
    %v721 = vsub.s32 1, %v720
    %v722 = vrot.slane %v642, %v721
    %v723 = vlaneseq
    %v724 = vshrl.u32 %v723, 7
    %v725 = vsub.s32 1, %v724
    %v726 = vrot.slane %v646, %v725
    %v727 = vlaneseq
    %v728 = vshrl.u32 %v727, 7
    %v729 = vsub.s32 1, %v728
    %v730 = vrot.slane %v650, %v729
    %v731 = vlaneseq
    %v732 = vshrl.u32 %v731, 7
    %v733 = vsub.s32 1, %v732
    %v734 = vrot.slane %v654, %v733
    %v735 = vlaneseq
    %v736 = vshrl.u32 %v735, 7
    %v737 = vsub.s32 1, %v736
    %v738 = vrot.slane %v658, %v737
    %v739 = vlaneseq
    %v740 = vshrl.u32 %v739, 7
    %v741 = vsub.s32 1, %v740
    %v742 = vrot.slane %v662, %v741
    %v743 = vlaneseq
    %v744 = vshrl.u32 %v743, 7
    %v745 = vsub.s32 1, %v744
    %v746 = vrot.slane %v666, %v745
    %v747 = vlaneseq
    %v748 = vshrl.u32 %v747, 7
    %v749 = vsub.s32 1, %v748
    %v750 = vrot.slane %v670, %v749
    %v751 = vlaneseq
    %v752 = vshrl.u32 %v751, 7
    %v753 = vsub.s32 1, %v752
    %v754 = vrot.slane %v674, %v753
    %v755 = vlaneseq
    %v756 = vshrl.u32 %v755, 7
    %v757 = vsub.s32 1, %v756
    %v758 = vrot.slane %v678, %v757
    %v759 = vlaneseq
    %v760 = vshrl.u32 %v759, 7
    %v761 = vsub.s32 1, %v760
    %v762 = vrot.slane %v682, %v761
    %v763 = vlaneseq
    %v764 = vshrl.u32 %v763, 7
    %v765 = vsub.s32 1, %v764
    %v766 = vrot.slane %v686, %v765
    %v767 = vlaneseq
    %v768 = vshrl.u32 %v767, 7
    %v769 = vsub.s32 1, %v768
    %v770 = vrot.slane %v690, %v769
    %v771 = vlaneseq
    %v772 = vshrl.u32 %v771, 7
    %v773 = vsub.s32 1, %v772
    %v774 = vrot.slane %v694, %v773
    %v775 = vmul.f32 %v426, %v714
    %v776 = vmul.f32 %v427, %v718
    %v777 = vmul.f32 %v428, %v722
    %v778 = vmul.f32 %v429, %v726
    %v779 = vmul.f32 %v430, %v730
    %v780 = vmul.f32 %v431, %v734
    %v781 = vmul.f32 %v432, %v738
    %v782 = vmul.f32 %v433, %v742
    %v783 = vmul.f32 %v434, %v746
    %v784 = vmul.f32 %v435, %v750
    %v785 = vmul.f32 %v436, %v754
    %v786 = vmul.f32 %v437, %v758
    %v787 = vmul.f32 %v438, %v762
    %v788 = vmul.f32 %v439, %v766
    %v789 = vmul.f32 %v440, %v770
    %v790 = vmul.f32 %v441, %v774
    %v791 = vadd.f32 %v775, %v776
    %v792 = vadd.f32 %v791, %v777
    %v793 = vadd.f32 %v792, %v778
    %v794 = vadd.f32 %v793, %v779
    %v795 = vadd.f32 %v794, %v780
    %v796 = vadd.f32 %v795, %v781
    %v797 = vadd.f32 %v796, %v782
    %v798 = vadd.f32 %v797, %v783
    %v799 = vadd.f32 %v798, %v784
    %v800 = vadd.f32 %v799, %v785
    %v801 = vadd.f32 %v800, %v786
    %v802 = vadd.f32 %v801, %v787
    %v803 = vadd.f32 %v802, %v788
    %v804 = vadd.f32 %v803, %v789
    %v805 = vadd.f32 %v804, %v790
    %806 = vadd.xlane.f32.xlu0 %v805
    %v807 = vpop.xlane.xlu0 %806
    %v808 = vadd.f32 %v416, %v807
    %s809 = scalar_lea.vmem %s0, 128
    %v810 = vld [vmem:[%s809] sm:$0xff]
    %v811 = vld [vmem:[%s809 + $0x8] sm:$0xff]
    %v812 = vld [vmem:[%s809 + $0x10] sm:$0xff]
    %v813 = vld [vmem:[%s809 + $0x18] sm:$0xff]
    %v814 = vld [vmem:[%s809 + $0x20] sm:$0xff]
    %v815 = vld [vmem:[%s809 + $0x28] sm:$0xff]
    %v816 = vld [vmem:[%s809 + $0x30] sm:$0xff]
    %v817 = vld [vmem:[%s809 + $0x38] sm:$0xff]
    %v818 = vunpack.c.l.bf16 %v810
    %v819 = vunpack.c.h.bf16 %v810
    %v820 = vunpack.c.l.bf16 %v811
    %v821 = vunpack.c.h.bf16 %v811
    %v822 = vunpack.c.l.bf16 %v812
    %v823 = vunpack.c.h.bf16 %v812
    %v824 = vunpack.c.l.bf16 %v813
    %v825 = vunpack.c.h.bf16 %v813
    %v826 = vunpack.c.l.bf16 %v814
    %v827 = vunpack.c.h.bf16 %v814
    %v828 = vunpack.c.l.bf16 %v815
    %v829 = vunpack.c.h.bf16 %v815
    %v830 = vunpack.c.l.bf16 %v816
    %v831 = vunpack.c.h.bf16 %v816
    %v832 = vunpack.c.l.bf16 %v817
    %v833 = vunpack.c.h.bf16 %v817
    %s834 = scalar_lea.vmem %s1, 32
    %v835 = vld [vmem:[%s834] sm:$0xff]
    %v836 = vld [vmem:[%s834 + $0x8] sm:$0xff]
    %v837 = vunpack.c.l.bf16 %v835
    %v838 = vunpack.c.h.bf16 %v835
    %v839 = vunpack.c.l.bf16 %v836
    %v840 = vunpack.c.h.bf16 %v836
    %v845 = vlaneseq
    %v846 = vshrl.u32 %v845, 7
    %v847 = vsub.s32 0, %v846
    %v848 = vrot.slane %v837, %v847
    %v849 = vlaneseq
    %v850 = vshrl.u32 %v849, 7
    %v851 = vsub.s32 2, %v850
    %v852 = vrot.slane %v837, %v851
    %v853 = vlaneseq
    %v854 = vshrl.u32 %v853, 7
    %v855 = vsub.s32 4, %v854
    %v856 = vrot.slane %v837, %v855
    %v857 = vlaneseq
    %v858 = vshrl.u32 %v857, 7
    %v859 = vsub.s32 6, %v858
    %v860 = vrot.slane %v837, %v859
    %v861 = vlaneseq
    %v862 = vshrl.u32 %v861, 7
    %v863 = vsub.s32 0, %v862
    %v864 = vrot.slane %v838, %v863
    %v865 = vlaneseq
    %v866 = vshrl.u32 %v865, 7
    %v867 = vsub.s32 2, %v866
    %v868 = vrot.slane %v838, %v867
    %v869 = vlaneseq
    %v870 = vshrl.u32 %v869, 7
    %v871 = vsub.s32 4, %v870
    %v872 = vrot.slane %v838, %v871
    %v873 = vlaneseq
    %v874 = vshrl.u32 %v873, 7
    %v875 = vsub.s32 6, %v874
    %v876 = vrot.slane %v838, %v875
    %v877 = vlaneseq
    %v878 = vshrl.u32 %v877, 7
    %v879 = vsub.s32 0, %v878
    %v880 = vrot.slane %v839, %v879
    %v881 = vlaneseq
    %v882 = vshrl.u32 %v881, 7
    %v883 = vsub.s32 2, %v882
    %v884 = vrot.slane %v839, %v883
    %v885 = vlaneseq
    %v886 = vshrl.u32 %v885, 7
    %v887 = vsub.s32 4, %v886
    %v888 = vrot.slane %v839, %v887
    %v889 = vlaneseq
    %v890 = vshrl.u32 %v889, 7
    %v891 = vsub.s32 6, %v890
    %v892 = vrot.slane %v839, %v891
    %v893 = vlaneseq
    %v894 = vshrl.u32 %v893, 7
    %v895 = vsub.s32 0, %v894
    %v896 = vrot.slane %v840, %v895
    %v897 = vlaneseq
    %v898 = vshrl.u32 %v897, 7
    %v899 = vsub.s32 2, %v898
    %v900 = vrot.slane %v840, %v899
    %v901 = vlaneseq
    %v902 = vshrl.u32 %v901, 7
    %v903 = vsub.s32 4, %v902
    %v904 = vrot.slane %v840, %v903
    %v905 = vlaneseq
    %v906 = vshrl.u32 %v905, 7
    %v907 = vsub.s32 6, %v906
    %v908 = vrot.slane %v840, %v907
    %v925 = vlaneseq
    %v926 = vshrl.u32 %v925, 7
    %v927 = vsub.s32 0, %v926
    %v928 = vrot.slane %v848, %v927
    %v929 = vlaneseq
    %v930 = vshrl.u32 %v929, 7
    %v931 = vsub.s32 0, %v930
    %v932 = vrot.slane %v852, %v931
    %v933 = vlaneseq
    %v934 = vshrl.u32 %v933, 7
    %v935 = vsub.s32 0, %v934
    %v936 = vrot.slane %v856, %v935
    %v937 = vlaneseq
    %v938 = vshrl.u32 %v937, 7
    %v939 = vsub.s32 0, %v938
    %v940 = vrot.slane %v860, %v939
    %v941 = vlaneseq
    %v942 = vshrl.u32 %v941, 7
    %v943 = vsub.s32 0, %v942
    %v944 = vrot.slane %v864, %v943
    %v945 = vlaneseq
    %v946 = vshrl.u32 %v945, 7
    %v947 = vsub.s32 0, %v946
    %v948 = vrot.slane %v868, %v947
    %v949 = vlaneseq
    %v950 = vshrl.u32 %v949, 7
    %v951 = vsub.s32 0, %v950
    %v952 = vrot.slane %v872, %v951
    %v953 = vlaneseq
    %v954 = vshrl.u32 %v953, 7
    %v955 = vsub.s32 0, %v954
    %v956 = vrot.slane %v876, %v955
    %v957 = vlaneseq
    %v958 = vshrl.u32 %v957, 7
    %v959 = vsub.s32 0, %v958
    %v960 = vrot.slane %v880, %v959
    %v961 = vlaneseq
    %v962 = vshrl.u32 %v961, 7
    %v963 = vsub.s32 0, %v962
    %v964 = vrot.slane %v884, %v963
    %v965 = vlaneseq
    %v966 = vshrl.u32 %v965, 7
    %v967 = vsub.s32 0, %v966
    %v968 = vrot.slane %v888, %v967
    %v969 = vlaneseq
    %v970 = vshrl.u32 %v969, 7
    %v971 = vsub.s32 0, %v970
    %v972 = vrot.slane %v892, %v971
    %v973 = vlaneseq
    %v974 = vshrl.u32 %v973, 7
    %v975 = vsub.s32 0, %v974
    %v976 = vrot.slane %v896, %v975
    %v977 = vlaneseq
    %v978 = vshrl.u32 %v977, 7
    %v979 = vsub.s32 0, %v978
    %v980 = vrot.slane %v900, %v979
    %v981 = vlaneseq
    %v982 = vshrl.u32 %v981, 7
    %v983 = vsub.s32 0, %v982
    %v984 = vrot.slane %v904, %v983
    %v985 = vlaneseq
    %v986 = vshrl.u32 %v985, 7
    %v987 = vsub.s32 0, %v986
    %v988 = vrot.slane %v908, %v987
    %v989 = vmul.f32 %v818, %v928
    %v990 = vmul.f32 %v819, %v932
    %v991 = vmul.f32 %v820, %v936
    %v992 = vmul.f32 %v821, %v940
    %v993 = vmul.f32 %v822, %v944
    %v994 = vmul.f32 %v823, %v948
    %v995 = vmul.f32 %v824, %v952
    %v996 = vmul.f32 %v825, %v956
    %v997 = vmul.f32 %v826, %v960
    %v998 = vmul.f32 %v827, %v964
    %v999 = vmul.f32 %v828, %v968
    %v1000 = vmul.f32 %v829, %v972
    %v1001 = vmul.f32 %v830, %v976
    %v1002 = vmul.f32 %v831, %v980
    %v1003 = vmul.f32 %v832, %v984
    %v1004 = vmul.f32 %v833, %v988
    %v1005 = vadd.f32 %v989, %v990
    %v1006 = vadd.f32 %v1005, %v991
    %v1007 = vadd.f32 %v1006, %v992
    %v1008 = vadd.f32 %v1007, %v993
    %v1009 = vadd.f32 %v1008, %v994
    %v1010 = vadd.f32 %v1009, %v995
    %v1011 = vadd.f32 %v1010, %v996
    %v1012 = vadd.f32 %v1011, %v997
    %v1013 = vadd.f32 %v1012, %v998
    %v1014 = vadd.f32 %v1013, %v999
    %v1015 = vadd.f32 %v1014, %v1000
    %v1016 = vadd.f32 %v1015, %v1001
    %v1017 = vadd.f32 %v1016, %v1002
    %v1018 = vadd.f32 %v1017, %v1003
    %v1019 = vadd.f32 %v1018, %v1004
    %1020 = vadd.xlane.f32.xlu0 %v1019
    %v1021 = vpop.xlane.xlu0 %1020
    %v1022 = vadd.f32 %v630, %v1021
    %v1023 = vlaneseq
    %v1024 = vshrl.u32 %v1023, 7
    %v1025 = vsub.s32 1, %v1024
    %v1026 = vrot.slane %v837, %v1025
    %v1027 = vlaneseq
    %v1028 = vshrl.u32 %v1027, 7
    %v1029 = vsub.s32 3, %v1028
    %v1030 = vrot.slane %v837, %v1029
    %v1031 = vlaneseq
    %v1032 = vshrl.u32 %v1031, 7
    %v1033 = vsub.s32 5, %v1032
    %v1034 = vrot.slane %v837, %v1033
    %v1035 = vlaneseq
    %v1036 = vshrl.u32 %v1035, 7
    %v1037 = vsub.s32 7, %v1036
    %v1038 = vrot.slane %v837, %v1037
    %v1039 = vlaneseq
    %v1040 = vshrl.u32 %v1039, 7
    %v1041 = vsub.s32 1, %v1040
    %v1042 = vrot.slane %v838, %v1041
    %v1043 = vlaneseq
    %v1044 = vshrl.u32 %v1043, 7
    %v1045 = vsub.s32 3, %v1044
    %v1046 = vrot.slane %v838, %v1045
    %v1047 = vlaneseq
    %v1048 = vshrl.u32 %v1047, 7
    %v1049 = vsub.s32 5, %v1048
    %v1050 = vrot.slane %v838, %v1049
    %v1051 = vlaneseq
    %v1052 = vshrl.u32 %v1051, 7
    %v1053 = vsub.s32 7, %v1052
    %v1054 = vrot.slane %v838, %v1053
    %v1055 = vlaneseq
    %v1056 = vshrl.u32 %v1055, 7
    %v1057 = vsub.s32 1, %v1056
    %v1058 = vrot.slane %v839, %v1057
    %v1059 = vlaneseq
    %v1060 = vshrl.u32 %v1059, 7
    %v1061 = vsub.s32 3, %v1060
    %v1062 = vrot.slane %v839, %v1061
    %v1063 = vlaneseq
    %v1064 = vshrl.u32 %v1063, 7
    %v1065 = vsub.s32 5, %v1064
    %v1066 = vrot.slane %v839, %v1065
    %v1067 = vlaneseq
    %v1068 = vshrl.u32 %v1067, 7
    %v1069 = vsub.s32 7, %v1068
    %v1070 = vrot.slane %v839, %v1069
    %v1071 = vlaneseq
    %v1072 = vshrl.u32 %v1071, 7
    %v1073 = vsub.s32 1, %v1072
    %v1074 = vrot.slane %v840, %v1073
    %v1075 = vlaneseq
    %v1076 = vshrl.u32 %v1075, 7
    %v1077 = vsub.s32 3, %v1076
    %v1078 = vrot.slane %v840, %v1077
    %v1079 = vlaneseq
    %v1080 = vshrl.u32 %v1079, 7
    %v1081 = vsub.s32 5, %v1080
    %v1082 = vrot.slane %v840, %v1081
    %v1083 = vlaneseq
    %v1084 = vshrl.u32 %v1083, 7
    %v1085 = vsub.s32 7, %v1084
    %v1086 = vrot.slane %v840, %v1085
    %v1103 = vlaneseq
    %v1104 = vshrl.u32 %v1103, 7
    %v1105 = vsub.s32 1, %v1104
    %v1106 = vrot.slane %v1026, %v1105
    %v1107 = vlaneseq
    %v1108 = vshrl.u32 %v1107, 7
    %v1109 = vsub.s32 1, %v1108
    %v1110 = vrot.slane %v1030, %v1109
    %v1111 = vlaneseq
    %v1112 = vshrl.u32 %v1111, 7
    %v1113 = vsub.s32 1, %v1112
    %v1114 = vrot.slane %v1034, %v1113
    %v1115 = vlaneseq
    %v1116 = vshrl.u32 %v1115, 7
    %v1117 = vsub.s32 1, %v1116
    %v1118 = vrot.slane %v1038, %v1117
    %v1119 = vlaneseq
    %v1120 = vshrl.u32 %v1119, 7
    %v1121 = vsub.s32 1, %v1120
    %v1122 = vrot.slane %v1042, %v1121
    %v1123 = vlaneseq
    %v1124 = vshrl.u32 %v1123, 7
    %v1125 = vsub.s32 1, %v1124
    %v1126 = vrot.slane %v1046, %v1125
    %v1127 = vlaneseq
    %v1128 = vshrl.u32 %v1127, 7
    %v1129 = vsub.s32 1, %v1128
    %v1130 = vrot.slane %v1050, %v1129
    %v1131 = vlaneseq
    %v1132 = vshrl.u32 %v1131, 7
    %v1133 = vsub.s32 1, %v1132
    %v1134 = vrot.slane %v1054, %v1133
    %v1135 = vlaneseq
    %v1136 = vshrl.u32 %v1135, 7
    %v1137 = vsub.s32 1, %v1136
    %v1138 = vrot.slane %v1058, %v1137
    %v1139 = vlaneseq
    %v1140 = vshrl.u32 %v1139, 7
    %v1141 = vsub.s32 1, %v1140
    %v1142 = vrot.slane %v1062, %v1141
    %v1143 = vlaneseq
    %v1144 = vshrl.u32 %v1143, 7
    %v1145 = vsub.s32 1, %v1144
    %v1146 = vrot.slane %v1066, %v1145
    %v1147 = vlaneseq
    %v1148 = vshrl.u32 %v1147, 7
    %v1149 = vsub.s32 1, %v1148
    %v1150 = vrot.slane %v1070, %v1149
    %v1151 = vlaneseq
    %v1152 = vshrl.u32 %v1151, 7
    %v1153 = vsub.s32 1, %v1152
    %v1154 = vrot.slane %v1074, %v1153
    %v1155 = vlaneseq
    %v1156 = vshrl.u32 %v1155, 7
    %v1157 = vsub.s32 1, %v1156
    %v1158 = vrot.slane %v1078, %v1157
    %v1159 = vlaneseq
    %v1160 = vshrl.u32 %v1159, 7
    %v1161 = vsub.s32 1, %v1160
    %v1162 = vrot.slane %v1082, %v1161
    %v1163 = vlaneseq
    %v1164 = vshrl.u32 %v1163, 7
    %v1165 = vsub.s32 1, %v1164
    %v1166 = vrot.slane %v1086, %v1165
    %v1167 = vmul.f32 %v818, %v1106
    %v1168 = vmul.f32 %v819, %v1110
    %v1169 = vmul.f32 %v820, %v1114
    %v1170 = vmul.f32 %v821, %v1118
    %v1171 = vmul.f32 %v822, %v1122
    %v1172 = vmul.f32 %v823, %v1126
    %v1173 = vmul.f32 %v824, %v1130
    %v1174 = vmul.f32 %v825, %v1134
    %v1175 = vmul.f32 %v826, %v1138
    %v1176 = vmul.f32 %v827, %v1142
    %v1177 = vmul.f32 %v828, %v1146
    %v1178 = vmul.f32 %v829, %v1150
    %v1179 = vmul.f32 %v830, %v1154
    %v1180 = vmul.f32 %v831, %v1158
    %v1181 = vmul.f32 %v832, %v1162
    %v1182 = vmul.f32 %v833, %v1166
    %v1183 = vadd.f32 %v1167, %v1168
    %v1184 = vadd.f32 %v1183, %v1169
    %v1185 = vadd.f32 %v1184, %v1170
    %v1186 = vadd.f32 %v1185, %v1171
    %v1187 = vadd.f32 %v1186, %v1172
    %v1188 = vadd.f32 %v1187, %v1173
    %v1189 = vadd.f32 %v1188, %v1174
    %v1190 = vadd.f32 %v1189, %v1175
    %v1191 = vadd.f32 %v1190, %v1176
    %v1192 = vadd.f32 %v1191, %v1177
    %v1193 = vadd.f32 %v1192, %v1178
    %v1194 = vadd.f32 %v1193, %v1179
    %v1195 = vadd.f32 %v1194, %v1180
    %v1196 = vadd.f32 %v1195, %v1181
    %v1197 = vadd.f32 %v1196, %v1182
    %1198 = vadd.xlane.f32.xlu0 %v1197
    %v1199 = vpop.xlane.xlu0 %1198
    %v1200 = vadd.f32 %v808, %v1199
    %s1201 = scalar_lea.vmem %s0, 192
    %v1202 = vld [vmem:[%s1201] sm:$0xff]
    %v1203 = vld [vmem:[%s1201 + $0x8] sm:$0xff]
    %v1204 = vld [vmem:[%s1201 + $0x10] sm:$0xff]
    %v1205 = vld [vmem:[%s1201 + $0x18] sm:$0xff]
    %v1206 = vld [vmem:[%s1201 + $0x20] sm:$0xff]
    %v1207 = vld [vmem:[%s1201 + $0x28] sm:$0xff]
    %v1208 = vld [vmem:[%s1201 + $0x30] sm:$0xff]
    %v1209 = vld [vmem:[%s1201 + $0x38] sm:$0xff]
    %v1210 = vunpack.c.l.bf16 %v1202
    %v1211 = vunpack.c.h.bf16 %v1202
    %v1212 = vunpack.c.l.bf16 %v1203
    %v1213 = vunpack.c.h.bf16 %v1203
    %v1214 = vunpack.c.l.bf16 %v1204
    %v1215 = vunpack.c.h.bf16 %v1204
    %v1216 = vunpack.c.l.bf16 %v1205
    %v1217 = vunpack.c.h.bf16 %v1205
    %v1218 = vunpack.c.l.bf16 %v1206
    %v1219 = vunpack.c.h.bf16 %v1206
    %v1220 = vunpack.c.l.bf16 %v1207
    %v1221 = vunpack.c.h.bf16 %v1207
    %v1222 = vunpack.c.l.bf16 %v1208
    %v1223 = vunpack.c.h.bf16 %v1208
    %v1224 = vunpack.c.l.bf16 %v1209
    %v1225 = vunpack.c.h.bf16 %v1209
    %s1226 = scalar_lea.vmem %s1, 48
    %v1227 = vld [vmem:[%s1226] sm:$0xff]
    %v1228 = vld [vmem:[%s1226 + $0x8] sm:$0xff]
    %v1229 = vunpack.c.l.bf16 %v1227
    %v1230 = vunpack.c.h.bf16 %v1227
    %v1231 = vunpack.c.l.bf16 %v1228
    %v1232 = vunpack.c.h.bf16 %v1228
    %v1237 = vlaneseq
    %v1238 = vshrl.u32 %v1237, 7
    %v1239 = vsub.s32 0, %v1238
    %v1240 = vrot.slane %v1229, %v1239
    %v1241 = vlaneseq
    %v1242 = vshrl.u32 %v1241, 7
    %v1243 = vsub.s32 2, %v1242
    %v1244 = vrot.slane %v1229, %v1243
    %v1245 = vlaneseq
    %v1246 = vshrl.u32 %v1245, 7
    %v1247 = vsub.s32 4, %v1246
    %v1248 = vrot.slane %v1229, %v1247
    %v1249 = vlaneseq
    %v1250 = vshrl.u32 %v1249, 7
    %v1251 = vsub.s32 6, %v1250
    %v1252 = vrot.slane %v1229, %v1251
    %v1253 = vlaneseq
    %v1254 = vshrl.u32 %v1253, 7
    %v1255 = vsub.s32 0, %v1254
    %v1256 = vrot.slane %v1230, %v1255
    %v1257 = vlaneseq
    %v1258 = vshrl.u32 %v1257, 7
    %v1259 = vsub.s32 2, %v1258
    %v1260 = vrot.slane %v1230, %v1259
    %v1261 = vlaneseq
    %v1262 = vshrl.u32 %v1261, 7
    %v1263 = vsub.s32 4, %v1262
    %v1264 = vrot.slane %v1230, %v1263
    %v1265 = vlaneseq
    %v1266 = vshrl.u32 %v1265, 7
    %v1267 = vsub.s32 6, %v1266
    %v1268 = vrot.slane %v1230, %v1267
    %v1269 = vlaneseq
    %v1270 = vshrl.u32 %v1269, 7
    %v1271 = vsub.s32 0, %v1270
    %v1272 = vrot.slane %v1231, %v1271
    %v1273 = vlaneseq
    %v1274 = vshrl.u32 %v1273, 7
    %v1275 = vsub.s32 2, %v1274
    %v1276 = vrot.slane %v1231, %v1275
    %v1277 = vlaneseq
    %v1278 = vshrl.u32 %v1277, 7
    %v1279 = vsub.s32 4, %v1278
    %v1280 = vrot.slane %v1231, %v1279
    %v1281 = vlaneseq
    %v1282 = vshrl.u32 %v1281, 7
    %v1283 = vsub.s32 6, %v1282
    %v1284 = vrot.slane %v1231, %v1283
    %v1285 = vlaneseq
    %v1286 = vshrl.u32 %v1285, 7
    %v1287 = vsub.s32 0, %v1286
    %v1288 = vrot.slane %v1232, %v1287
    %v1289 = vlaneseq
    %v1290 = vshrl.u32 %v1289, 7
    %v1291 = vsub.s32 2, %v1290
    %v1292 = vrot.slane %v1232, %v1291
    %v1293 = vlaneseq
    %v1294 = vshrl.u32 %v1293, 7
    %v1295 = vsub.s32 4, %v1294
    %v1296 = vrot.slane %v1232, %v1295
    %v1297 = vlaneseq
    %v1298 = vshrl.u32 %v1297, 7
    %v1299 = vsub.s32 6, %v1298
    %v1300 = vrot.slane %v1232, %v1299
    %v1317 = vlaneseq
    %v1318 = vshrl.u32 %v1317, 7
    %v1319 = vsub.s32 0, %v1318
    %v1320 = vrot.slane %v1240, %v1319
    %v1321 = vlaneseq
    %v1322 = vshrl.u32 %v1321, 7
    %v1323 = vsub.s32 0, %v1322
    %v1324 = vrot.slane %v1244, %v1323
    %v1325 = vlaneseq
    %v1326 = vshrl.u32 %v1325, 7
    %v1327 = vsub.s32 0, %v1326
    %v1328 = vrot.slane %v1248, %v1327
    %v1329 = vlaneseq
    %v1330 = vshrl.u32 %v1329, 7
    %v1331 = vsub.s32 0, %v1330
    %v1332 = vrot.slane %v1252, %v1331
    %v1333 = vlaneseq
    %v1334 = vshrl.u32 %v1333, 7
    %v1335 = vsub.s32 0, %v1334
    %v1336 = vrot.slane %v1256, %v1335
    %v1337 = vlaneseq
    %v1338 = vshrl.u32 %v1337, 7
    %v1339 = vsub.s32 0, %v1338
    %v1340 = vrot.slane %v1260, %v1339
    %v1341 = vlaneseq
    %v1342 = vshrl.u32 %v1341, 7
    %v1343 = vsub.s32 0, %v1342
    %v1344 = vrot.slane %v1264, %v1343
    %v1345 = vlaneseq
    %v1346 = vshrl.u32 %v1345, 7
    %v1347 = vsub.s32 0, %v1346
    %v1348 = vrot.slane %v1268, %v1347
    %v1349 = vlaneseq
    %v1350 = vshrl.u32 %v1349, 7
    %v1351 = vsub.s32 0, %v1350
    %v1352 = vrot.slane %v1272, %v1351
    %v1353 = vlaneseq
    %v1354 = vshrl.u32 %v1353, 7
    %v1355 = vsub.s32 0, %v1354
    %v1356 = vrot.slane %v1276, %v1355
    %v1357 = vlaneseq
    %v1358 = vshrl.u32 %v1357, 7
    %v1359 = vsub.s32 0, %v1358
    %v1360 = vrot.slane %v1280, %v1359
    %v1361 = vlaneseq
    %v1362 = vshrl.u32 %v1361, 7
    %v1363 = vsub.s32 0, %v1362
    %v1364 = vrot.slane %v1284, %v1363
    %v1365 = vlaneseq
    %v1366 = vshrl.u32 %v1365, 7
    %v1367 = vsub.s32 0, %v1366
    %v1368 = vrot.slane %v1288, %v1367
    %v1369 = vlaneseq
    %v1370 = vshrl.u32 %v1369, 7
    %v1371 = vsub.s32 0, %v1370
    %v1372 = vrot.slane %v1292, %v1371
    %v1373 = vlaneseq
    %v1374 = vshrl.u32 %v1373, 7
    %v1375 = vsub.s32 0, %v1374
    %v1376 = vrot.slane %v1296, %v1375
    %v1377 = vlaneseq
    %v1378 = vshrl.u32 %v1377, 7
    %v1379 = vsub.s32 0, %v1378
    %v1380 = vrot.slane %v1300, %v1379
    %v1381 = vmul.f32 %v1210, %v1320
    %v1382 = vmul.f32 %v1211, %v1324
    %v1383 = vmul.f32 %v1212, %v1328
    %v1384 = vmul.f32 %v1213, %v1332
    %v1385 = vmul.f32 %v1214, %v1336
    %v1386 = vmul.f32 %v1215, %v1340
    %v1387 = vmul.f32 %v1216, %v1344
    %v1388 = vmul.f32 %v1217, %v1348
    %v1389 = vmul.f32 %v1218, %v1352
    %v1390 = vmul.f32 %v1219, %v1356
    %v1391 = vmul.f32 %v1220, %v1360
    %v1392 = vmul.f32 %v1221, %v1364
    %v1393 = vmul.f32 %v1222, %v1368
    %v1394 = vmul.f32 %v1223, %v1372
    %v1395 = vmul.f32 %v1224, %v1376
    %v1396 = vmul.f32 %v1225, %v1380
    %v1397 = vadd.f32 %v1381, %v1382
    %v1398 = vadd.f32 %v1397, %v1383
    %v1399 = vadd.f32 %v1398, %v1384
    %v1400 = vadd.f32 %v1399, %v1385
    %v1401 = vadd.f32 %v1400, %v1386
    %v1402 = vadd.f32 %v1401, %v1387
    %v1403 = vadd.f32 %v1402, %v1388
    %v1404 = vadd.f32 %v1403, %v1389
    %v1405 = vadd.f32 %v1404, %v1390
    %v1406 = vadd.f32 %v1405, %v1391
    %v1407 = vadd.f32 %v1406, %v1392
    %v1408 = vadd.f32 %v1407, %v1393
    %v1409 = vadd.f32 %v1408, %v1394
    %v1410 = vadd.f32 %v1409, %v1395
    %v1411 = vadd.f32 %v1410, %v1396
    %1412 = vadd.xlane.f32.xlu0 %v1411
    %v1413 = vpop.xlane.xlu0 %1412
    %v1414 = vadd.f32 %v1022, %v1413
    %v1415 = vlaneseq
    %v1416 = vshrl.u32 %v1415, 7
    %v1417 = vsub.s32 1, %v1416
    %v1418 = vrot.slane %v1229, %v1417
    %v1419 = vlaneseq
    %v1420 = vshrl.u32 %v1419, 7
    %v1421 = vsub.s32 3, %v1420
    %v1422 = vrot.slane %v1229, %v1421
    %v1423 = vlaneseq
    %v1424 = vshrl.u32 %v1423, 7
    %v1425 = vsub.s32 5, %v1424
    %v1426 = vrot.slane %v1229, %v1425
    %v1427 = vlaneseq
    %v1428 = vshrl.u32 %v1427, 7
    %v1429 = vsub.s32 7, %v1428
    %v1430 = vrot.slane %v1229, %v1429
    %v1431 = vlaneseq
    %v1432 = vshrl.u32 %v1431, 7
    %v1433 = vsub.s32 1, %v1432
    %v1434 = vrot.slane %v1230, %v1433
    %v1435 = vlaneseq
    %v1436 = vshrl.u32 %v1435, 7
    %v1437 = vsub.s32 3, %v1436
    %v1438 = vrot.slane %v1230, %v1437
    %v1439 = vlaneseq
    %v1440 = vshrl.u32 %v1439, 7
    %v1441 = vsub.s32 5, %v1440
    %v1442 = vrot.slane %v1230, %v1441
    %v1443 = vlaneseq
    %v1444 = vshrl.u32 %v1443, 7
    %v1445 = vsub.s32 7, %v1444
    %v1446 = vrot.slane %v1230, %v1445
    %v1447 = vlaneseq
    %v1448 = vshrl.u32 %v1447, 7
    %v1449 = vsub.s32 1, %v1448
    %v1450 = vrot.slane %v1231, %v1449
    %v1451 = vlaneseq
    %v1452 = vshrl.u32 %v1451, 7
    %v1453 = vsub.s32 3, %v1452
    %v1454 = vrot.slane %v1231, %v1453
    %v1455 = vlaneseq
    %v1456 = vshrl.u32 %v1455, 7
    %v1457 = vsub.s32 5, %v1456
    %v1458 = vrot.slane %v1231, %v1457
    %v1459 = vlaneseq
    %v1460 = vshrl.u32 %v1459, 7
    %v1461 = vsub.s32 7, %v1460
    %v1462 = vrot.slane %v1231, %v1461
    %v1463 = vlaneseq
    %v1464 = vshrl.u32 %v1463, 7
    %v1465 = vsub.s32 1, %v1464
    %v1466 = vrot.slane %v1232, %v1465
    %v1467 = vlaneseq
    %v1468 = vshrl.u32 %v1467, 7
    %v1469 = vsub.s32 3, %v1468
    %v1470 = vrot.slane %v1232, %v1469
    %v1471 = vlaneseq
    %v1472 = vshrl.u32 %v1471, 7
    %v1473 = vsub.s32 5, %v1472
    %v1474 = vrot.slane %v1232, %v1473
    %v1475 = vlaneseq
    %v1476 = vshrl.u32 %v1475, 7
    %v1477 = vsub.s32 7, %v1476
    %v1478 = vrot.slane %v1232, %v1477
    %v1495 = vlaneseq
    %v1496 = vshrl.u32 %v1495, 7
    %v1497 = vsub.s32 1, %v1496
    %v1498 = vrot.slane %v1418, %v1497
    %v1499 = vlaneseq
    %v1500 = vshrl.u32 %v1499, 7
    %v1501 = vsub.s32 1, %v1500
    %v1502 = vrot.slane %v1422, %v1501
    %v1503 = vlaneseq
    %v1504 = vshrl.u32 %v1503, 7
    %v1505 = vsub.s32 1, %v1504
    %v1506 = vrot.slane %v1426, %v1505
    %v1507 = vlaneseq
    %v1508 = vshrl.u32 %v1507, 7
    %v1509 = vsub.s32 1, %v1508
    %v1510 = vrot.slane %v1430, %v1509
    %v1511 = vlaneseq
    %v1512 = vshrl.u32 %v1511, 7
    %v1513 = vsub.s32 1, %v1512
    %v1514 = vrot.slane %v1434, %v1513
    %v1515 = vlaneseq
    %v1516 = vshrl.u32 %v1515, 7
    %v1517 = vsub.s32 1, %v1516
    %v1518 = vrot.slane %v1438, %v1517
    %v1519 = vlaneseq
    %v1520 = vshrl.u32 %v1519, 7
    %v1521 = vsub.s32 1, %v1520
    %v1522 = vrot.slane %v1442, %v1521
    %v1523 = vlaneseq
    %v1524 = vshrl.u32 %v1523, 7
    %v1525 = vsub.s32 1, %v1524
    %v1526 = vrot.slane %v1446, %v1525
    %v1527 = vlaneseq
    %v1528 = vshrl.u32 %v1527, 7
    %v1529 = vsub.s32 1, %v1528
    %v1530 = vrot.slane %v1450, %v1529
    %v1531 = vlaneseq
    %v1532 = vshrl.u32 %v1531, 7
    %v1533 = vsub.s32 1, %v1532
    %v1534 = vrot.slane %v1454, %v1533
    %v1535 = vlaneseq
    %v1536 = vshrl.u32 %v1535, 7
    %v1537 = vsub.s32 1, %v1536
    %v1538 = vrot.slane %v1458, %v1537
    %v1539 = vlaneseq
    %v1540 = vshrl.u32 %v1539, 7
    %v1541 = vsub.s32 1, %v1540
    %v1542 = vrot.slane %v1462, %v1541
    %v1543 = vlaneseq
    %v1544 = vshrl.u32 %v1543, 7
    %v1545 = vsub.s32 1, %v1544
    %v1546 = vrot.slane %v1466, %v1545
    %v1547 = vlaneseq
    %v1548 = vshrl.u32 %v1547, 7
    %v1549 = vsub.s32 1, %v1548
    %v1550 = vrot.slane %v1470, %v1549
    %v1551 = vlaneseq
    %v1552 = vshrl.u32 %v1551, 7
    %v1553 = vsub.s32 1, %v1552
    %v1554 = vrot.slane %v1474, %v1553
    %v1555 = vlaneseq
    %v1556 = vshrl.u32 %v1555, 7
    %v1557 = vsub.s32 1, %v1556
    %v1558 = vrot.slane %v1478, %v1557
    %v1559 = vmul.f32 %v1210, %v1498
    %v1560 = vmul.f32 %v1211, %v1502
    %v1561 = vmul.f32 %v1212, %v1506
    %v1562 = vmul.f32 %v1213, %v1510
    %v1563 = vmul.f32 %v1214, %v1514
    %v1564 = vmul.f32 %v1215, %v1518
    %v1565 = vmul.f32 %v1216, %v1522
    %v1566 = vmul.f32 %v1217, %v1526
    %v1567 = vmul.f32 %v1218, %v1530
    %v1568 = vmul.f32 %v1219, %v1534
    %v1569 = vmul.f32 %v1220, %v1538
    %v1570 = vmul.f32 %v1221, %v1542
    %v1571 = vmul.f32 %v1222, %v1546
    %v1572 = vmul.f32 %v1223, %v1550
    %v1573 = vmul.f32 %v1224, %v1554
    %v1574 = vmul.f32 %v1225, %v1558
    %v1575 = vadd.f32 %v1559, %v1560
    %v1576 = vadd.f32 %v1575, %v1561
    %v1577 = vadd.f32 %v1576, %v1562
    %v1578 = vadd.f32 %v1577, %v1563
    %v1579 = vadd.f32 %v1578, %v1564
    %v1580 = vadd.f32 %v1579, %v1565
    %v1581 = vadd.f32 %v1580, %v1566
    %v1582 = vadd.f32 %v1581, %v1567
    %v1583 = vadd.f32 %v1582, %v1568
    %v1584 = vadd.f32 %v1583, %v1569
    %v1585 = vadd.f32 %v1584, %v1570
    %v1586 = vadd.f32 %v1585, %v1571
    %v1587 = vadd.f32 %v1586, %v1572
    %v1588 = vadd.f32 %v1587, %v1573
    %v1589 = vadd.f32 %v1588, %v1574
    %1590 = vadd.xlane.f32.xlu0 %v1589
    %v1591 = vpop.xlane.xlu0 %1590
    %v1592 = vadd.f32 %v1200, %v1591
    %s1593 = scalar_lea.vmem %s0, 256
    %v1594 = vld [vmem:[%s1593] sm:$0xff]
    %v1595 = vld [vmem:[%s1593 + $0x8] sm:$0xff]
    %v1596 = vld [vmem:[%s1593 + $0x10] sm:$0xff]
    %v1597 = vld [vmem:[%s1593 + $0x18] sm:$0xff]
    %v1598 = vld [vmem:[%s1593 + $0x20] sm:$0xff]
    %v1599 = vld [vmem:[%s1593 + $0x28] sm:$0xff]
    %v1600 = vld [vmem:[%s1593 + $0x30] sm:$0xff]
    %v1601 = vld [vmem:[%s1593 + $0x38] sm:$0xff]
    %v1602 = vunpack.c.l.bf16 %v1594
    %v1603 = vunpack.c.h.bf16 %v1594
    %v1604 = vunpack.c.l.bf16 %v1595
    %v1605 = vunpack.c.h.bf16 %v1595
    %v1606 = vunpack.c.l.bf16 %v1596
    %v1607 = vunpack.c.h.bf16 %v1596
    %v1608 = vunpack.c.l.bf16 %v1597
    %v1609 = vunpack.c.h.bf16 %v1597
    %v1610 = vunpack.c.l.bf16 %v1598
    %v1611 = vunpack.c.h.bf16 %v1598
    %v1612 = vunpack.c.l.bf16 %v1599
    %v1613 = vunpack.c.h.bf16 %v1599
    %v1614 = vunpack.c.l.bf16 %v1600
    %v1615 = vunpack.c.h.bf16 %v1600
    %v1616 = vunpack.c.l.bf16 %v1601
    %v1617 = vunpack.c.h.bf16 %v1601
    %s1618 = scalar_lea.vmem %s1, 64
    %v1619 = vld [vmem:[%s1618] sm:$0xff]
    %v1620 = vld [vmem:[%s1618 + $0x8] sm:$0xff]
    %v1621 = vunpack.c.l.bf16 %v1619
    %v1622 = vunpack.c.h.bf16 %v1619
    %v1623 = vunpack.c.l.bf16 %v1620
    %v1624 = vunpack.c.h.bf16 %v1620
    %v1629 = vlaneseq
    %v1630 = vshrl.u32 %v1629, 7
    %v1631 = vsub.s32 0, %v1630
    %v1632 = vrot.slane %v1621, %v1631
    %v1633 = vlaneseq
    %v1634 = vshrl.u32 %v1633, 7
    %v1635 = vsub.s32 2, %v1634
    %v1636 = vrot.slane %v1621, %v1635
    %v1637 = vlaneseq
    %v1638 = vshrl.u32 %v1637, 7
    %v1639 = vsub.s32 4, %v1638
    %v1640 = vrot.slane %v1621, %v1639
    %v1641 = vlaneseq
    %v1642 = vshrl.u32 %v1641, 7
    %v1643 = vsub.s32 6, %v1642
    %v1644 = vrot.slane %v1621, %v1643
    %v1645 = vlaneseq
    %v1646 = vshrl.u32 %v1645, 7
    %v1647 = vsub.s32 0, %v1646
    %v1648 = vrot.slane %v1622, %v1647
    %v1649 = vlaneseq
    %v1650 = vshrl.u32 %v1649, 7
    %v1651 = vsub.s32 2, %v1650
    %v1652 = vrot.slane %v1622, %v1651
    %v1653 = vlaneseq
    %v1654 = vshrl.u32 %v1653, 7
    %v1655 = vsub.s32 4, %v1654
    %v1656 = vrot.slane %v1622, %v1655
    %v1657 = vlaneseq
    %v1658 = vshrl.u32 %v1657, 7
    %v1659 = vsub.s32 6, %v1658
    %v1660 = vrot.slane %v1622, %v1659
    %v1661 = vlaneseq
    %v1662 = vshrl.u32 %v1661, 7
    %v1663 = vsub.s32 0, %v1662
    %v1664 = vrot.slane %v1623, %v1663
    %v1665 = vlaneseq
    %v1666 = vshrl.u32 %v1665, 7
    %v1667 = vsub.s32 2, %v1666
    %v1668 = vrot.slane %v1623, %v1667
    %v1669 = vlaneseq
    %v1670 = vshrl.u32 %v1669, 7
    %v1671 = vsub.s32 4, %v1670
    %v1672 = vrot.slane %v1623, %v1671
    %v1673 = vlaneseq
    %v1674 = vshrl.u32 %v1673, 7
    %v1675 = vsub.s32 6, %v1674
    %v1676 = vrot.slane %v1623, %v1675
    %v1677 = vlaneseq
    %v1678 = vshrl.u32 %v1677, 7
    %v1679 = vsub.s32 0, %v1678
    %v1680 = vrot.slane %v1624, %v1679
    %v1681 = vlaneseq
    %v1682 = vshrl.u32 %v1681, 7
    %v1683 = vsub.s32 2, %v1682
    %v1684 = vrot.slane %v1624, %v1683
    %v1685 = vlaneseq
    %v1686 = vshrl.u32 %v1685, 7
    %v1687 = vsub.s32 4, %v1686
    %v1688 = vrot.slane %v1624, %v1687
    %v1689 = vlaneseq
    %v1690 = vshrl.u32 %v1689, 7
    %v1691 = vsub.s32 6, %v1690
    %v1692 = vrot.slane %v1624, %v1691
    %v1709 = vlaneseq
    %v1710 = vshrl.u32 %v1709, 7
    %v1711 = vsub.s32 0, %v1710
    %v1712 = vrot.slane %v1632, %v1711
    %v1713 = vlaneseq
    %v1714 = vshrl.u32 %v1713, 7
    %v1715 = vsub.s32 0, %v1714
    %v1716 = vrot.slane %v1636, %v1715
    %v1717 = vlaneseq
    %v1718 = vshrl.u32 %v1717, 7
    %v1719 = vsub.s32 0, %v1718
    %v1720 = vrot.slane %v1640, %v1719
    %v1721 = vlaneseq
    %v1722 = vshrl.u32 %v1721, 7
    %v1723 = vsub.s32 0, %v1722
    %v1724 = vrot.slane %v1644, %v1723
    %v1725 = vlaneseq
    %v1726 = vshrl.u32 %v1725, 7
    %v1727 = vsub.s32 0, %v1726
    %v1728 = vrot.slane %v1648, %v1727
    %v1729 = vlaneseq
    %v1730 = vshrl.u32 %v1729, 7
    %v1731 = vsub.s32 0, %v1730
    %v1732 = vrot.slane %v1652, %v1731
    %v1733 = vlaneseq
    %v1734 = vshrl.u32 %v1733, 7
    %v1735 = vsub.s32 0, %v1734
    %v1736 = vrot.slane %v1656, %v1735
    %v1737 = vlaneseq
    %v1738 = vshrl.u32 %v1737, 7
    %v1739 = vsub.s32 0, %v1738
    %v1740 = vrot.slane %v1660, %v1739
    %v1741 = vlaneseq
    %v1742 = vshrl.u32 %v1741, 7
    %v1743 = vsub.s32 0, %v1742
    %v1744 = vrot.slane %v1664, %v1743
    %v1745 = vlaneseq
    %v1746 = vshrl.u32 %v1745, 7
    %v1747 = vsub.s32 0, %v1746
    %v1748 = vrot.slane %v1668, %v1747
    %v1749 = vlaneseq
    %v1750 = vshrl.u32 %v1749, 7
    %v1751 = vsub.s32 0, %v1750
    %v1752 = vrot.slane %v1672, %v1751
    %v1753 = vlaneseq
    %v1754 = vshrl.u32 %v1753, 7
    %v1755 = vsub.s32 0, %v1754
    %v1756 = vrot.slane %v1676, %v1755
    %v1757 = vlaneseq
    %v1758 = vshrl.u32 %v1757, 7
    %v1759 = vsub.s32 0, %v1758
    %v1760 = vrot.slane %v1680, %v1759
    %v1761 = vlaneseq
    %v1762 = vshrl.u32 %v1761, 7
    %v1763 = vsub.s32 0, %v1762
    %v1764 = vrot.slane %v1684, %v1763
    %v1765 = vlaneseq
    %v1766 = vshrl.u32 %v1765, 7
    %v1767 = vsub.s32 0, %v1766
    %v1768 = vrot.slane %v1688, %v1767
    %v1769 = vlaneseq
    %v1770 = vshrl.u32 %v1769, 7
    %v1771 = vsub.s32 0, %v1770
    %v1772 = vrot.slane %v1692, %v1771
    %v1773 = vmul.f32 %v1602, %v1712
    %v1774 = vmul.f32 %v1603, %v1716
    %v1775 = vmul.f32 %v1604, %v1720
    %v1776 = vmul.f32 %v1605, %v1724
    %v1777 = vmul.f32 %v1606, %v1728
    %v1778 = vmul.f32 %v1607, %v1732
    %v1779 = vmul.f32 %v1608, %v1736
    %v1780 = vmul.f32 %v1609, %v1740
    %v1781 = vmul.f32 %v1610, %v1744
    %v1782 = vmul.f32 %v1611, %v1748
    %v1783 = vmul.f32 %v1612, %v1752
    %v1784 = vmul.f32 %v1613, %v1756
    %v1785 = vmul.f32 %v1614, %v1760
    %v1786 = vmul.f32 %v1615, %v1764
    %v1787 = vmul.f32 %v1616, %v1768
    %v1788 = vmul.f32 %v1617, %v1772
    %v1789 = vadd.f32 %v1773, %v1774
    %v1790 = vadd.f32 %v1789, %v1775
    %v1791 = vadd.f32 %v1790, %v1776
    %v1792 = vadd.f32 %v1791, %v1777
    %v1793 = vadd.f32 %v1792, %v1778
    %v1794 = vadd.f32 %v1793, %v1779
    %v1795 = vadd.f32 %v1794, %v1780
    %v1796 = vadd.f32 %v1795, %v1781
    %v1797 = vadd.f32 %v1796, %v1782
    %v1798 = vadd.f32 %v1797, %v1783
    %v1799 = vadd.f32 %v1798, %v1784
    %v1800 = vadd.f32 %v1799, %v1785
    %v1801 = vadd.f32 %v1800, %v1786
    %v1802 = vadd.f32 %v1801, %v1787
    %v1803 = vadd.f32 %v1802, %v1788
    %1804 = vadd.xlane.f32.xlu0 %v1803
    %v1805 = vpop.xlane.xlu0 %1804
    %v1806 = vadd.f32 %v1414, %v1805
    %v1807 = vlaneseq
    %v1808 = vshrl.u32 %v1807, 7
    %v1809 = vsub.s32 1, %v1808
    %v1810 = vrot.slane %v1621, %v1809
    %v1811 = vlaneseq
    %v1812 = vshrl.u32 %v1811, 7
    %v1813 = vsub.s32 3, %v1812
    %v1814 = vrot.slane %v1621, %v1813
    %v1815 = vlaneseq
    %v1816 = vshrl.u32 %v1815, 7
    %v1817 = vsub.s32 5, %v1816
    %v1818 = vrot.slane %v1621, %v1817
    %v1819 = vlaneseq
    %v1820 = vshrl.u32 %v1819, 7
    %v1821 = vsub.s32 7, %v1820
    %v1822 = vrot.slane %v1621, %v1821
    %v1823 = vlaneseq
    %v1824 = vshrl.u32 %v1823, 7
    %v1825 = vsub.s32 1, %v1824
    %v1826 = vrot.slane %v1622, %v1825
    %v1827 = vlaneseq
    %v1828 = vshrl.u32 %v1827, 7
    %v1829 = vsub.s32 3, %v1828
    %v1830 = vrot.slane %v1622, %v1829
    %v1831 = vlaneseq
    %v1832 = vshrl.u32 %v1831, 7
    %v1833 = vsub.s32 5, %v1832
    %v1834 = vrot.slane %v1622, %v1833
    %v1835 = vlaneseq
    %v1836 = vshrl.u32 %v1835, 7
    %v1837 = vsub.s32 7, %v1836
    %v1838 = vrot.slane %v1622, %v1837
    %v1839 = vlaneseq
    %v1840 = vshrl.u32 %v1839, 7
    %v1841 = vsub.s32 1, %v1840
    %v1842 = vrot.slane %v1623, %v1841
    %v1843 = vlaneseq
    %v1844 = vshrl.u32 %v1843, 7
    %v1845 = vsub.s32 3, %v1844
    %v1846 = vrot.slane %v1623, %v1845
    %v1847 = vlaneseq
    %v1848 = vshrl.u32 %v1847, 7
    %v1849 = vsub.s32 5, %v1848
    %v1850 = vrot.slane %v1623, %v1849
    %v1851 = vlaneseq
    %v1852 = vshrl.u32 %v1851, 7
    %v1853 = vsub.s32 7, %v1852
    %v1854 = vrot.slane %v1623, %v1853
    %v1855 = vlaneseq
    %v1856 = vshrl.u32 %v1855, 7
    %v1857 = vsub.s32 1, %v1856
    %v1858 = vrot.slane %v1624, %v1857
    %v1859 = vlaneseq
    %v1860 = vshrl.u32 %v1859, 7
    %v1861 = vsub.s32 3, %v1860
    %v1862 = vrot.slane %v1624, %v1861
    %v1863 = vlaneseq
    %v1864 = vshrl.u32 %v1863, 7
    %v1865 = vsub.s32 5, %v1864
    %v1866 = vrot.slane %v1624, %v1865
    %v1867 = vlaneseq
    %v1868 = vshrl.u32 %v1867, 7
    %v1869 = vsub.s32 7, %v1868
    %v1870 = vrot.slane %v1624, %v1869
    %v1887 = vlaneseq
    %v1888 = vshrl.u32 %v1887, 7
    %v1889 = vsub.s32 1, %v1888
    %v1890 = vrot.slane %v1810, %v1889
    %v1891 = vlaneseq
    %v1892 = vshrl.u32 %v1891, 7
    %v1893 = vsub.s32 1, %v1892
    %v1894 = vrot.slane %v1814, %v1893
    %v1895 = vlaneseq
    %v1896 = vshrl.u32 %v1895, 7
    %v1897 = vsub.s32 1, %v1896
    %v1898 = vrot.slane %v1818, %v1897
    %v1899 = vlaneseq
    %v1900 = vshrl.u32 %v1899, 7
    %v1901 = vsub.s32 1, %v1900
    %v1902 = vrot.slane %v1822, %v1901
    %v1903 = vlaneseq
    %v1904 = vshrl.u32 %v1903, 7
    %v1905 = vsub.s32 1, %v1904
    %v1906 = vrot.slane %v1826, %v1905
    %v1907 = vlaneseq
    %v1908 = vshrl.u32 %v1907, 7
    %v1909 = vsub.s32 1, %v1908
    %v1910 = vrot.slane %v1830, %v1909
    %v1911 = vlaneseq
    %v1912 = vshrl.u32 %v1911, 7
    %v1913 = vsub.s32 1, %v1912
    %v1914 = vrot.slane %v1834, %v1913
    %v1915 = vlaneseq
    %v1916 = vshrl.u32 %v1915, 7
    %v1917 = vsub.s32 1, %v1916
    %v1918 = vrot.slane %v1838, %v1917
    %v1919 = vlaneseq
    %v1920 = vshrl.u32 %v1919, 7
    %v1921 = vsub.s32 1, %v1920
    %v1922 = vrot.slane %v1842, %v1921
    %v1923 = vlaneseq
    %v1924 = vshrl.u32 %v1923, 7
    %v1925 = vsub.s32 1, %v1924
    %v1926 = vrot.slane %v1846, %v1925
    %v1927 = vlaneseq
    %v1928 = vshrl.u32 %v1927, 7
    %v1929 = vsub.s32 1, %v1928
    %v1930 = vrot.slane %v1850, %v1929
    %v1931 = vlaneseq
    %v1932 = vshrl.u32 %v1931, 7
    %v1933 = vsub.s32 1, %v1932
    %v1934 = vrot.slane %v1854, %v1933
    %v1935 = vlaneseq
    %v1936 = vshrl.u32 %v1935, 7
    %v1937 = vsub.s32 1, %v1936
    %v1938 = vrot.slane %v1858, %v1937
    %v1939 = vlaneseq
    %v1940 = vshrl.u32 %v1939, 7
    %v1941 = vsub.s32 1, %v1940
    %v1942 = vrot.slane %v1862, %v1941
    %v1943 = vlaneseq
    %v1944 = vshrl.u32 %v1943, 7
    %v1945 = vsub.s32 1, %v1944
    %v1946 = vrot.slane %v1866, %v1945
    %v1947 = vlaneseq
    %v1948 = vshrl.u32 %v1947, 7
    %v1949 = vsub.s32 1, %v1948
    %v1950 = vrot.slane %v1870, %v1949
    %v1951 = vmul.f32 %v1602, %v1890
    %v1952 = vmul.f32 %v1603, %v1894
    %v1953 = vmul.f32 %v1604, %v1898
    %v1954 = vmul.f32 %v1605, %v1902
    %v1955 = vmul.f32 %v1606, %v1906
    %v1956 = vmul.f32 %v1607, %v1910
    %v1957 = vmul.f32 %v1608, %v1914
    %v1958 = vmul.f32 %v1609, %v1918
    %v1959 = vmul.f32 %v1610, %v1922
    %v1960 = vmul.f32 %v1611, %v1926
    %v1961 = vmul.f32 %v1612, %v1930
    %v1962 = vmul.f32 %v1613, %v1934
    %v1963 = vmul.f32 %v1614, %v1938
    %v1964 = vmul.f32 %v1615, %v1942
    %v1965 = vmul.f32 %v1616, %v1946
    %v1966 = vmul.f32 %v1617, %v1950
    %v1967 = vadd.f32 %v1951, %v1952
    %v1968 = vadd.f32 %v1967, %v1953
    %v1969 = vadd.f32 %v1968, %v1954
    %v1970 = vadd.f32 %v1969, %v1955
    %v1971 = vadd.f32 %v1970, %v1956
    %v1972 = vadd.f32 %v1971, %v1957
    %v1973 = vadd.f32 %v1972, %v1958
    %v1974 = vadd.f32 %v1973, %v1959
    %v1975 = vadd.f32 %v1974, %v1960
    %v1976 = vadd.f32 %v1975, %v1961
    %v1977 = vadd.f32 %v1976, %v1962
    %v1978 = vadd.f32 %v1977, %v1963
    %v1979 = vadd.f32 %v1978, %v1964
    %v1980 = vadd.f32 %v1979, %v1965
    %v1981 = vadd.f32 %v1980, %v1966
    %1982 = vadd.xlane.f32.xlu0 %v1981
    %v1983 = vpop.xlane.xlu0 %1982
    %v1984 = vadd.f32 %v1592, %v1983
    %s1985 = scalar_lea.vmem %s0, 320
    %v1986 = vld [vmem:[%s1985] sm:$0xff]
    %v1987 = vld [vmem:[%s1985 + $0x8] sm:$0xff]
    %v1988 = vld [vmem:[%s1985 + $0x10] sm:$0xff]
    %v1989 = vld [vmem:[%s1985 + $0x18] sm:$0xff]
    %v1990 = vld [vmem:[%s1985 + $0x20] sm:$0xff]
    %v1991 = vld [vmem:[%s1985 + $0x28] sm:$0xff]
    %v1992 = vld [vmem:[%s1985 + $0x30] sm:$0xff]
    %v1993 = vld [vmem:[%s1985 + $0x38] sm:$0xff]
    %v1994 = vunpack.c.l.bf16 %v1986
    %v1995 = vunpack.c.h.bf16 %v1986
    %v1996 = vunpack.c.l.bf16 %v1987
    %v1997 = vunpack.c.h.bf16 %v1987
    %v1998 = vunpack.c.l.bf16 %v1988
    %v1999 = vunpack.c.h.bf16 %v1988
    %v2000 = vunpack.c.l.bf16 %v1989
    %v2001 = vunpack.c.h.bf16 %v1989
    %v2002 = vunpack.c.l.bf16 %v1990
    %v2003 = vunpack.c.h.bf16 %v1990
    %v2004 = vunpack.c.l.bf16 %v1991
    %v2005 = vunpack.c.h.bf16 %v1991
    %v2006 = vunpack.c.l.bf16 %v1992
    %v2007 = vunpack.c.h.bf16 %v1992
    %v2008 = vunpack.c.l.bf16 %v1993
    %v2009 = vunpack.c.h.bf16 %v1993
    %s2010 = scalar_lea.vmem %s1, 80
    %v2011 = vld [vmem:[%s2010] sm:$0xff]
    %v2012 = vld [vmem:[%s2010 + $0x8] sm:$0xff]
    %v2013 = vunpack.c.l.bf16 %v2011
    %v2014 = vunpack.c.h.bf16 %v2011
    %v2015 = vunpack.c.l.bf16 %v2012
    %v2016 = vunpack.c.h.bf16 %v2012
    %v2021 = vlaneseq
    %v2022 = vshrl.u32 %v2021, 7
    %v2023 = vsub.s32 0, %v2022
    %v2024 = vrot.slane %v2013, %v2023
    %v2025 = vlaneseq
    %v2026 = vshrl.u32 %v2025, 7
    %v2027 = vsub.s32 2, %v2026
    %v2028 = vrot.slane %v2013, %v2027
    %v2029 = vlaneseq
    %v2030 = vshrl.u32 %v2029, 7
    %v2031 = vsub.s32 4, %v2030
    %v2032 = vrot.slane %v2013, %v2031
    %v2033 = vlaneseq
    %v2034 = vshrl.u32 %v2033, 7
    %v2035 = vsub.s32 6, %v2034
    %v2036 = vrot.slane %v2013, %v2035
    %v2037 = vlaneseq
    %v2038 = vshrl.u32 %v2037, 7
    %v2039 = vsub.s32 0, %v2038
    %v2040 = vrot.slane %v2014, %v2039
    %v2041 = vlaneseq
    %v2042 = vshrl.u32 %v2041, 7
    %v2043 = vsub.s32 2, %v2042
    %v2044 = vrot.slane %v2014, %v2043
    %v2045 = vlaneseq
    %v2046 = vshrl.u32 %v2045, 7
    %v2047 = vsub.s32 4, %v2046
    %v2048 = vrot.slane %v2014, %v2047
    %v2049 = vlaneseq
    %v2050 = vshrl.u32 %v2049, 7
    %v2051 = vsub.s32 6, %v2050
    %v2052 = vrot.slane %v2014, %v2051
    %v2053 = vlaneseq
    %v2054 = vshrl.u32 %v2053, 7
    %v2055 = vsub.s32 0, %v2054
    %v2056 = vrot.slane %v2015, %v2055
    %v2057 = vlaneseq
    %v2058 = vshrl.u32 %v2057, 7
    %v2059 = vsub.s32 2, %v2058
    %v2060 = vrot.slane %v2015, %v2059
    %v2061 = vlaneseq
    %v2062 = vshrl.u32 %v2061, 7
    %v2063 = vsub.s32 4, %v2062
    %v2064 = vrot.slane %v2015, %v2063
    %v2065 = vlaneseq
    %v2066 = vshrl.u32 %v2065, 7
    %v2067 = vsub.s32 6, %v2066
    %v2068 = vrot.slane %v2015, %v2067
    %v2069 = vlaneseq
    %v2070 = vshrl.u32 %v2069, 7
    %v2071 = vsub.s32 0, %v2070
    %v2072 = vrot.slane %v2016, %v2071
    %v2073 = vlaneseq
    %v2074 = vshrl.u32 %v2073, 7
    %v2075 = vsub.s32 2, %v2074
    %v2076 = vrot.slane %v2016, %v2075
    %v2077 = vlaneseq
    %v2078 = vshrl.u32 %v2077, 7
    %v2079 = vsub.s32 4, %v2078
    %v2080 = vrot.slane %v2016, %v2079
    %v2081 = vlaneseq
    %v2082 = vshrl.u32 %v2081, 7
    %v2083 = vsub.s32 6, %v2082
    %v2084 = vrot.slane %v2016, %v2083
    %v2101 = vlaneseq
    %v2102 = vshrl.u32 %v2101, 7
    %v2103 = vsub.s32 0, %v2102
    %v2104 = vrot.slane %v2024, %v2103
    %v2105 = vlaneseq
    %v2106 = vshrl.u32 %v2105, 7
    %v2107 = vsub.s32 0, %v2106
    %v2108 = vrot.slane %v2028, %v2107
    %v2109 = vlaneseq
    %v2110 = vshrl.u32 %v2109, 7
    %v2111 = vsub.s32 0, %v2110
    %v2112 = vrot.slane %v2032, %v2111
    %v2113 = vlaneseq
    %v2114 = vshrl.u32 %v2113, 7
    %v2115 = vsub.s32 0, %v2114
    %v2116 = vrot.slane %v2036, %v2115
    %v2117 = vlaneseq
    %v2118 = vshrl.u32 %v2117, 7
    %v2119 = vsub.s32 0, %v2118
    %v2120 = vrot.slane %v2040, %v2119
    %v2121 = vlaneseq
    %v2122 = vshrl.u32 %v2121, 7
    %v2123 = vsub.s32 0, %v2122
    %v2124 = vrot.slane %v2044, %v2123
    %v2125 = vlaneseq
    %v2126 = vshrl.u32 %v2125, 7
    %v2127 = vsub.s32 0, %v2126
    %v2128 = vrot.slane %v2048, %v2127
    %v2129 = vlaneseq
    %v2130 = vshrl.u32 %v2129, 7
    %v2131 = vsub.s32 0, %v2130
    %v2132 = vrot.slane %v2052, %v2131
    %v2133 = vlaneseq
    %v2134 = vshrl.u32 %v2133, 7
    %v2135 = vsub.s32 0, %v2134
    %v2136 = vrot.slane %v2056, %v2135
    %v2137 = vlaneseq
    %v2138 = vshrl.u32 %v2137, 7
    %v2139 = vsub.s32 0, %v2138
    %v2140 = vrot.slane %v2060, %v2139
    %v2141 = vlaneseq
    %v2142 = vshrl.u32 %v2141, 7
    %v2143 = vsub.s32 0, %v2142
    %v2144 = vrot.slane %v2064, %v2143
    %v2145 = vlaneseq
    %v2146 = vshrl.u32 %v2145, 7
    %v2147 = vsub.s32 0, %v2146
    %v2148 = vrot.slane %v2068, %v2147
    %v2149 = vlaneseq
    %v2150 = vshrl.u32 %v2149, 7
    %v2151 = vsub.s32 0, %v2150
    %v2152 = vrot.slane %v2072, %v2151
    %v2153 = vlaneseq
    %v2154 = vshrl.u32 %v2153, 7
    %v2155 = vsub.s32 0, %v2154
    %v2156 = vrot.slane %v2076, %v2155
    %v2157 = vlaneseq
    %v2158 = vshrl.u32 %v2157, 7
    %v2159 = vsub.s32 0, %v2158
    %v2160 = vrot.slane %v2080, %v2159
    %v2161 = vlaneseq
    %v2162 = vshrl.u32 %v2161, 7
    %v2163 = vsub.s32 0, %v2162
    %v2164 = vrot.slane %v2084, %v2163
    %v2165 = vmul.f32 %v1994, %v2104
    %v2166 = vmul.f32 %v1995, %v2108
    %v2167 = vmul.f32 %v1996, %v2112
    %v2168 = vmul.f32 %v1997, %v2116
    %v2169 = vmul.f32 %v1998, %v2120
    %v2170 = vmul.f32 %v1999, %v2124
    %v2171 = vmul.f32 %v2000, %v2128
    %v2172 = vmul.f32 %v2001, %v2132
    %v2173 = vmul.f32 %v2002, %v2136
    %v2174 = vmul.f32 %v2003, %v2140
    %v2175 = vmul.f32 %v2004, %v2144
    %v2176 = vmul.f32 %v2005, %v2148
    %v2177 = vmul.f32 %v2006, %v2152
    %v2178 = vmul.f32 %v2007, %v2156
    %v2179 = vmul.f32 %v2008, %v2160
    %v2180 = vmul.f32 %v2009, %v2164
    %v2181 = vadd.f32 %v2165, %v2166
    %v2182 = vadd.f32 %v2181, %v2167
    %v2183 = vadd.f32 %v2182, %v2168
    %v2184 = vadd.f32 %v2183, %v2169
    %v2185 = vadd.f32 %v2184, %v2170
    %v2186 = vadd.f32 %v2185, %v2171
    %v2187 = vadd.f32 %v2186, %v2172
    %v2188 = vadd.f32 %v2187, %v2173
    %v2189 = vadd.f32 %v2188, %v2174
    %v2190 = vadd.f32 %v2189, %v2175
    %v2191 = vadd.f32 %v2190, %v2176
    %v2192 = vadd.f32 %v2191, %v2177
    %v2193 = vadd.f32 %v2192, %v2178
    %v2194 = vadd.f32 %v2193, %v2179
    %v2195 = vadd.f32 %v2194, %v2180
    %2196 = vadd.xlane.f32.xlu0 %v2195
    %v2197 = vpop.xlane.xlu0 %2196
    %v2198 = vadd.f32 %v1806, %v2197
    %v2199 = vlaneseq
    %v2200 = vshrl.u32 %v2199, 7
    %v2201 = vsub.s32 1, %v2200
    %v2202 = vrot.slane %v2013, %v2201
    %v2203 = vlaneseq
    %v2204 = vshrl.u32 %v2203, 7
    %v2205 = vsub.s32 3, %v2204
    %v2206 = vrot.slane %v2013, %v2205
    %v2207 = vlaneseq
    %v2208 = vshrl.u32 %v2207, 7
    %v2209 = vsub.s32 5, %v2208
    %v2210 = vrot.slane %v2013, %v2209
    %v2211 = vlaneseq
    %v2212 = vshrl.u32 %v2211, 7
    %v2213 = vsub.s32 7, %v2212
    %v2214 = vrot.slane %v2013, %v2213
    %v2215 = vlaneseq
    %v2216 = vshrl.u32 %v2215, 7
    %v2217 = vsub.s32 1, %v2216
    %v2218 = vrot.slane %v2014, %v2217
    %v2219 = vlaneseq
    %v2220 = vshrl.u32 %v2219, 7
    %v2221 = vsub.s32 3, %v2220
    %v2222 = vrot.slane %v2014, %v2221
    %v2223 = vlaneseq
    %v2224 = vshrl.u32 %v2223, 7
    %v2225 = vsub.s32 5, %v2224
    %v2226 = vrot.slane %v2014, %v2225
    %v2227 = vlaneseq
    %v2228 = vshrl.u32 %v2227, 7
    %v2229 = vsub.s32 7, %v2228
    %v2230 = vrot.slane %v2014, %v2229
    %v2231 = vlaneseq
    %v2232 = vshrl.u32 %v2231, 7
    %v2233 = vsub.s32 1, %v2232
    %v2234 = vrot.slane %v2015, %v2233
    %v2235 = vlaneseq
    %v2236 = vshrl.u32 %v2235, 7
    %v2237 = vsub.s32 3, %v2236
    %v2238 = vrot.slane %v2015, %v2237
    %v2239 = vlaneseq
    %v2240 = vshrl.u32 %v2239, 7
    %v2241 = vsub.s32 5, %v2240
    %v2242 = vrot.slane %v2015, %v2241
    %v2243 = vlaneseq
    %v2244 = vshrl.u32 %v2243, 7
    %v2245 = vsub.s32 7, %v2244
    %v2246 = vrot.slane %v2015, %v2245
    %v2247 = vlaneseq
    %v2248 = vshrl.u32 %v2247, 7
    %v2249 = vsub.s32 1, %v2248
    %v2250 = vrot.slane %v2016, %v2249
    %v2251 = vlaneseq
    %v2252 = vshrl.u32 %v2251, 7
    %v2253 = vsub.s32 3, %v2252
    %v2254 = vrot.slane %v2016, %v2253
    %v2255 = vlaneseq
    %v2256 = vshrl.u32 %v2255, 7
    %v2257 = vsub.s32 5, %v2256
    %v2258 = vrot.slane %v2016, %v2257
    %v2259 = vlaneseq
    %v2260 = vshrl.u32 %v2259, 7
    %v2261 = vsub.s32 7, %v2260
    %v2262 = vrot.slane %v2016, %v2261
    %v2279 = vlaneseq
    %v2280 = vshrl.u32 %v2279, 7
    %v2281 = vsub.s32 1, %v2280
    %v2282 = vrot.slane %v2202, %v2281
    %v2283 = vlaneseq
    %v2284 = vshrl.u32 %v2283, 7
    %v2285 = vsub.s32 1, %v2284
    %v2286 = vrot.slane %v2206, %v2285
    %v2287 = vlaneseq
    %v2288 = vshrl.u32 %v2287, 7
    %v2289 = vsub.s32 1, %v2288
    %v2290 = vrot.slane %v2210, %v2289
    %v2291 = vlaneseq
    %v2292 = vshrl.u32 %v2291, 7
    %v2293 = vsub.s32 1, %v2292
    %v2294 = vrot.slane %v2214, %v2293
    %v2295 = vlaneseq
    %v2296 = vshrl.u32 %v2295, 7
    %v2297 = vsub.s32 1, %v2296
    %v2298 = vrot.slane %v2218, %v2297
    %v2299 = vlaneseq
    %v2300 = vshrl.u32 %v2299, 7
    %v2301 = vsub.s32 1, %v2300
    %v2302 = vrot.slane %v2222, %v2301
    %v2303 = vlaneseq
    %v2304 = vshrl.u32 %v2303, 7
    %v2305 = vsub.s32 1, %v2304
    %v2306 = vrot.slane %v2226, %v2305
    %v2307 = vlaneseq
    %v2308 = vshrl.u32 %v2307, 7
    %v2309 = vsub.s32 1, %v2308
    %v2310 = vrot.slane %v2230, %v2309
    %v2311 = vlaneseq
    %v2312 = vshrl.u32 %v2311, 7
    %v2313 = vsub.s32 1, %v2312
    %v2314 = vrot.slane %v2234, %v2313
    %v2315 = vlaneseq
    %v2316 = vshrl.u32 %v2315, 7
    %v2317 = vsub.s32 1, %v2316
    %v2318 = vrot.slane %v2238, %v2317
    %v2319 = vlaneseq
    %v2320 = vshrl.u32 %v2319, 7
    %v2321 = vsub.s32 1, %v2320
    %v2322 = vrot.slane %v2242, %v2321
    %v2323 = vlaneseq
    %v2324 = vshrl.u32 %v2323, 7
    %v2325 = vsub.s32 1, %v2324
    %v2326 = vrot.slane %v2246, %v2325
    %v2327 = vlaneseq
    %v2328 = vshrl.u32 %v2327, 7
    %v2329 = vsub.s32 1, %v2328
    %v2330 = vrot.slane %v2250, %v2329
    %v2331 = vlaneseq
    %v2332 = vshrl.u32 %v2331, 7
    %v2333 = vsub.s32 1, %v2332
    %v2334 = vrot.slane %v2254, %v2333
    %v2335 = vlaneseq
    %v2336 = vshrl.u32 %v2335, 7
    %v2337 = vsub.s32 1, %v2336
    %v2338 = vrot.slane %v2258, %v2337
    %v2339 = vlaneseq
    %v2340 = vshrl.u32 %v2339, 7
    %v2341 = vsub.s32 1, %v2340
    %v2342 = vrot.slane %v2262, %v2341
    %v2343 = vmul.f32 %v1994, %v2282
    %v2344 = vmul.f32 %v1995, %v2286
    %v2345 = vmul.f32 %v1996, %v2290
    %v2346 = vmul.f32 %v1997, %v2294
    %v2347 = vmul.f32 %v1998, %v2298
    %v2348 = vmul.f32 %v1999, %v2302
    %v2349 = vmul.f32 %v2000, %v2306
    %v2350 = vmul.f32 %v2001, %v2310
    %v2351 = vmul.f32 %v2002, %v2314
    %v2352 = vmul.f32 %v2003, %v2318
    %v2353 = vmul.f32 %v2004, %v2322
    %v2354 = vmul.f32 %v2005, %v2326
    %v2355 = vmul.f32 %v2006, %v2330
    %v2356 = vmul.f32 %v2007, %v2334
    %v2357 = vmul.f32 %v2008, %v2338
    %v2358 = vmul.f32 %v2009, %v2342
    %v2359 = vadd.f32 %v2343, %v2344
    %v2360 = vadd.f32 %v2359, %v2345
    %v2361 = vadd.f32 %v2360, %v2346
    %v2362 = vadd.f32 %v2361, %v2347
    %v2363 = vadd.f32 %v2362, %v2348
    %v2364 = vadd.f32 %v2363, %v2349
    %v2365 = vadd.f32 %v2364, %v2350
    %v2366 = vadd.f32 %v2365, %v2351
    %v2367 = vadd.f32 %v2366, %v2352
    %v2368 = vadd.f32 %v2367, %v2353
    %v2369 = vadd.f32 %v2368, %v2354
    %v2370 = vadd.f32 %v2369, %v2355
    %v2371 = vadd.f32 %v2370, %v2356
    %v2372 = vadd.f32 %v2371, %v2357
    %v2373 = vadd.f32 %v2372, %v2358
    %2374 = vadd.xlane.f32.xlu0 %v2373
    %v2375 = vpop.xlane.xlu0 %2374
    %v2376 = vadd.f32 %v1984, %v2375
    %s2377 = scalar_lea.vmem %s0, 384
    %v2378 = vld [vmem:[%s2377] sm:$0xff]
    %v2379 = vld [vmem:[%s2377 + $0x8] sm:$0xff]
    %v2380 = vld [vmem:[%s2377 + $0x10] sm:$0xff]
    %v2381 = vld [vmem:[%s2377 + $0x18] sm:$0xff]
    %v2382 = vld [vmem:[%s2377 + $0x20] sm:$0xff]
    %v2383 = vld [vmem:[%s2377 + $0x28] sm:$0xff]
    %v2384 = vld [vmem:[%s2377 + $0x30] sm:$0xff]
    %v2385 = vld [vmem:[%s2377 + $0x38] sm:$0xff]
    %v2386 = vunpack.c.l.bf16 %v2378
    %v2387 = vunpack.c.h.bf16 %v2378
    %v2388 = vunpack.c.l.bf16 %v2379
    %v2389 = vunpack.c.h.bf16 %v2379
    %v2390 = vunpack.c.l.bf16 %v2380
    %v2391 = vunpack.c.h.bf16 %v2380
    %v2392 = vunpack.c.l.bf16 %v2381
    %v2393 = vunpack.c.h.bf16 %v2381
    %v2394 = vunpack.c.l.bf16 %v2382
    %v2395 = vunpack.c.h.bf16 %v2382
    %v2396 = vunpack.c.l.bf16 %v2383
    %v2397 = vunpack.c.h.bf16 %v2383
    %v2398 = vunpack.c.l.bf16 %v2384
    %v2399 = vunpack.c.h.bf16 %v2384
    %v2400 = vunpack.c.l.bf16 %v2385
    %v2401 = vunpack.c.h.bf16 %v2385
    %s2402 = scalar_lea.vmem %s1, 96
    %v2403 = vld [vmem:[%s2402] sm:$0xff]
    %v2404 = vld [vmem:[%s2402 + $0x8] sm:$0xff]
    %v2405 = vunpack.c.l.bf16 %v2403
    %v2406 = vunpack.c.h.bf16 %v2403
    %v2407 = vunpack.c.l.bf16 %v2404
    %v2408 = vunpack.c.h.bf16 %v2404
    %v2413 = vlaneseq
    %v2414 = vshrl.u32 %v2413, 7
    %v2415 = vsub.s32 0, %v2414
    %v2416 = vrot.slane %v2405, %v2415
    %v2417 = vlaneseq
    %v2418 = vshrl.u32 %v2417, 7
    %v2419 = vsub.s32 2, %v2418
    %v2420 = vrot.slane %v2405, %v2419
    %v2421 = vlaneseq
    %v2422 = vshrl.u32 %v2421, 7
    %v2423 = vsub.s32 4, %v2422
    %v2424 = vrot.slane %v2405, %v2423
    %v2425 = vlaneseq
    %v2426 = vshrl.u32 %v2425, 7
    %v2427 = vsub.s32 6, %v2426
    %v2428 = vrot.slane %v2405, %v2427
    %v2429 = vlaneseq
    %v2430 = vshrl.u32 %v2429, 7
    %v2431 = vsub.s32 0, %v2430
    %v2432 = vrot.slane %v2406, %v2431
    %v2433 = vlaneseq
    %v2434 = vshrl.u32 %v2433, 7
    %v2435 = vsub.s32 2, %v2434
    %v2436 = vrot.slane %v2406, %v2435
    %v2437 = vlaneseq
    %v2438 = vshrl.u32 %v2437, 7
    %v2439 = vsub.s32 4, %v2438
    %v2440 = vrot.slane %v2406, %v2439
    %v2441 = vlaneseq
    %v2442 = vshrl.u32 %v2441, 7
    %v2443 = vsub.s32 6, %v2442
    %v2444 = vrot.slane %v2406, %v2443
    %v2445 = vlaneseq
    %v2446 = vshrl.u32 %v2445, 7
    %v2447 = vsub.s32 0, %v2446
    %v2448 = vrot.slane %v2407, %v2447
    %v2449 = vlaneseq
    %v2450 = vshrl.u32 %v2449, 7
    %v2451 = vsub.s32 2, %v2450
    %v2452 = vrot.slane %v2407, %v2451
    %v2453 = vlaneseq
    %v2454 = vshrl.u32 %v2453, 7
    %v2455 = vsub.s32 4, %v2454
    %v2456 = vrot.slane %v2407, %v2455
    %v2457 = vlaneseq
    %v2458 = vshrl.u32 %v2457, 7
    %v2459 = vsub.s32 6, %v2458
    %v2460 = vrot.slane %v2407, %v2459
    %v2461 = vlaneseq
    %v2462 = vshrl.u32 %v2461, 7
    %v2463 = vsub.s32 0, %v2462
    %v2464 = vrot.slane %v2408, %v2463
    %v2465 = vlaneseq
    %v2466 = vshrl.u32 %v2465, 7
    %v2467 = vsub.s32 2, %v2466
    %v2468 = vrot.slane %v2408, %v2467
    %v2469 = vlaneseq
    %v2470 = vshrl.u32 %v2469, 7
    %v2471 = vsub.s32 4, %v2470
    %v2472 = vrot.slane %v2408, %v2471
    %v2473 = vlaneseq
    %v2474 = vshrl.u32 %v2473, 7
    %v2475 = vsub.s32 6, %v2474
    %v2476 = vrot.slane %v2408, %v2475
    %v2493 = vlaneseq
    %v2494 = vshrl.u32 %v2493, 7
    %v2495 = vsub.s32 0, %v2494
    %v2496 = vrot.slane %v2416, %v2495
    %v2497 = vlaneseq
    %v2498 = vshrl.u32 %v2497, 7
    %v2499 = vsub.s32 0, %v2498
    %v2500 = vrot.slane %v2420, %v2499
    %v2501 = vlaneseq
    %v2502 = vshrl.u32 %v2501, 7
    %v2503 = vsub.s32 0, %v2502
    %v2504 = vrot.slane %v2424, %v2503
    %v2505 = vlaneseq
    %v2506 = vshrl.u32 %v2505, 7
    %v2507 = vsub.s32 0, %v2506
    %v2508 = vrot.slane %v2428, %v2507
    %v2509 = vlaneseq
    %v2510 = vshrl.u32 %v2509, 7
    %v2511 = vsub.s32 0, %v2510
    %v2512 = vrot.slane %v2432, %v2511
    %v2513 = vlaneseq
    %v2514 = vshrl.u32 %v2513, 7
    %v2515 = vsub.s32 0, %v2514
    %v2516 = vrot.slane %v2436, %v2515
    %v2517 = vlaneseq
    %v2518 = vshrl.u32 %v2517, 7
    %v2519 = vsub.s32 0, %v2518
    %v2520 = vrot.slane %v2440, %v2519
    %v2521 = vlaneseq
    %v2522 = vshrl.u32 %v2521, 7
    %v2523 = vsub.s32 0, %v2522
    %v2524 = vrot.slane %v2444, %v2523
    %v2525 = vlaneseq
    %v2526 = vshrl.u32 %v2525, 7
    %v2527 = vsub.s32 0, %v2526
    %v2528 = vrot.slane %v2448, %v2527
    %v2529 = vlaneseq
    %v2530 = vshrl.u32 %v2529, 7
    %v2531 = vsub.s32 0, %v2530
    %v2532 = vrot.slane %v2452, %v2531
    %v2533 = vlaneseq
    %v2534 = vshrl.u32 %v2533, 7
    %v2535 = vsub.s32 0, %v2534
    %v2536 = vrot.slane %v2456, %v2535
    %v2537 = vlaneseq
    %v2538 = vshrl.u32 %v2537, 7
    %v2539 = vsub.s32 0, %v2538
    %v2540 = vrot.slane %v2460, %v2539
    %v2541 = vlaneseq
    %v2542 = vshrl.u32 %v2541, 7
    %v2543 = vsub.s32 0, %v2542
    %v2544 = vrot.slane %v2464, %v2543
    %v2545 = vlaneseq
    %v2546 = vshrl.u32 %v2545, 7
    %v2547 = vsub.s32 0, %v2546
    %v2548 = vrot.slane %v2468, %v2547
    %v2549 = vlaneseq
    %v2550 = vshrl.u32 %v2549, 7
    %v2551 = vsub.s32 0, %v2550
    %v2552 = vrot.slane %v2472, %v2551
    %v2553 = vlaneseq
    %v2554 = vshrl.u32 %v2553, 7
    %v2555 = vsub.s32 0, %v2554
    %v2556 = vrot.slane %v2476, %v2555
    %v2557 = vmul.f32 %v2386, %v2496
    %v2558 = vmul.f32 %v2387, %v2500
    %v2559 = vmul.f32 %v2388, %v2504
    %v2560 = vmul.f32 %v2389, %v2508
    %v2561 = vmul.f32 %v2390, %v2512
    %v2562 = vmul.f32 %v2391, %v2516
    %v2563 = vmul.f32 %v2392, %v2520
    %v2564 = vmul.f32 %v2393, %v2524
    %v2565 = vmul.f32 %v2394, %v2528
    %v2566 = vmul.f32 %v2395, %v2532
    %v2567 = vmul.f32 %v2396, %v2536
    %v2568 = vmul.f32 %v2397, %v2540
    %v2569 = vmul.f32 %v2398, %v2544
    %v2570 = vmul.f32 %v2399, %v2548
    %v2571 = vmul.f32 %v2400, %v2552
    %v2572 = vmul.f32 %v2401, %v2556
    %v2573 = vadd.f32 %v2557, %v2558
    %v2574 = vadd.f32 %v2573, %v2559
    %v2575 = vadd.f32 %v2574, %v2560
    %v2576 = vadd.f32 %v2575, %v2561
    %v2577 = vadd.f32 %v2576, %v2562
    %v2578 = vadd.f32 %v2577, %v2563
    %v2579 = vadd.f32 %v2578, %v2564
    %v2580 = vadd.f32 %v2579, %v2565
    %v2581 = vadd.f32 %v2580, %v2566
    %v2582 = vadd.f32 %v2581, %v2567
    %v2583 = vadd.f32 %v2582, %v2568
    %v2584 = vadd.f32 %v2583, %v2569
    %v2585 = vadd.f32 %v2584, %v2570
    %v2586 = vadd.f32 %v2585, %v2571
    %v2587 = vadd.f32 %v2586, %v2572
    %2588 = vadd.xlane.f32.xlu0 %v2587
    %v2589 = vpop.xlane.xlu0 %2588
    %v2590 = vadd.f32 %v2198, %v2589
    %v2591 = vlaneseq
    %v2592 = vshrl.u32 %v2591, 7
    %v2593 = vsub.s32 1, %v2592
    %v2594 = vrot.slane %v2405, %v2593
    %v2595 = vlaneseq
    %v2596 = vshrl.u32 %v2595, 7
    %v2597 = vsub.s32 3, %v2596
    %v2598 = vrot.slane %v2405, %v2597
    %v2599 = vlaneseq
    %v2600 = vshrl.u32 %v2599, 7
    %v2601 = vsub.s32 5, %v2600
    %v2602 = vrot.slane %v2405, %v2601
    %v2603 = vlaneseq
    %v2604 = vshrl.u32 %v2603, 7
    %v2605 = vsub.s32 7, %v2604
    %v2606 = vrot.slane %v2405, %v2605
    %v2607 = vlaneseq
    %v2608 = vshrl.u32 %v2607, 7
    %v2609 = vsub.s32 1, %v2608
    %v2610 = vrot.slane %v2406, %v2609
    %v2611 = vlaneseq
    %v2612 = vshrl.u32 %v2611, 7
    %v2613 = vsub.s32 3, %v2612
    %v2614 = vrot.slane %v2406, %v2613
    %v2615 = vlaneseq
    %v2616 = vshrl.u32 %v2615, 7
    %v2617 = vsub.s32 5, %v2616
    %v2618 = vrot.slane %v2406, %v2617
    %v2619 = vlaneseq
    %v2620 = vshrl.u32 %v2619, 7
    %v2621 = vsub.s32 7, %v2620
    %v2622 = vrot.slane %v2406, %v2621
    %v2623 = vlaneseq
    %v2624 = vshrl.u32 %v2623, 7
    %v2625 = vsub.s32 1, %v2624
    %v2626 = vrot.slane %v2407, %v2625
    %v2627 = vlaneseq
    %v2628 = vshrl.u32 %v2627, 7
    %v2629 = vsub.s32 3, %v2628
    %v2630 = vrot.slane %v2407, %v2629
    %v2631 = vlaneseq
    %v2632 = vshrl.u32 %v2631, 7
    %v2633 = vsub.s32 5, %v2632
    %v2634 = vrot.slane %v2407, %v2633
    %v2635 = vlaneseq
    %v2636 = vshrl.u32 %v2635, 7
    %v2637 = vsub.s32 7, %v2636
    %v2638 = vrot.slane %v2407, %v2637
    %v2639 = vlaneseq
    %v2640 = vshrl.u32 %v2639, 7
    %v2641 = vsub.s32 1, %v2640
    %v2642 = vrot.slane %v2408, %v2641
    %v2643 = vlaneseq
    %v2644 = vshrl.u32 %v2643, 7
    %v2645 = vsub.s32 3, %v2644
    %v2646 = vrot.slane %v2408, %v2645
    %v2647 = vlaneseq
    %v2648 = vshrl.u32 %v2647, 7
    %v2649 = vsub.s32 5, %v2648
    %v2650 = vrot.slane %v2408, %v2649
    %v2651 = vlaneseq
    %v2652 = vshrl.u32 %v2651, 7
    %v2653 = vsub.s32 7, %v2652
    %v2654 = vrot.slane %v2408, %v2653
    %v2671 = vlaneseq
    %v2672 = vshrl.u32 %v2671, 7
    %v2673 = vsub.s32 1, %v2672
    %v2674 = vrot.slane %v2594, %v2673
    %v2675 = vlaneseq
    %v2676 = vshrl.u32 %v2675, 7
    %v2677 = vsub.s32 1, %v2676
    %v2678 = vrot.slane %v2598, %v2677
    %v2679 = vlaneseq
    %v2680 = vshrl.u32 %v2679, 7
    %v2681 = vsub.s32 1, %v2680
    %v2682 = vrot.slane %v2602, %v2681
    %v2683 = vlaneseq
    %v2684 = vshrl.u32 %v2683, 7
    %v2685 = vsub.s32 1, %v2684
    %v2686 = vrot.slane %v2606, %v2685
    %v2687 = vlaneseq
    %v2688 = vshrl.u32 %v2687, 7
    %v2689 = vsub.s32 1, %v2688
    %v2690 = vrot.slane %v2610, %v2689
    %v2691 = vlaneseq
    %v2692 = vshrl.u32 %v2691, 7
    %v2693 = vsub.s32 1, %v2692
    %v2694 = vrot.slane %v2614, %v2693
    %v2695 = vlaneseq
    %v2696 = vshrl.u32 %v2695, 7
    %v2697 = vsub.s32 1, %v2696
    %v2698 = vrot.slane %v2618, %v2697
    %v2699 = vlaneseq
    %v2700 = vshrl.u32 %v2699, 7
    %v2701 = vsub.s32 1, %v2700
    %v2702 = vrot.slane %v2622, %v2701
    %v2703 = vlaneseq
    %v2704 = vshrl.u32 %v2703, 7
    %v2705 = vsub.s32 1, %v2704
    %v2706 = vrot.slane %v2626, %v2705
    %v2707 = vlaneseq
    %v2708 = vshrl.u32 %v2707, 7
    %v2709 = vsub.s32 1, %v2708
    %v2710 = vrot.slane %v2630, %v2709
    %v2711 = vlaneseq
    %v2712 = vshrl.u32 %v2711, 7
    %v2713 = vsub.s32 1, %v2712
    %v2714 = vrot.slane %v2634, %v2713
    %v2715 = vlaneseq
    %v2716 = vshrl.u32 %v2715, 7
    %v2717 = vsub.s32 1, %v2716
    %v2718 = vrot.slane %v2638, %v2717
    %v2719 = vlaneseq
    %v2720 = vshrl.u32 %v2719, 7
    %v2721 = vsub.s32 1, %v2720
    %v2722 = vrot.slane %v2642, %v2721
    %v2723 = vlaneseq
    %v2724 = vshrl.u32 %v2723, 7
    %v2725 = vsub.s32 1, %v2724
    %v2726 = vrot.slane %v2646, %v2725
    %v2727 = vlaneseq
    %v2728 = vshrl.u32 %v2727, 7
    %v2729 = vsub.s32 1, %v2728
    %v2730 = vrot.slane %v2650, %v2729
    %v2731 = vlaneseq
    %v2732 = vshrl.u32 %v2731, 7
    %v2733 = vsub.s32 1, %v2732
    %v2734 = vrot.slane %v2654, %v2733
    %v2735 = vmul.f32 %v2386, %v2674
    %v2736 = vmul.f32 %v2387, %v2678
    %v2737 = vmul.f32 %v2388, %v2682
    %v2738 = vmul.f32 %v2389, %v2686
    %v2739 = vmul.f32 %v2390, %v2690
    %v2740 = vmul.f32 %v2391, %v2694
    %v2741 = vmul.f32 %v2392, %v2698
    %v2742 = vmul.f32 %v2393, %v2702
    %v2743 = vmul.f32 %v2394, %v2706
    %v2744 = vmul.f32 %v2395, %v2710
    %v2745 = vmul.f32 %v2396, %v2714
    %v2746 = vmul.f32 %v2397, %v2718
    %v2747 = vmul.f32 %v2398, %v2722
    %v2748 = vmul.f32 %v2399, %v2726
    %v2749 = vmul.f32 %v2400, %v2730
    %v2750 = vmul.f32 %v2401, %v2734
    %v2751 = vadd.f32 %v2735, %v2736
    %v2752 = vadd.f32 %v2751, %v2737
    %v2753 = vadd.f32 %v2752, %v2738
    %v2754 = vadd.f32 %v2753, %v2739
    %v2755 = vadd.f32 %v2754, %v2740
    %v2756 = vadd.f32 %v2755, %v2741
    %v2757 = vadd.f32 %v2756, %v2742
    %v2758 = vadd.f32 %v2757, %v2743
    %v2759 = vadd.f32 %v2758, %v2744
    %v2760 = vadd.f32 %v2759, %v2745
    %v2761 = vadd.f32 %v2760, %v2746
    %v2762 = vadd.f32 %v2761, %v2747
    %v2763 = vadd.f32 %v2762, %v2748
    %v2764 = vadd.f32 %v2763, %v2749
    %v2765 = vadd.f32 %v2764, %v2750
    %2766 = vadd.xlane.f32.xlu0 %v2765
    %v2767 = vpop.xlane.xlu0 %2766
    %v2768 = vadd.f32 %v2376, %v2767
    %s2769 = scalar_lea.vmem %s0, 448
    %v2770 = vld [vmem:[%s2769] sm:$0xff]
    %v2771 = vld [vmem:[%s2769 + $0x8] sm:$0xff]
    %v2772 = vld [vmem:[%s2769 + $0x10] sm:$0xff]
    %v2773 = vld [vmem:[%s2769 + $0x18] sm:$0xff]
    %v2774 = vld [vmem:[%s2769 + $0x20] sm:$0xff]
    %v2775 = vld [vmem:[%s2769 + $0x28] sm:$0xff]
    %v2776 = vld [vmem:[%s2769 + $0x30] sm:$0xff]
    %v2777 = vld [vmem:[%s2769 + $0x38] sm:$0xff]
    %v2778 = vunpack.c.l.bf16 %v2770
    %v2779 = vunpack.c.h.bf16 %v2770
    %v2780 = vunpack.c.l.bf16 %v2771
    %v2781 = vunpack.c.h.bf16 %v2771
    %v2782 = vunpack.c.l.bf16 %v2772
    %v2783 = vunpack.c.h.bf16 %v2772
    %v2784 = vunpack.c.l.bf16 %v2773
    %v2785 = vunpack.c.h.bf16 %v2773
    %v2786 = vunpack.c.l.bf16 %v2774
    %v2787 = vunpack.c.h.bf16 %v2774
    %v2788 = vunpack.c.l.bf16 %v2775
    %v2789 = vunpack.c.h.bf16 %v2775
    %v2790 = vunpack.c.l.bf16 %v2776
    %v2791 = vunpack.c.h.bf16 %v2776
    %v2792 = vunpack.c.l.bf16 %v2777
    %v2793 = vunpack.c.h.bf16 %v2777
    %s2794 = scalar_lea.vmem %s1, 112
    %v2795 = vld [vmem:[%s2794] sm:$0xff]
    %v2796 = vld [vmem:[%s2794 + $0x8] sm:$0xff]
    %v2797 = vunpack.c.l.bf16 %v2795
    %v2798 = vunpack.c.h.bf16 %v2795
    %v2799 = vunpack.c.l.bf16 %v2796
    %v2800 = vunpack.c.h.bf16 %v2796
    %v2805 = vlaneseq
    %v2806 = vshrl.u32 %v2805, 7
    %v2807 = vsub.s32 0, %v2806
    %v2808 = vrot.slane %v2797, %v2807
    %v2809 = vlaneseq
    %v2810 = vshrl.u32 %v2809, 7
    %v2811 = vsub.s32 2, %v2810
    %v2812 = vrot.slane %v2797, %v2811
    %v2813 = vlaneseq
    %v2814 = vshrl.u32 %v2813, 7
    %v2815 = vsub.s32 4, %v2814
    %v2816 = vrot.slane %v2797, %v2815
    %v2817 = vlaneseq
    %v2818 = vshrl.u32 %v2817, 7
    %v2819 = vsub.s32 6, %v2818
    %v2820 = vrot.slane %v2797, %v2819
    %v2821 = vlaneseq
    %v2822 = vshrl.u32 %v2821, 7
    %v2823 = vsub.s32 0, %v2822
    %v2824 = vrot.slane %v2798, %v2823
    %v2825 = vlaneseq
    %v2826 = vshrl.u32 %v2825, 7
    %v2827 = vsub.s32 2, %v2826
    %v2828 = vrot.slane %v2798, %v2827
    %v2829 = vlaneseq
    %v2830 = vshrl.u32 %v2829, 7
    %v2831 = vsub.s32 4, %v2830
    %v2832 = vrot.slane %v2798, %v2831
    %v2833 = vlaneseq
    %v2834 = vshrl.u32 %v2833, 7
    %v2835 = vsub.s32 6, %v2834
    %v2836 = vrot.slane %v2798, %v2835
    %v2837 = vlaneseq
    %v2838 = vshrl.u32 %v2837, 7
    %v2839 = vsub.s32 0, %v2838
    %v2840 = vrot.slane %v2799, %v2839
    %v2841 = vlaneseq
    %v2842 = vshrl.u32 %v2841, 7
    %v2843 = vsub.s32 2, %v2842
    %v2844 = vrot.slane %v2799, %v2843
    %v2845 = vlaneseq
    %v2846 = vshrl.u32 %v2845, 7
    %v2847 = vsub.s32 4, %v2846
    %v2848 = vrot.slane %v2799, %v2847
    %v2849 = vlaneseq
    %v2850 = vshrl.u32 %v2849, 7
    %v2851 = vsub.s32 6, %v2850
    %v2852 = vrot.slane %v2799, %v2851
    %v2853 = vlaneseq
    %v2854 = vshrl.u32 %v2853, 7
    %v2855 = vsub.s32 0, %v2854
    %v2856 = vrot.slane %v2800, %v2855
    %v2857 = vlaneseq
    %v2858 = vshrl.u32 %v2857, 7
    %v2859 = vsub.s32 2, %v2858
    %v2860 = vrot.slane %v2800, %v2859
    %v2861 = vlaneseq
    %v2862 = vshrl.u32 %v2861, 7
    %v2863 = vsub.s32 4, %v2862
    %v2864 = vrot.slane %v2800, %v2863
    %v2865 = vlaneseq
    %v2866 = vshrl.u32 %v2865, 7
    %v2867 = vsub.s32 6, %v2866
    %v2868 = vrot.slane %v2800, %v2867
    %v2885 = vlaneseq
    %v2886 = vshrl.u32 %v2885, 7
    %v2887 = vsub.s32 0, %v2886
    %v2888 = vrot.slane %v2808, %v2887
    %v2889 = vlaneseq
    %v2890 = vshrl.u32 %v2889, 7
    %v2891 = vsub.s32 0, %v2890
    %v2892 = vrot.slane %v2812, %v2891
    %v2893 = vlaneseq
    %v2894 = vshrl.u32 %v2893, 7
    %v2895 = vsub.s32 0, %v2894
    %v2896 = vrot.slane %v2816, %v2895
    %v2897 = vlaneseq
    %v2898 = vshrl.u32 %v2897, 7
    %v2899 = vsub.s32 0, %v2898
    %v2900 = vrot.slane %v2820, %v2899
    %v2901 = vlaneseq
    %v2902 = vshrl.u32 %v2901, 7
    %v2903 = vsub.s32 0, %v2902
    %v2904 = vrot.slane %v2824, %v2903
    %v2905 = vlaneseq
    %v2906 = vshrl.u32 %v2905, 7
    %v2907 = vsub.s32 0, %v2906
    %v2908 = vrot.slane %v2828, %v2907
    %v2909 = vlaneseq
    %v2910 = vshrl.u32 %v2909, 7
    %v2911 = vsub.s32 0, %v2910
    %v2912 = vrot.slane %v2832, %v2911
    %v2913 = vlaneseq
    %v2914 = vshrl.u32 %v2913, 7
    %v2915 = vsub.s32 0, %v2914
    %v2916 = vrot.slane %v2836, %v2915
    %v2917 = vlaneseq
    %v2918 = vshrl.u32 %v2917, 7
    %v2919 = vsub.s32 0, %v2918
    %v2920 = vrot.slane %v2840, %v2919
    %v2921 = vlaneseq
    %v2922 = vshrl.u32 %v2921, 7
    %v2923 = vsub.s32 0, %v2922
    %v2924 = vrot.slane %v2844, %v2923
    %v2925 = vlaneseq
    %v2926 = vshrl.u32 %v2925, 7
    %v2927 = vsub.s32 0, %v2926
    %v2928 = vrot.slane %v2848, %v2927
    %v2929 = vlaneseq
    %v2930 = vshrl.u32 %v2929, 7
    %v2931 = vsub.s32 0, %v2930
    %v2932 = vrot.slane %v2852, %v2931
    %v2933 = vlaneseq
    %v2934 = vshrl.u32 %v2933, 7
    %v2935 = vsub.s32 0, %v2934
    %v2936 = vrot.slane %v2856, %v2935
    %v2937 = vlaneseq
    %v2938 = vshrl.u32 %v2937, 7
    %v2939 = vsub.s32 0, %v2938
    %v2940 = vrot.slane %v2860, %v2939
    %v2941 = vlaneseq
    %v2942 = vshrl.u32 %v2941, 7
    %v2943 = vsub.s32 0, %v2942
    %v2944 = vrot.slane %v2864, %v2943
    %v2945 = vlaneseq
    %v2946 = vshrl.u32 %v2945, 7
    %v2947 = vsub.s32 0, %v2946
    %v2948 = vrot.slane %v2868, %v2947
    %v2949 = vmul.f32 %v2778, %v2888
    %v2950 = vmul.f32 %v2779, %v2892
    %v2951 = vmul.f32 %v2780, %v2896
    %v2952 = vmul.f32 %v2781, %v2900
    %v2953 = vmul.f32 %v2782, %v2904
    %v2954 = vmul.f32 %v2783, %v2908
    %v2955 = vmul.f32 %v2784, %v2912
    %v2956 = vmul.f32 %v2785, %v2916
    %v2957 = vmul.f32 %v2786, %v2920
    %v2958 = vmul.f32 %v2787, %v2924
    %v2959 = vmul.f32 %v2788, %v2928
    %v2960 = vmul.f32 %v2789, %v2932
    %v2961 = vmul.f32 %v2790, %v2936
    %v2962 = vmul.f32 %v2791, %v2940
    %v2963 = vmul.f32 %v2792, %v2944
    %v2964 = vmul.f32 %v2793, %v2948
    %v2965 = vadd.f32 %v2949, %v2950
    %v2966 = vadd.f32 %v2965, %v2951
    %v2967 = vadd.f32 %v2966, %v2952
    %v2968 = vadd.f32 %v2967, %v2953
    %v2969 = vadd.f32 %v2968, %v2954
    %v2970 = vadd.f32 %v2969, %v2955
    %v2971 = vadd.f32 %v2970, %v2956
    %v2972 = vadd.f32 %v2971, %v2957
    %v2973 = vadd.f32 %v2972, %v2958
    %v2974 = vadd.f32 %v2973, %v2959
    %v2975 = vadd.f32 %v2974, %v2960
    %v2976 = vadd.f32 %v2975, %v2961
    %v2977 = vadd.f32 %v2976, %v2962
    %v2978 = vadd.f32 %v2977, %v2963
    %v2979 = vadd.f32 %v2978, %v2964
    %2980 = vadd.xlane.f32.xlu0 %v2979
    %v2981 = vpop.xlane.xlu0 %2980
    %v2982 = vadd.f32 %v2590, %v2981
    %v2983 = vlaneseq
    %v2984 = vshrl.u32 %v2983, 7
    %v2985 = vsub.s32 1, %v2984
    %v2986 = vrot.slane %v2797, %v2985
    %v2987 = vlaneseq
    %v2988 = vshrl.u32 %v2987, 7
    %v2989 = vsub.s32 3, %v2988
    %v2990 = vrot.slane %v2797, %v2989
    %v2991 = vlaneseq
    %v2992 = vshrl.u32 %v2991, 7
    %v2993 = vsub.s32 5, %v2992
    %v2994 = vrot.slane %v2797, %v2993
    %v2995 = vlaneseq
    %v2996 = vshrl.u32 %v2995, 7
    %v2997 = vsub.s32 7, %v2996
    %v2998 = vrot.slane %v2797, %v2997
    %v2999 = vlaneseq
    %v3000 = vshrl.u32 %v2999, 7
    %v3001 = vsub.s32 1, %v3000
    %v3002 = vrot.slane %v2798, %v3001
    %v3003 = vlaneseq
    %v3004 = vshrl.u32 %v3003, 7
    %v3005 = vsub.s32 3, %v3004
    %v3006 = vrot.slane %v2798, %v3005
    %v3007 = vlaneseq
    %v3008 = vshrl.u32 %v3007, 7
    %v3009 = vsub.s32 5, %v3008
    %v3010 = vrot.slane %v2798, %v3009
    %v3011 = vlaneseq
    %v3012 = vshrl.u32 %v3011, 7
    %v3013 = vsub.s32 7, %v3012
    %v3014 = vrot.slane %v2798, %v3013
    %v3015 = vlaneseq
    %v3016 = vshrl.u32 %v3015, 7
    %v3017 = vsub.s32 1, %v3016
    %v3018 = vrot.slane %v2799, %v3017
    %v3019 = vlaneseq
    %v3020 = vshrl.u32 %v3019, 7
    %v3021 = vsub.s32 3, %v3020
    %v3022 = vrot.slane %v2799, %v3021
    %v3023 = vlaneseq
    %v3024 = vshrl.u32 %v3023, 7
    %v3025 = vsub.s32 5, %v3024
    %v3026 = vrot.slane %v2799, %v3025
    %v3027 = vlaneseq
    %v3028 = vshrl.u32 %v3027, 7
    %v3029 = vsub.s32 7, %v3028
    %v3030 = vrot.slane %v2799, %v3029
    %v3031 = vlaneseq
    %v3032 = vshrl.u32 %v3031, 7
    %v3033 = vsub.s32 1, %v3032
    %v3034 = vrot.slane %v2800, %v3033
    %v3035 = vlaneseq
    %v3036 = vshrl.u32 %v3035, 7
    %v3037 = vsub.s32 3, %v3036
    %v3038 = vrot.slane %v2800, %v3037
    %v3039 = vlaneseq
    %v3040 = vshrl.u32 %v3039, 7
    %v3041 = vsub.s32 5, %v3040
    %v3042 = vrot.slane %v2800, %v3041
    %v3043 = vlaneseq
    %v3044 = vshrl.u32 %v3043, 7
    %v3045 = vsub.s32 7, %v3044
    %v3046 = vrot.slane %v2800, %v3045
    %v3063 = vlaneseq
    %v3064 = vshrl.u32 %v3063, 7
    %v3065 = vsub.s32 1, %v3064
    %v3066 = vrot.slane %v2986, %v3065
    %v3067 = vlaneseq
    %v3068 = vshrl.u32 %v3067, 7
    %v3069 = vsub.s32 1, %v3068
    %v3070 = vrot.slane %v2990, %v3069
    %v3071 = vlaneseq
    %v3072 = vshrl.u32 %v3071, 7
    %v3073 = vsub.s32 1, %v3072
    %v3074 = vrot.slane %v2994, %v3073
    %v3075 = vlaneseq
    %v3076 = vshrl.u32 %v3075, 7
    %v3077 = vsub.s32 1, %v3076
    %v3078 = vrot.slane %v2998, %v3077
    %v3079 = vlaneseq
    %v3080 = vshrl.u32 %v3079, 7
    %v3081 = vsub.s32 1, %v3080
    %v3082 = vrot.slane %v3002, %v3081
    %v3083 = vlaneseq
    %v3084 = vshrl.u32 %v3083, 7
    %v3085 = vsub.s32 1, %v3084
    %v3086 = vrot.slane %v3006, %v3085
    %v3087 = vlaneseq
    %v3088 = vshrl.u32 %v3087, 7
    %v3089 = vsub.s32 1, %v3088
    %v3090 = vrot.slane %v3010, %v3089
    %v3091 = vlaneseq
    %v3092 = vshrl.u32 %v3091, 7
    %v3093 = vsub.s32 1, %v3092
    %v3094 = vrot.slane %v3014, %v3093
    %v3095 = vlaneseq
    %v3096 = vshrl.u32 %v3095, 7
    %v3097 = vsub.s32 1, %v3096
    %v3098 = vrot.slane %v3018, %v3097
    %v3099 = vlaneseq
    %v3100 = vshrl.u32 %v3099, 7
    %v3101 = vsub.s32 1, %v3100
    %v3102 = vrot.slane %v3022, %v3101
    %v3103 = vlaneseq
    %v3104 = vshrl.u32 %v3103, 7
    %v3105 = vsub.s32 1, %v3104
    %v3106 = vrot.slane %v3026, %v3105
    %v3107 = vlaneseq
    %v3108 = vshrl.u32 %v3107, 7
    %v3109 = vsub.s32 1, %v3108
    %v3110 = vrot.slane %v3030, %v3109
    %v3111 = vlaneseq
    %v3112 = vshrl.u32 %v3111, 7
    %v3113 = vsub.s32 1, %v3112
    %v3114 = vrot.slane %v3034, %v3113
    %v3115 = vlaneseq
    %v3116 = vshrl.u32 %v3115, 7
    %v3117 = vsub.s32 1, %v3116
    %v3118 = vrot.slane %v3038, %v3117
    %v3119 = vlaneseq
    %v3120 = vshrl.u32 %v3119, 7
    %v3121 = vsub.s32 1, %v3120
    %v3122 = vrot.slane %v3042, %v3121
    %v3123 = vlaneseq
    %v3124 = vshrl.u32 %v3123, 7
    %v3125 = vsub.s32 1, %v3124
    %v3126 = vrot.slane %v3046, %v3125
    %v3127 = vmul.f32 %v2778, %v3066
    %v3128 = vmul.f32 %v2779, %v3070
    %v3129 = vmul.f32 %v2780, %v3074
    %v3130 = vmul.f32 %v2781, %v3078
    %v3131 = vmul.f32 %v2782, %v3082
    %v3132 = vmul.f32 %v2783, %v3086
    %v3133 = vmul.f32 %v2784, %v3090
    %v3134 = vmul.f32 %v2785, %v3094
    %v3135 = vmul.f32 %v2786, %v3098
    %v3136 = vmul.f32 %v2787, %v3102
    %v3137 = vmul.f32 %v2788, %v3106
    %v3138 = vmul.f32 %v2789, %v3110
    %v3139 = vmul.f32 %v2790, %v3114
    %v3140 = vmul.f32 %v2791, %v3118
    %v3141 = vmul.f32 %v2792, %v3122
    %v3142 = vmul.f32 %v2793, %v3126
    %v3143 = vadd.f32 %v3127, %v3128
    %v3144 = vadd.f32 %v3143, %v3129
    %v3145 = vadd.f32 %v3144, %v3130
    %v3146 = vadd.f32 %v3145, %v3131
    %v3147 = vadd.f32 %v3146, %v3132
    %v3148 = vadd.f32 %v3147, %v3133
    %v3149 = vadd.f32 %v3148, %v3134
    %v3150 = vadd.f32 %v3149, %v3135
    %v3151 = vadd.f32 %v3150, %v3136
    %v3152 = vadd.f32 %v3151, %v3137
    %v3153 = vadd.f32 %v3152, %v3138
    %v3154 = vadd.f32 %v3153, %v3139
    %v3155 = vadd.f32 %v3154, %v3140
    %v3156 = vadd.f32 %v3155, %v3141
    %v3157 = vadd.f32 %v3156, %v3142
    %3158 = vadd.xlane.f32.xlu0 %v3157
    %v3159 = vpop.xlane.xlu0 %3158
    %v3160 = vadd.f32 %v2768, %v3159
    %s3161 = scalar_lea.vmem %s0, 512
    %v3162 = vld [vmem:[%s3161] sm:$0xff]
    %v3163 = vld [vmem:[%s3161 + $0x8] sm:$0xff]
    %v3164 = vld [vmem:[%s3161 + $0x10] sm:$0xff]
    %v3165 = vld [vmem:[%s3161 + $0x18] sm:$0xff]
    %v3166 = vld [vmem:[%s3161 + $0x20] sm:$0xff]
    %v3167 = vld [vmem:[%s3161 + $0x28] sm:$0xff]
    %v3168 = vld [vmem:[%s3161 + $0x30] sm:$0xff]
    %v3169 = vld [vmem:[%s3161 + $0x38] sm:$0xff]
    %v3170 = vunpack.c.l.bf16 %v3162
    %v3171 = vunpack.c.h.bf16 %v3162
    %v3172 = vunpack.c.l.bf16 %v3163
    %v3173 = vunpack.c.h.bf16 %v3163
    %v3174 = vunpack.c.l.bf16 %v3164
    %v3175 = vunpack.c.h.bf16 %v3164
    %v3176 = vunpack.c.l.bf16 %v3165
    %v3177 = vunpack.c.h.bf16 %v3165
    %v3178 = vunpack.c.l.bf16 %v3166
    %v3179 = vunpack.c.h.bf16 %v3166
    %v3180 = vunpack.c.l.bf16 %v3167
    %v3181 = vunpack.c.h.bf16 %v3167
    %v3182 = vunpack.c.l.bf16 %v3168
    %v3183 = vunpack.c.h.bf16 %v3168
    %v3184 = vunpack.c.l.bf16 %v3169
    %v3185 = vunpack.c.h.bf16 %v3169
    %s3186 = scalar_lea.vmem %s1, 128
    %v3187 = vld [vmem:[%s3186] sm:$0xff]
    %v3188 = vld [vmem:[%s3186 + $0x8] sm:$0xff]
    %v3189 = vunpack.c.l.bf16 %v3187
    %v3190 = vunpack.c.h.bf16 %v3187
    %v3191 = vunpack.c.l.bf16 %v3188
    %v3192 = vunpack.c.h.bf16 %v3188
    %v3197 = vlaneseq
    %v3198 = vshrl.u32 %v3197, 7
    %v3199 = vsub.s32 0, %v3198
    %v3200 = vrot.slane %v3189, %v3199
    %v3201 = vlaneseq
    %v3202 = vshrl.u32 %v3201, 7
    %v3203 = vsub.s32 2, %v3202
    %v3204 = vrot.slane %v3189, %v3203
    %v3205 = vlaneseq
    %v3206 = vshrl.u32 %v3205, 7
    %v3207 = vsub.s32 4, %v3206
    %v3208 = vrot.slane %v3189, %v3207
    %v3209 = vlaneseq
    %v3210 = vshrl.u32 %v3209, 7
    %v3211 = vsub.s32 6, %v3210
    %v3212 = vrot.slane %v3189, %v3211
    %v3213 = vlaneseq
    %v3214 = vshrl.u32 %v3213, 7
    %v3215 = vsub.s32 0, %v3214
    %v3216 = vrot.slane %v3190, %v3215
    %v3217 = vlaneseq
    %v3218 = vshrl.u32 %v3217, 7
    %v3219 = vsub.s32 2, %v3218
    %v3220 = vrot.slane %v3190, %v3219
    %v3221 = vlaneseq
    %v3222 = vshrl.u32 %v3221, 7
    %v3223 = vsub.s32 4, %v3222
    %v3224 = vrot.slane %v3190, %v3223
    %v3225 = vlaneseq
    %v3226 = vshrl.u32 %v3225, 7
    %v3227 = vsub.s32 6, %v3226
    %v3228 = vrot.slane %v3190, %v3227
    %v3229 = vlaneseq
    %v3230 = vshrl.u32 %v3229, 7
    %v3231 = vsub.s32 0, %v3230
    %v3232 = vrot.slane %v3191, %v3231
    %v3233 = vlaneseq
    %v3234 = vshrl.u32 %v3233, 7
    %v3235 = vsub.s32 2, %v3234
    %v3236 = vrot.slane %v3191, %v3235
    %v3237 = vlaneseq
    %v3238 = vshrl.u32 %v3237, 7
    %v3239 = vsub.s32 4, %v3238
    %v3240 = vrot.slane %v3191, %v3239
    %v3241 = vlaneseq
    %v3242 = vshrl.u32 %v3241, 7
    %v3243 = vsub.s32 6, %v3242
    %v3244 = vrot.slane %v3191, %v3243
    %v3245 = vlaneseq
    %v3246 = vshrl.u32 %v3245, 7
    %v3247 = vsub.s32 0, %v3246
    %v3248 = vrot.slane %v3192, %v3247
    %v3249 = vlaneseq
    %v3250 = vshrl.u32 %v3249, 7
    %v3251 = vsub.s32 2, %v3250
    %v3252 = vrot.slane %v3192, %v3251
    %v3253 = vlaneseq
    %v3254 = vshrl.u32 %v3253, 7
    %v3255 = vsub.s32 4, %v3254
    %v3256 = vrot.slane %v3192, %v3255
    %v3257 = vlaneseq
    %v3258 = vshrl.u32 %v3257, 7
    %v3259 = vsub.s32 6, %v3258
    %v3260 = vrot.slane %v3192, %v3259
    %v3277 = vlaneseq
    %v3278 = vshrl.u32 %v3277, 7
    %v3279 = vsub.s32 0, %v3278
    %v3280 = vrot.slane %v3200, %v3279
    %v3281 = vlaneseq
    %v3282 = vshrl.u32 %v3281, 7
    %v3283 = vsub.s32 0, %v3282
    %v3284 = vrot.slane %v3204, %v3283
    %v3285 = vlaneseq
    %v3286 = vshrl.u32 %v3285, 7
    %v3287 = vsub.s32 0, %v3286
    %v3288 = vrot.slane %v3208, %v3287
    %v3289 = vlaneseq
    %v3290 = vshrl.u32 %v3289, 7
    %v3291 = vsub.s32 0, %v3290
    %v3292 = vrot.slane %v3212, %v3291
    %v3293 = vlaneseq
    %v3294 = vshrl.u32 %v3293, 7
    %v3295 = vsub.s32 0, %v3294
    %v3296 = vrot.slane %v3216, %v3295
    %v3297 = vlaneseq
    %v3298 = vshrl.u32 %v3297, 7
    %v3299 = vsub.s32 0, %v3298
    %v3300 = vrot.slane %v3220, %v3299
    %v3301 = vlaneseq
    %v3302 = vshrl.u32 %v3301, 7
    %v3303 = vsub.s32 0, %v3302
    %v3304 = vrot.slane %v3224, %v3303
    %v3305 = vlaneseq
    %v3306 = vshrl.u32 %v3305, 7
    %v3307 = vsub.s32 0, %v3306
    %v3308 = vrot.slane %v3228, %v3307
    %v3309 = vlaneseq
    %v3310 = vshrl.u32 %v3309, 7
    %v3311 = vsub.s32 0, %v3310
    %v3312 = vrot.slane %v3232, %v3311
    %v3313 = vlaneseq
    %v3314 = vshrl.u32 %v3313, 7
    %v3315 = vsub.s32 0, %v3314
    %v3316 = vrot.slane %v3236, %v3315
    %v3317 = vlaneseq
    %v3318 = vshrl.u32 %v3317, 7
    %v3319 = vsub.s32 0, %v3318
    %v3320 = vrot.slane %v3240, %v3319
    %v3321 = vlaneseq
    %v3322 = vshrl.u32 %v3321, 7
    %v3323 = vsub.s32 0, %v3322
    %v3324 = vrot.slane %v3244, %v3323
    %v3325 = vlaneseq
    %v3326 = vshrl.u32 %v3325, 7
    %v3327 = vsub.s32 0, %v3326
    %v3328 = vrot.slane %v3248, %v3327
    %v3329 = vlaneseq
    %v3330 = vshrl.u32 %v3329, 7
    %v3331 = vsub.s32 0, %v3330
    %v3332 = vrot.slane %v3252, %v3331
    %v3333 = vlaneseq
    %v3334 = vshrl.u32 %v3333, 7
    %v3335 = vsub.s32 0, %v3334
    %v3336 = vrot.slane %v3256, %v3335
    %v3337 = vlaneseq
    %v3338 = vshrl.u32 %v3337, 7
    %v3339 = vsub.s32 0, %v3338
    %v3340 = vrot.slane %v3260, %v3339
    %v3341 = vmul.f32 %v3170, %v3280
    %v3342 = vmul.f32 %v3171, %v3284
    %v3343 = vmul.f32 %v3172, %v3288
    %v3344 = vmul.f32 %v3173, %v3292
    %v3345 = vmul.f32 %v3174, %v3296
    %v3346 = vmul.f32 %v3175, %v3300
    %v3347 = vmul.f32 %v3176, %v3304
    %v3348 = vmul.f32 %v3177, %v3308
    %v3349 = vmul.f32 %v3178, %v3312
    %v3350 = vmul.f32 %v3179, %v3316
    %v3351 = vmul.f32 %v3180, %v3320
    %v3352 = vmul.f32 %v3181, %v3324
    %v3353 = vmul.f32 %v3182, %v3328
    %v3354 = vmul.f32 %v3183, %v3332
    %v3355 = vmul.f32 %v3184, %v3336
    %v3356 = vmul.f32 %v3185, %v3340
    %v3357 = vadd.f32 %v3341, %v3342
    %v3358 = vadd.f32 %v3357, %v3343
    %v3359 = vadd.f32 %v3358, %v3344
    %v3360 = vadd.f32 %v3359, %v3345
    %v3361 = vadd.f32 %v3360, %v3346
    %v3362 = vadd.f32 %v3361, %v3347
    %v3363 = vadd.f32 %v3362, %v3348
    %v3364 = vadd.f32 %v3363, %v3349
    %v3365 = vadd.f32 %v3364, %v3350
    %v3366 = vadd.f32 %v3365, %v3351
    %v3367 = vadd.f32 %v3366, %v3352
    %v3368 = vadd.f32 %v3367, %v3353
    %v3369 = vadd.f32 %v3368, %v3354
    %v3370 = vadd.f32 %v3369, %v3355
    %v3371 = vadd.f32 %v3370, %v3356
    %3372 = vadd.xlane.f32.xlu0 %v3371
    %v3373 = vpop.xlane.xlu0 %3372
    %v3374 = vadd.f32 %v2982, %v3373
    %v3375 = vlaneseq
    %v3376 = vshrl.u32 %v3375, 7
    %v3377 = vsub.s32 1, %v3376
    %v3378 = vrot.slane %v3189, %v3377
    %v3379 = vlaneseq
    %v3380 = vshrl.u32 %v3379, 7
    %v3381 = vsub.s32 3, %v3380
    %v3382 = vrot.slane %v3189, %v3381
    %v3383 = vlaneseq
    %v3384 = vshrl.u32 %v3383, 7
    %v3385 = vsub.s32 5, %v3384
    %v3386 = vrot.slane %v3189, %v3385
    %v3387 = vlaneseq
    %v3388 = vshrl.u32 %v3387, 7
    %v3389 = vsub.s32 7, %v3388
    %v3390 = vrot.slane %v3189, %v3389
    %v3391 = vlaneseq
    %v3392 = vshrl.u32 %v3391, 7
    %v3393 = vsub.s32 1, %v3392
    %v3394 = vrot.slane %v3190, %v3393
    %v3395 = vlaneseq
    %v3396 = vshrl.u32 %v3395, 7
    %v3397 = vsub.s32 3, %v3396
    %v3398 = vrot.slane %v3190, %v3397
    %v3399 = vlaneseq
    %v3400 = vshrl.u32 %v3399, 7
    %v3401 = vsub.s32 5, %v3400
    %v3402 = vrot.slane %v3190, %v3401
    %v3403 = vlaneseq
    %v3404 = vshrl.u32 %v3403, 7
    %v3405 = vsub.s32 7, %v3404
    %v3406 = vrot.slane %v3190, %v3405
    %v3407 = vlaneseq
    %v3408 = vshrl.u32 %v3407, 7
    %v3409 = vsub.s32 1, %v3408
    %v3410 = vrot.slane %v3191, %v3409
    %v3411 = vlaneseq
    %v3412 = vshrl.u32 %v3411, 7
    %v3413 = vsub.s32 3, %v3412
    %v3414 = vrot.slane %v3191, %v3413
    %v3415 = vlaneseq
    %v3416 = vshrl.u32 %v3415, 7
    %v3417 = vsub.s32 5, %v3416
    %v3418 = vrot.slane %v3191, %v3417
    %v3419 = vlaneseq
    %v3420 = vshrl.u32 %v3419, 7
    %v3421 = vsub.s32 7, %v3420
    %v3422 = vrot.slane %v3191, %v3421
    %v3423 = vlaneseq
    %v3424 = vshrl.u32 %v3423, 7
    %v3425 = vsub.s32 1, %v3424
    %v3426 = vrot.slane %v3192, %v3425
    %v3427 = vlaneseq
    %v3428 = vshrl.u32 %v3427, 7
    %v3429 = vsub.s32 3, %v3428
    %v3430 = vrot.slane %v3192, %v3429
    %v3431 = vlaneseq
    %v3432 = vshrl.u32 %v3431, 7
    %v3433 = vsub.s32 5, %v3432
    %v3434 = vrot.slane %v3192, %v3433
    %v3435 = vlaneseq
    %v3436 = vshrl.u32 %v3435, 7
    %v3437 = vsub.s32 7, %v3436
    %v3438 = vrot.slane %v3192, %v3437
    %v3455 = vlaneseq
    %v3456 = vshrl.u32 %v3455, 7
    %v3457 = vsub.s32 1, %v3456
    %v3458 = vrot.slane %v3378, %v3457
    %v3459 = vlaneseq
    %v3460 = vshrl.u32 %v3459, 7
    %v3461 = vsub.s32 1, %v3460
    %v3462 = vrot.slane %v3382, %v3461
    %v3463 = vlaneseq
    %v3464 = vshrl.u32 %v3463, 7
    %v3465 = vsub.s32 1, %v3464
    %v3466 = vrot.slane %v3386, %v3465
    %v3467 = vlaneseq
    %v3468 = vshrl.u32 %v3467, 7
    %v3469 = vsub.s32 1, %v3468
    %v3470 = vrot.slane %v3390, %v3469
    %v3471 = vlaneseq
    %v3472 = vshrl.u32 %v3471, 7
    %v3473 = vsub.s32 1, %v3472
    %v3474 = vrot.slane %v3394, %v3473
    %v3475 = vlaneseq
    %v3476 = vshrl.u32 %v3475, 7
    %v3477 = vsub.s32 1, %v3476
    %v3478 = vrot.slane %v3398, %v3477
    %v3479 = vlaneseq
    %v3480 = vshrl.u32 %v3479, 7
    %v3481 = vsub.s32 1, %v3480
    %v3482 = vrot.slane %v3402, %v3481
    %v3483 = vlaneseq
    %v3484 = vshrl.u32 %v3483, 7
    %v3485 = vsub.s32 1, %v3484
    %v3486 = vrot.slane %v3406, %v3485
    %v3487 = vlaneseq
    %v3488 = vshrl.u32 %v3487, 7
    %v3489 = vsub.s32 1, %v3488
    %v3490 = vrot.slane %v3410, %v3489
    %v3491 = vlaneseq
    %v3492 = vshrl.u32 %v3491, 7
    %v3493 = vsub.s32 1, %v3492
    %v3494 = vrot.slane %v3414, %v3493
    %v3495 = vlaneseq
    %v3496 = vshrl.u32 %v3495, 7
    %v3497 = vsub.s32 1, %v3496
    %v3498 = vrot.slane %v3418, %v3497
    %v3499 = vlaneseq
    %v3500 = vshrl.u32 %v3499, 7
    %v3501 = vsub.s32 1, %v3500
    %v3502 = vrot.slane %v3422, %v3501
    %v3503 = vlaneseq
    %v3504 = vshrl.u32 %v3503, 7
    %v3505 = vsub.s32 1, %v3504
    %v3506 = vrot.slane %v3426, %v3505
    %v3507 = vlaneseq
    %v3508 = vshrl.u32 %v3507, 7
    %v3509 = vsub.s32 1, %v3508
    %v3510 = vrot.slane %v3430, %v3509
    %v3511 = vlaneseq
    %v3512 = vshrl.u32 %v3511, 7
    %v3513 = vsub.s32 1, %v3512
    %v3514 = vrot.slane %v3434, %v3513
    %v3515 = vlaneseq
    %v3516 = vshrl.u32 %v3515, 7
    %v3517 = vsub.s32 1, %v3516
    %v3518 = vrot.slane %v3438, %v3517
    %v3519 = vmul.f32 %v3170, %v3458
    %v3520 = vmul.f32 %v3171, %v3462
    %v3521 = vmul.f32 %v3172, %v3466
    %v3522 = vmul.f32 %v3173, %v3470
    %v3523 = vmul.f32 %v3174, %v3474
    %v3524 = vmul.f32 %v3175, %v3478
    %v3525 = vmul.f32 %v3176, %v3482
    %v3526 = vmul.f32 %v3177, %v3486
    %v3527 = vmul.f32 %v3178, %v3490
    %v3528 = vmul.f32 %v3179, %v3494
    %v3529 = vmul.f32 %v3180, %v3498
    %v3530 = vmul.f32 %v3181, %v3502
    %v3531 = vmul.f32 %v3182, %v3506
    %v3532 = vmul.f32 %v3183, %v3510
    %v3533 = vmul.f32 %v3184, %v3514
    %v3534 = vmul.f32 %v3185, %v3518
    %v3535 = vadd.f32 %v3519, %v3520
    %v3536 = vadd.f32 %v3535, %v3521
    %v3537 = vadd.f32 %v3536, %v3522
    %v3538 = vadd.f32 %v3537, %v3523
    %v3539 = vadd.f32 %v3538, %v3524
    %v3540 = vadd.f32 %v3539, %v3525
    %v3541 = vadd.f32 %v3540, %v3526
    %v3542 = vadd.f32 %v3541, %v3527
    %v3543 = vadd.f32 %v3542, %v3528
    %v3544 = vadd.f32 %v3543, %v3529
    %v3545 = vadd.f32 %v3544, %v3530
    %v3546 = vadd.f32 %v3545, %v3531
    %v3547 = vadd.f32 %v3546, %v3532
    %v3548 = vadd.f32 %v3547, %v3533
    %v3549 = vadd.f32 %v3548, %v3534
    %3550 = vadd.xlane.f32.xlu0 %v3549
    %v3551 = vpop.xlane.xlu0 %3550
    %v3552 = vadd.f32 %v3160, %v3551
    %s3553 = scalar_lea.vmem %s0, 576
    %v3554 = vld [vmem:[%s3553] sm:$0xff]
    %v3555 = vld [vmem:[%s3553 + $0x8] sm:$0xff]
    %v3556 = vld [vmem:[%s3553 + $0x10] sm:$0xff]
    %v3557 = vld [vmem:[%s3553 + $0x18] sm:$0xff]
    %v3558 = vld [vmem:[%s3553 + $0x20] sm:$0xff]
    %v3559 = vld [vmem:[%s3553 + $0x28] sm:$0xff]
    %v3560 = vld [vmem:[%s3553 + $0x30] sm:$0xff]
    %v3561 = vld [vmem:[%s3553 + $0x38] sm:$0xff]
    %v3562 = vunpack.c.l.bf16 %v3554
    %v3563 = vunpack.c.h.bf16 %v3554
    %v3564 = vunpack.c.l.bf16 %v3555
    %v3565 = vunpack.c.h.bf16 %v3555
    %v3566 = vunpack.c.l.bf16 %v3556
    %v3567 = vunpack.c.h.bf16 %v3556
    %v3568 = vunpack.c.l.bf16 %v3557
    %v3569 = vunpack.c.h.bf16 %v3557
    %v3570 = vunpack.c.l.bf16 %v3558
    %v3571 = vunpack.c.h.bf16 %v3558
    %v3572 = vunpack.c.l.bf16 %v3559
    %v3573 = vunpack.c.h.bf16 %v3559
    %v3574 = vunpack.c.l.bf16 %v3560
    %v3575 = vunpack.c.h.bf16 %v3560
    %v3576 = vunpack.c.l.bf16 %v3561
    %v3577 = vunpack.c.h.bf16 %v3561
    %s3578 = scalar_lea.vmem %s1, 144
    %v3579 = vld [vmem:[%s3578] sm:$0xff]
    %v3580 = vld [vmem:[%s3578 + $0x8] sm:$0xff]
    %v3581 = vunpack.c.l.bf16 %v3579
    %v3582 = vunpack.c.h.bf16 %v3579
    %v3583 = vunpack.c.l.bf16 %v3580
    %v3584 = vunpack.c.h.bf16 %v3580
    %v3589 = vlaneseq
    %v3590 = vshrl.u32 %v3589, 7
    %v3591 = vsub.s32 0, %v3590
    %v3592 = vrot.slane %v3581, %v3591
    %v3593 = vlaneseq
    %v3594 = vshrl.u32 %v3593, 7
    %v3595 = vsub.s32 2, %v3594
    %v3596 = vrot.slane %v3581, %v3595
    %v3597 = vlaneseq
    %v3598 = vshrl.u32 %v3597, 7
    %v3599 = vsub.s32 4, %v3598
    %v3600 = vrot.slane %v3581, %v3599
    %v3601 = vlaneseq
    %v3602 = vshrl.u32 %v3601, 7
    %v3603 = vsub.s32 6, %v3602
    %v3604 = vrot.slane %v3581, %v3603
    %v3605 = vlaneseq
    %v3606 = vshrl.u32 %v3605, 7
    %v3607 = vsub.s32 0, %v3606
    %v3608 = vrot.slane %v3582, %v3607
    %v3609 = vlaneseq
    %v3610 = vshrl.u32 %v3609, 7
    %v3611 = vsub.s32 2, %v3610
    %v3612 = vrot.slane %v3582, %v3611
    %v3613 = vlaneseq
    %v3614 = vshrl.u32 %v3613, 7
    %v3615 = vsub.s32 4, %v3614
    %v3616 = vrot.slane %v3582, %v3615
    %v3617 = vlaneseq
    %v3618 = vshrl.u32 %v3617, 7
    %v3619 = vsub.s32 6, %v3618
    %v3620 = vrot.slane %v3582, %v3619
    %v3621 = vlaneseq
    %v3622 = vshrl.u32 %v3621, 7
    %v3623 = vsub.s32 0, %v3622
    %v3624 = vrot.slane %v3583, %v3623
    %v3625 = vlaneseq
    %v3626 = vshrl.u32 %v3625, 7
    %v3627 = vsub.s32 2, %v3626
    %v3628 = vrot.slane %v3583, %v3627
    %v3629 = vlaneseq
    %v3630 = vshrl.u32 %v3629, 7
    %v3631 = vsub.s32 4, %v3630
    %v3632 = vrot.slane %v3583, %v3631
    %v3633 = vlaneseq
    %v3634 = vshrl.u32 %v3633, 7
    %v3635 = vsub.s32 6, %v3634
    %v3636 = vrot.slane %v3583, %v3635
    %v3637 = vlaneseq
    %v3638 = vshrl.u32 %v3637, 7
    %v3639 = vsub.s32 0, %v3638
    %v3640 = vrot.slane %v3584, %v3639
    %v3641 = vlaneseq
    %v3642 = vshrl.u32 %v3641, 7
    %v3643 = vsub.s32 2, %v3642
    %v3644 = vrot.slane %v3584, %v3643
    %v3645 = vlaneseq
    %v3646 = vshrl.u32 %v3645, 7
    %v3647 = vsub.s32 4, %v3646
    %v3648 = vrot.slane %v3584, %v3647
    %v3649 = vlaneseq
    %v3650 = vshrl.u32 %v3649, 7
    %v3651 = vsub.s32 6, %v3650
    %v3652 = vrot.slane %v3584, %v3651
    %v3669 = vlaneseq
    %v3670 = vshrl.u32 %v3669, 7
    %v3671 = vsub.s32 0, %v3670
    %v3672 = vrot.slane %v3592, %v3671
    %v3673 = vlaneseq
    %v3674 = vshrl.u32 %v3673, 7
    %v3675 = vsub.s32 0, %v3674
    %v3676 = vrot.slane %v3596, %v3675
    %v3677 = vlaneseq
    %v3678 = vshrl.u32 %v3677, 7
    %v3679 = vsub.s32 0, %v3678
    %v3680 = vrot.slane %v3600, %v3679
    %v3681 = vlaneseq
    %v3682 = vshrl.u32 %v3681, 7
    %v3683 = vsub.s32 0, %v3682
    %v3684 = vrot.slane %v3604, %v3683
    %v3685 = vlaneseq
    %v3686 = vshrl.u32 %v3685, 7
    %v3687 = vsub.s32 0, %v3686
    %v3688 = vrot.slane %v3608, %v3687
    %v3689 = vlaneseq
    %v3690 = vshrl.u32 %v3689, 7
    %v3691 = vsub.s32 0, %v3690
    %v3692 = vrot.slane %v3612, %v3691
    %v3693 = vlaneseq
    %v3694 = vshrl.u32 %v3693, 7
    %v3695 = vsub.s32 0, %v3694
    %v3696 = vrot.slane %v3616, %v3695
    %v3697 = vlaneseq
    %v3698 = vshrl.u32 %v3697, 7
    %v3699 = vsub.s32 0, %v3698
    %v3700 = vrot.slane %v3620, %v3699
    %v3701 = vlaneseq
    %v3702 = vshrl.u32 %v3701, 7
    %v3703 = vsub.s32 0, %v3702
    %v3704 = vrot.slane %v3624, %v3703
    %v3705 = vlaneseq
    %v3706 = vshrl.u32 %v3705, 7
    %v3707 = vsub.s32 0, %v3706
    %v3708 = vrot.slane %v3628, %v3707
    %v3709 = vlaneseq
    %v3710 = vshrl.u32 %v3709, 7
    %v3711 = vsub.s32 0, %v3710
    %v3712 = vrot.slane %v3632, %v3711
    %v3713 = vlaneseq
    %v3714 = vshrl.u32 %v3713, 7
    %v3715 = vsub.s32 0, %v3714
    %v3716 = vrot.slane %v3636, %v3715
    %v3717 = vlaneseq
    %v3718 = vshrl.u32 %v3717, 7
    %v3719 = vsub.s32 0, %v3718
    %v3720 = vrot.slane %v3640, %v3719
    %v3721 = vlaneseq
    %v3722 = vshrl.u32 %v3721, 7
    %v3723 = vsub.s32 0, %v3722
    %v3724 = vrot.slane %v3644, %v3723
    %v3725 = vlaneseq
    %v3726 = vshrl.u32 %v3725, 7
    %v3727 = vsub.s32 0, %v3726
    %v3728 = vrot.slane %v3648, %v3727
    %v3729 = vlaneseq
    %v3730 = vshrl.u32 %v3729, 7
    %v3731 = vsub.s32 0, %v3730
    %v3732 = vrot.slane %v3652, %v3731
    %v3733 = vmul.f32 %v3562, %v3672
    %v3734 = vmul.f32 %v3563, %v3676
    %v3735 = vmul.f32 %v3564, %v3680
    %v3736 = vmul.f32 %v3565, %v3684
    %v3737 = vmul.f32 %v3566, %v3688
    %v3738 = vmul.f32 %v3567, %v3692
    %v3739 = vmul.f32 %v3568, %v3696
    %v3740 = vmul.f32 %v3569, %v3700
    %v3741 = vmul.f32 %v3570, %v3704
    %v3742 = vmul.f32 %v3571, %v3708
    %v3743 = vmul.f32 %v3572, %v3712
    %v3744 = vmul.f32 %v3573, %v3716
    %v3745 = vmul.f32 %v3574, %v3720
    %v3746 = vmul.f32 %v3575, %v3724
    %v3747 = vmul.f32 %v3576, %v3728
    %v3748 = vmul.f32 %v3577, %v3732
    %v3749 = vadd.f32 %v3733, %v3734
    %v3750 = vadd.f32 %v3749, %v3735
    %v3751 = vadd.f32 %v3750, %v3736
    %v3752 = vadd.f32 %v3751, %v3737
    %v3753 = vadd.f32 %v3752, %v3738
    %v3754 = vadd.f32 %v3753, %v3739
    %v3755 = vadd.f32 %v3754, %v3740
    %v3756 = vadd.f32 %v3755, %v3741
    %v3757 = vadd.f32 %v3756, %v3742
    %v3758 = vadd.f32 %v3757, %v3743
    %v3759 = vadd.f32 %v3758, %v3744
    %v3760 = vadd.f32 %v3759, %v3745
    %v3761 = vadd.f32 %v3760, %v3746
    %v3762 = vadd.f32 %v3761, %v3747
    %v3763 = vadd.f32 %v3762, %v3748
    %3764 = vadd.xlane.f32.xlu0 %v3763
    %v3765 = vpop.xlane.xlu0 %3764
    %v3766 = vadd.f32 %v3374, %v3765
    %v3767 = vlaneseq
    %v3768 = vshrl.u32 %v3767, 7
    %v3769 = vsub.s32 1, %v3768
    %v3770 = vrot.slane %v3581, %v3769
    %v3771 = vlaneseq
    %v3772 = vshrl.u32 %v3771, 7
    %v3773 = vsub.s32 3, %v3772
    %v3774 = vrot.slane %v3581, %v3773
    %v3775 = vlaneseq
    %v3776 = vshrl.u32 %v3775, 7
    %v3777 = vsub.s32 5, %v3776
    %v3778 = vrot.slane %v3581, %v3777
    %v3779 = vlaneseq
    %v3780 = vshrl.u32 %v3779, 7
    %v3781 = vsub.s32 7, %v3780
    %v3782 = vrot.slane %v3581, %v3781
    %v3783 = vlaneseq
    %v3784 = vshrl.u32 %v3783, 7
    %v3785 = vsub.s32 1, %v3784
    %v3786 = vrot.slane %v3582, %v3785
    %v3787 = vlaneseq
    %v3788 = vshrl.u32 %v3787, 7
    %v3789 = vsub.s32 3, %v3788
    %v3790 = vrot.slane %v3582, %v3789
    %v3791 = vlaneseq
    %v3792 = vshrl.u32 %v3791, 7
    %v3793 = vsub.s32 5, %v3792
    %v3794 = vrot.slane %v3582, %v3793
    %v3795 = vlaneseq
    %v3796 = vshrl.u32 %v3795, 7
    %v3797 = vsub.s32 7, %v3796
    %v3798 = vrot.slane %v3582, %v3797
    %v3799 = vlaneseq
    %v3800 = vshrl.u32 %v3799, 7
    %v3801 = vsub.s32 1, %v3800
    %v3802 = vrot.slane %v3583, %v3801
    %v3803 = vlaneseq
    %v3804 = vshrl.u32 %v3803, 7
    %v3805 = vsub.s32 3, %v3804
    %v3806 = vrot.slane %v3583, %v3805
    %v3807 = vlaneseq
    %v3808 = vshrl.u32 %v3807, 7
    %v3809 = vsub.s32 5, %v3808
    %v3810 = vrot.slane %v3583, %v3809
    %v3811 = vlaneseq
    %v3812 = vshrl.u32 %v3811, 7
    %v3813 = vsub.s32 7, %v3812
    %v3814 = vrot.slane %v3583, %v3813
    %v3815 = vlaneseq
    %v3816 = vshrl.u32 %v3815, 7
    %v3817 = vsub.s32 1, %v3816
    %v3818 = vrot.slane %v3584, %v3817
    %v3819 = vlaneseq
    %v3820 = vshrl.u32 %v3819, 7
    %v3821 = vsub.s32 3, %v3820
    %v3822 = vrot.slane %v3584, %v3821
    %v3823 = vlaneseq
    %v3824 = vshrl.u32 %v3823, 7
    %v3825 = vsub.s32 5, %v3824
    %v3826 = vrot.slane %v3584, %v3825
    %v3827 = vlaneseq
    %v3828 = vshrl.u32 %v3827, 7
    %v3829 = vsub.s32 7, %v3828
    %v3830 = vrot.slane %v3584, %v3829
    %v3847 = vlaneseq
    %v3848 = vshrl.u32 %v3847, 7
    %v3849 = vsub.s32 1, %v3848
    %v3850 = vrot.slane %v3770, %v3849
    %v3851 = vlaneseq
    %v3852 = vshrl.u32 %v3851, 7
    %v3853 = vsub.s32 1, %v3852
    %v3854 = vrot.slane %v3774, %v3853
    %v3855 = vlaneseq
    %v3856 = vshrl.u32 %v3855, 7
    %v3857 = vsub.s32 1, %v3856
    %v3858 = vrot.slane %v3778, %v3857
    %v3859 = vlaneseq
    %v3860 = vshrl.u32 %v3859, 7
    %v3861 = vsub.s32 1, %v3860
    %v3862 = vrot.slane %v3782, %v3861
    %v3863 = vlaneseq
    %v3864 = vshrl.u32 %v3863, 7
    %v3865 = vsub.s32 1, %v3864
    %v3866 = vrot.slane %v3786, %v3865
    %v3867 = vlaneseq
    %v3868 = vshrl.u32 %v3867, 7
    %v3869 = vsub.s32 1, %v3868
    %v3870 = vrot.slane %v3790, %v3869
    %v3871 = vlaneseq
    %v3872 = vshrl.u32 %v3871, 7
    %v3873 = vsub.s32 1, %v3872
    %v3874 = vrot.slane %v3794, %v3873
    %v3875 = vlaneseq
    %v3876 = vshrl.u32 %v3875, 7
    %v3877 = vsub.s32 1, %v3876
    %v3878 = vrot.slane %v3798, %v3877
    %v3879 = vlaneseq
    %v3880 = vshrl.u32 %v3879, 7
    %v3881 = vsub.s32 1, %v3880
    %v3882 = vrot.slane %v3802, %v3881
    %v3883 = vlaneseq
    %v3884 = vshrl.u32 %v3883, 7
    %v3885 = vsub.s32 1, %v3884
    %v3886 = vrot.slane %v3806, %v3885
    %v3887 = vlaneseq
    %v3888 = vshrl.u32 %v3887, 7
    %v3889 = vsub.s32 1, %v3888
    %v3890 = vrot.slane %v3810, %v3889
    %v3891 = vlaneseq
    %v3892 = vshrl.u32 %v3891, 7
    %v3893 = vsub.s32 1, %v3892
    %v3894 = vrot.slane %v3814, %v3893
    %v3895 = vlaneseq
    %v3896 = vshrl.u32 %v3895, 7
    %v3897 = vsub.s32 1, %v3896
    %v3898 = vrot.slane %v3818, %v3897
    %v3899 = vlaneseq
    %v3900 = vshrl.u32 %v3899, 7
    %v3901 = vsub.s32 1, %v3900
    %v3902 = vrot.slane %v3822, %v3901
    %v3903 = vlaneseq
    %v3904 = vshrl.u32 %v3903, 7
    %v3905 = vsub.s32 1, %v3904
    %v3906 = vrot.slane %v3826, %v3905
    %v3907 = vlaneseq
    %v3908 = vshrl.u32 %v3907, 7
    %v3909 = vsub.s32 1, %v3908
    %v3910 = vrot.slane %v3830, %v3909
    %v3911 = vmul.f32 %v3562, %v3850
    %v3912 = vmul.f32 %v3563, %v3854
    %v3913 = vmul.f32 %v3564, %v3858
    %v3914 = vmul.f32 %v3565, %v3862
    %v3915 = vmul.f32 %v3566, %v3866
    %v3916 = vmul.f32 %v3567, %v3870
    %v3917 = vmul.f32 %v3568, %v3874
    %v3918 = vmul.f32 %v3569, %v3878
    %v3919 = vmul.f32 %v3570, %v3882
    %v3920 = vmul.f32 %v3571, %v3886
    %v3921 = vmul.f32 %v3572, %v3890
    %v3922 = vmul.f32 %v3573, %v3894
    %v3923 = vmul.f32 %v3574, %v3898
    %v3924 = vmul.f32 %v3575, %v3902
    %v3925 = vmul.f32 %v3576, %v3906
    %v3926 = vmul.f32 %v3577, %v3910
    %v3927 = vadd.f32 %v3911, %v3912
    %v3928 = vadd.f32 %v3927, %v3913
    %v3929 = vadd.f32 %v3928, %v3914
    %v3930 = vadd.f32 %v3929, %v3915
    %v3931 = vadd.f32 %v3930, %v3916
    %v3932 = vadd.f32 %v3931, %v3917
    %v3933 = vadd.f32 %v3932, %v3918
    %v3934 = vadd.f32 %v3933, %v3919
    %v3935 = vadd.f32 %v3934, %v3920
    %v3936 = vadd.f32 %v3935, %v3921
    %v3937 = vadd.f32 %v3936, %v3922
    %v3938 = vadd.f32 %v3937, %v3923
    %v3939 = vadd.f32 %v3938, %v3924
    %v3940 = vadd.f32 %v3939, %v3925
    %v3941 = vadd.f32 %v3940, %v3926
    %3942 = vadd.xlane.f32.xlu0 %v3941
    %v3943 = vpop.xlane.xlu0 %3942
    %v3944 = vadd.f32 %v3552, %v3943
    %s3945 = scalar_lea.vmem %s0, 640
    %v3946 = vld [vmem:[%s3945] sm:$0xff]
    %v3947 = vld [vmem:[%s3945 + $0x8] sm:$0xff]
    %v3948 = vld [vmem:[%s3945 + $0x10] sm:$0xff]
    %v3949 = vld [vmem:[%s3945 + $0x18] sm:$0xff]
    %v3950 = vld [vmem:[%s3945 + $0x20] sm:$0xff]
    %v3951 = vld [vmem:[%s3945 + $0x28] sm:$0xff]
    %v3952 = vld [vmem:[%s3945 + $0x30] sm:$0xff]
    %v3953 = vld [vmem:[%s3945 + $0x38] sm:$0xff]
    %v3954 = vunpack.c.l.bf16 %v3946
    %v3955 = vunpack.c.h.bf16 %v3946
    %v3956 = vunpack.c.l.bf16 %v3947
    %v3957 = vunpack.c.h.bf16 %v3947
    %v3958 = vunpack.c.l.bf16 %v3948
    %v3959 = vunpack.c.h.bf16 %v3948
    %v3960 = vunpack.c.l.bf16 %v3949
    %v3961 = vunpack.c.h.bf16 %v3949
    %v3962 = vunpack.c.l.bf16 %v3950
    %v3963 = vunpack.c.h.bf16 %v3950
    %v3964 = vunpack.c.l.bf16 %v3951
    %v3965 = vunpack.c.h.bf16 %v3951
    %v3966 = vunpack.c.l.bf16 %v3952
    %v3967 = vunpack.c.h.bf16 %v3952
    %v3968 = vunpack.c.l.bf16 %v3953
    %v3969 = vunpack.c.h.bf16 %v3953
    %s3970 = scalar_lea.vmem %s1, 160
    %v3971 = vld [vmem:[%s3970] sm:$0xff]
    %v3972 = vld [vmem:[%s3970 + $0x8] sm:$0xff]
    %v3973 = vunpack.c.l.bf16 %v3971
    %v3974 = vunpack.c.h.bf16 %v3971
    %v3975 = vunpack.c.l.bf16 %v3972
    %v3976 = vunpack.c.h.bf16 %v3972
    %v3981 = vlaneseq
    %v3982 = vshrl.u32 %v3981, 7
    %v3983 = vsub.s32 0, %v3982
    %v3984 = vrot.slane %v3973, %v3983
    %v3985 = vlaneseq
    %v3986 = vshrl.u32 %v3985, 7
    %v3987 = vsub.s32 2, %v3986
    %v3988 = vrot.slane %v3973, %v3987
    %v3989 = vlaneseq
    %v3990 = vshrl.u32 %v3989, 7
    %v3991 = vsub.s32 4, %v3990
    %v3992 = vrot.slane %v3973, %v3991
    %v3993 = vlaneseq
    %v3994 = vshrl.u32 %v3993, 7
    %v3995 = vsub.s32 6, %v3994
    %v3996 = vrot.slane %v3973, %v3995
    %v3997 = vlaneseq
    %v3998 = vshrl.u32 %v3997, 7
    %v3999 = vsub.s32 0, %v3998
    %v4000 = vrot.slane %v3974, %v3999
    %v4001 = vlaneseq
    %v4002 = vshrl.u32 %v4001, 7
    %v4003 = vsub.s32 2, %v4002
    %v4004 = vrot.slane %v3974, %v4003
    %v4005 = vlaneseq
    %v4006 = vshrl.u32 %v4005, 7
    %v4007 = vsub.s32 4, %v4006
    %v4008 = vrot.slane %v3974, %v4007
    %v4009 = vlaneseq
    %v4010 = vshrl.u32 %v4009, 7
    %v4011 = vsub.s32 6, %v4010
    %v4012 = vrot.slane %v3974, %v4011
    %v4013 = vlaneseq
    %v4014 = vshrl.u32 %v4013, 7
    %v4015 = vsub.s32 0, %v4014
    %v4016 = vrot.slane %v3975, %v4015
    %v4017 = vlaneseq
    %v4018 = vshrl.u32 %v4017, 7
    %v4019 = vsub.s32 2, %v4018
    %v4020 = vrot.slane %v3975, %v4019
    %v4021 = vlaneseq
    %v4022 = vshrl.u32 %v4021, 7
    %v4023 = vsub.s32 4, %v4022
    %v4024 = vrot.slane %v3975, %v4023
    %v4025 = vlaneseq
    %v4026 = vshrl.u32 %v4025, 7
    %v4027 = vsub.s32 6, %v4026
    %v4028 = vrot.slane %v3975, %v4027
    %v4029 = vlaneseq
    %v4030 = vshrl.u32 %v4029, 7
    %v4031 = vsub.s32 0, %v4030
    %v4032 = vrot.slane %v3976, %v4031
    %v4033 = vlaneseq
    %v4034 = vshrl.u32 %v4033, 7
    %v4035 = vsub.s32 2, %v4034
    %v4036 = vrot.slane %v3976, %v4035
    %v4037 = vlaneseq
    %v4038 = vshrl.u32 %v4037, 7
    %v4039 = vsub.s32 4, %v4038
    %v4040 = vrot.slane %v3976, %v4039
    %v4041 = vlaneseq
    %v4042 = vshrl.u32 %v4041, 7
    %v4043 = vsub.s32 6, %v4042
    %v4044 = vrot.slane %v3976, %v4043
    %v4061 = vlaneseq
    %v4062 = vshrl.u32 %v4061, 7
    %v4063 = vsub.s32 0, %v4062
    %v4064 = vrot.slane %v3984, %v4063
    %v4065 = vlaneseq
    %v4066 = vshrl.u32 %v4065, 7
    %v4067 = vsub.s32 0, %v4066
    %v4068 = vrot.slane %v3988, %v4067
    %v4069 = vlaneseq
    %v4070 = vshrl.u32 %v4069, 7
    %v4071 = vsub.s32 0, %v4070
    %v4072 = vrot.slane %v3992, %v4071
    %v4073 = vlaneseq
    %v4074 = vshrl.u32 %v4073, 7
    %v4075 = vsub.s32 0, %v4074
    %v4076 = vrot.slane %v3996, %v4075
    %v4077 = vlaneseq
    %v4078 = vshrl.u32 %v4077, 7
    %v4079 = vsub.s32 0, %v4078
    %v4080 = vrot.slane %v4000, %v4079
    %v4081 = vlaneseq
    %v4082 = vshrl.u32 %v4081, 7
    %v4083 = vsub.s32 0, %v4082
    %v4084 = vrot.slane %v4004, %v4083
    %v4085 = vlaneseq
    %v4086 = vshrl.u32 %v4085, 7
    %v4087 = vsub.s32 0, %v4086
    %v4088 = vrot.slane %v4008, %v4087
    %v4089 = vlaneseq
    %v4090 = vshrl.u32 %v4089, 7
    %v4091 = vsub.s32 0, %v4090
    %v4092 = vrot.slane %v4012, %v4091
    %v4093 = vlaneseq
    %v4094 = vshrl.u32 %v4093, 7
    %v4095 = vsub.s32 0, %v4094
    %v4096 = vrot.slane %v4016, %v4095
    %v4097 = vlaneseq
    %v4098 = vshrl.u32 %v4097, 7
    %v4099 = vsub.s32 0, %v4098
    %v4100 = vrot.slane %v4020, %v4099
    %v4101 = vlaneseq
    %v4102 = vshrl.u32 %v4101, 7
    %v4103 = vsub.s32 0, %v4102
    %v4104 = vrot.slane %v4024, %v4103
    %v4105 = vlaneseq
    %v4106 = vshrl.u32 %v4105, 7
    %v4107 = vsub.s32 0, %v4106
    %v4108 = vrot.slane %v4028, %v4107
    %v4109 = vlaneseq
    %v4110 = vshrl.u32 %v4109, 7
    %v4111 = vsub.s32 0, %v4110
    %v4112 = vrot.slane %v4032, %v4111
    %v4113 = vlaneseq
    %v4114 = vshrl.u32 %v4113, 7
    %v4115 = vsub.s32 0, %v4114
    %v4116 = vrot.slane %v4036, %v4115
    %v4117 = vlaneseq
    %v4118 = vshrl.u32 %v4117, 7
    %v4119 = vsub.s32 0, %v4118
    %v4120 = vrot.slane %v4040, %v4119
    %v4121 = vlaneseq
    %v4122 = vshrl.u32 %v4121, 7
    %v4123 = vsub.s32 0, %v4122
    %v4124 = vrot.slane %v4044, %v4123
    %v4125 = vmul.f32 %v3954, %v4064
    %v4126 = vmul.f32 %v3955, %v4068
    %v4127 = vmul.f32 %v3956, %v4072
    %v4128 = vmul.f32 %v3957, %v4076
    %v4129 = vmul.f32 %v3958, %v4080
    %v4130 = vmul.f32 %v3959, %v4084
    %v4131 = vmul.f32 %v3960, %v4088
    %v4132 = vmul.f32 %v3961, %v4092
    %v4133 = vmul.f32 %v3962, %v4096
    %v4134 = vmul.f32 %v3963, %v4100
    %v4135 = vmul.f32 %v3964, %v4104
    %v4136 = vmul.f32 %v3965, %v4108
    %v4137 = vmul.f32 %v3966, %v4112
    %v4138 = vmul.f32 %v3967, %v4116
    %v4139 = vmul.f32 %v3968, %v4120
    %v4140 = vmul.f32 %v3969, %v4124
    %v4141 = vadd.f32 %v4125, %v4126
    %v4142 = vadd.f32 %v4141, %v4127
    %v4143 = vadd.f32 %v4142, %v4128
    %v4144 = vadd.f32 %v4143, %v4129
    %v4145 = vadd.f32 %v4144, %v4130
    %v4146 = vadd.f32 %v4145, %v4131
    %v4147 = vadd.f32 %v4146, %v4132
    %v4148 = vadd.f32 %v4147, %v4133
    %v4149 = vadd.f32 %v4148, %v4134
    %v4150 = vadd.f32 %v4149, %v4135
    %v4151 = vadd.f32 %v4150, %v4136
    %v4152 = vadd.f32 %v4151, %v4137
    %v4153 = vadd.f32 %v4152, %v4138
    %v4154 = vadd.f32 %v4153, %v4139
    %v4155 = vadd.f32 %v4154, %v4140
    %4156 = vadd.xlane.f32.xlu0 %v4155
    %v4157 = vpop.xlane.xlu0 %4156
    %v4158 = vadd.f32 %v3766, %v4157
    %v4159 = vlaneseq
    %v4160 = vshrl.u32 %v4159, 7
    %v4161 = vsub.s32 1, %v4160
    %v4162 = vrot.slane %v3973, %v4161
    %v4163 = vlaneseq
    %v4164 = vshrl.u32 %v4163, 7
    %v4165 = vsub.s32 3, %v4164
    %v4166 = vrot.slane %v3973, %v4165
    %v4167 = vlaneseq
    %v4168 = vshrl.u32 %v4167, 7
    %v4169 = vsub.s32 5, %v4168
    %v4170 = vrot.slane %v3973, %v4169
    %v4171 = vlaneseq
    %v4172 = vshrl.u32 %v4171, 7
    %v4173 = vsub.s32 7, %v4172
    %v4174 = vrot.slane %v3973, %v4173
    %v4175 = vlaneseq
    %v4176 = vshrl.u32 %v4175, 7
    %v4177 = vsub.s32 1, %v4176
    %v4178 = vrot.slane %v3974, %v4177
    %v4179 = vlaneseq
    %v4180 = vshrl.u32 %v4179, 7
    %v4181 = vsub.s32 3, %v4180
    %v4182 = vrot.slane %v3974, %v4181
    %v4183 = vlaneseq
    %v4184 = vshrl.u32 %v4183, 7
    %v4185 = vsub.s32 5, %v4184
    %v4186 = vrot.slane %v3974, %v4185
    %v4187 = vlaneseq
    %v4188 = vshrl.u32 %v4187, 7
    %v4189 = vsub.s32 7, %v4188
    %v4190 = vrot.slane %v3974, %v4189
    %v4191 = vlaneseq
    %v4192 = vshrl.u32 %v4191, 7
    %v4193 = vsub.s32 1, %v4192
    %v4194 = vrot.slane %v3975, %v4193
    %v4195 = vlaneseq
    %v4196 = vshrl.u32 %v4195, 7
    %v4197 = vsub.s32 3, %v4196
    %v4198 = vrot.slane %v3975, %v4197
    %v4199 = vlaneseq
    %v4200 = vshrl.u32 %v4199, 7
    %v4201 = vsub.s32 5, %v4200
    %v4202 = vrot.slane %v3975, %v4201
    %v4203 = vlaneseq
    %v4204 = vshrl.u32 %v4203, 7
    %v4205 = vsub.s32 7, %v4204
    %v4206 = vrot.slane %v3975, %v4205
    %v4207 = vlaneseq
    %v4208 = vshrl.u32 %v4207, 7
    %v4209 = vsub.s32 1, %v4208
    %v4210 = vrot.slane %v3976, %v4209
    %v4211 = vlaneseq
    %v4212 = vshrl.u32 %v4211, 7
    %v4213 = vsub.s32 3, %v4212
    %v4214 = vrot.slane %v3976, %v4213
    %v4215 = vlaneseq
    %v4216 = vshrl.u32 %v4215, 7
    %v4217 = vsub.s32 5, %v4216
    %v4218 = vrot.slane %v3976, %v4217
    %v4219 = vlaneseq
    %v4220 = vshrl.u32 %v4219, 7
    %v4221 = vsub.s32 7, %v4220
    %v4222 = vrot.slane %v3976, %v4221
    %v4239 = vlaneseq
    %v4240 = vshrl.u32 %v4239, 7
    %v4241 = vsub.s32 1, %v4240
    %v4242 = vrot.slane %v4162, %v4241
    %v4243 = vlaneseq
    %v4244 = vshrl.u32 %v4243, 7
    %v4245 = vsub.s32 1, %v4244
    %v4246 = vrot.slane %v4166, %v4245
    %v4247 = vlaneseq
    %v4248 = vshrl.u32 %v4247, 7
    %v4249 = vsub.s32 1, %v4248
    %v4250 = vrot.slane %v4170, %v4249
    %v4251 = vlaneseq
    %v4252 = vshrl.u32 %v4251, 7
    %v4253 = vsub.s32 1, %v4252
    %v4254 = vrot.slane %v4174, %v4253
    %v4255 = vlaneseq
    %v4256 = vshrl.u32 %v4255, 7
    %v4257 = vsub.s32 1, %v4256
    %v4258 = vrot.slane %v4178, %v4257
    %v4259 = vlaneseq
    %v4260 = vshrl.u32 %v4259, 7
    %v4261 = vsub.s32 1, %v4260
    %v4262 = vrot.slane %v4182, %v4261
    %v4263 = vlaneseq
    %v4264 = vshrl.u32 %v4263, 7
    %v4265 = vsub.s32 1, %v4264
    %v4266 = vrot.slane %v4186, %v4265
    %v4267 = vlaneseq
    %v4268 = vshrl.u32 %v4267, 7
    %v4269 = vsub.s32 1, %v4268
    %v4270 = vrot.slane %v4190, %v4269
    %v4271 = vlaneseq
    %v4272 = vshrl.u32 %v4271, 7
    %v4273 = vsub.s32 1, %v4272
    %v4274 = vrot.slane %v4194, %v4273
    %v4275 = vlaneseq
    %v4276 = vshrl.u32 %v4275, 7
    %v4277 = vsub.s32 1, %v4276
    %v4278 = vrot.slane %v4198, %v4277
    %v4279 = vlaneseq
    %v4280 = vshrl.u32 %v4279, 7
    %v4281 = vsub.s32 1, %v4280
    %v4282 = vrot.slane %v4202, %v4281
    %v4283 = vlaneseq
    %v4284 = vshrl.u32 %v4283, 7
    %v4285 = vsub.s32 1, %v4284
    %v4286 = vrot.slane %v4206, %v4285
    %v4287 = vlaneseq
    %v4288 = vshrl.u32 %v4287, 7
    %v4289 = vsub.s32 1, %v4288
    %v4290 = vrot.slane %v4210, %v4289
    %v4291 = vlaneseq
    %v4292 = vshrl.u32 %v4291, 7
    %v4293 = vsub.s32 1, %v4292
    %v4294 = vrot.slane %v4214, %v4293
    %v4295 = vlaneseq
    %v4296 = vshrl.u32 %v4295, 7
    %v4297 = vsub.s32 1, %v4296
    %v4298 = vrot.slane %v4218, %v4297
    %v4299 = vlaneseq
    %v4300 = vshrl.u32 %v4299, 7
    %v4301 = vsub.s32 1, %v4300
    %v4302 = vrot.slane %v4222, %v4301
    %v4303 = vmul.f32 %v3954, %v4242
    %v4304 = vmul.f32 %v3955, %v4246
    %v4305 = vmul.f32 %v3956, %v4250
    %v4306 = vmul.f32 %v3957, %v4254
    %v4307 = vmul.f32 %v3958, %v4258
    %v4308 = vmul.f32 %v3959, %v4262
    %v4309 = vmul.f32 %v3960, %v4266
    %v4310 = vmul.f32 %v3961, %v4270
    %v4311 = vmul.f32 %v3962, %v4274
    %v4312 = vmul.f32 %v3963, %v4278
    %v4313 = vmul.f32 %v3964, %v4282
    %v4314 = vmul.f32 %v3965, %v4286
    %v4315 = vmul.f32 %v3966, %v4290
    %v4316 = vmul.f32 %v3967, %v4294
    %v4317 = vmul.f32 %v3968, %v4298
    %v4318 = vmul.f32 %v3969, %v4302
    %v4319 = vadd.f32 %v4303, %v4304
    %v4320 = vadd.f32 %v4319, %v4305
    %v4321 = vadd.f32 %v4320, %v4306
    %v4322 = vadd.f32 %v4321, %v4307
    %v4323 = vadd.f32 %v4322, %v4308
    %v4324 = vadd.f32 %v4323, %v4309
    %v4325 = vadd.f32 %v4324, %v4310
    %v4326 = vadd.f32 %v4325, %v4311
    %v4327 = vadd.f32 %v4326, %v4312
    %v4328 = vadd.f32 %v4327, %v4313
    %v4329 = vadd.f32 %v4328, %v4314
    %v4330 = vadd.f32 %v4329, %v4315
    %v4331 = vadd.f32 %v4330, %v4316
    %v4332 = vadd.f32 %v4331, %v4317
    %v4333 = vadd.f32 %v4332, %v4318
    %4334 = vadd.xlane.f32.xlu0 %v4333
    %v4335 = vpop.xlane.xlu0 %4334
    %v4336 = vadd.f32 %v3944, %v4335
    %s4337 = scalar_lea.vmem %s0, 704
    %v4338 = vld [vmem:[%s4337] sm:$0xff]
    %v4339 = vld [vmem:[%s4337 + $0x8] sm:$0xff]
    %v4340 = vld [vmem:[%s4337 + $0x10] sm:$0xff]
    %v4341 = vld [vmem:[%s4337 + $0x18] sm:$0xff]
    %v4342 = vld [vmem:[%s4337 + $0x20] sm:$0xff]
    %v4343 = vld [vmem:[%s4337 + $0x28] sm:$0xff]
    %v4344 = vld [vmem:[%s4337 + $0x30] sm:$0xff]
    %v4345 = vld [vmem:[%s4337 + $0x38] sm:$0xff]
    %v4346 = vunpack.c.l.bf16 %v4338
    %v4347 = vunpack.c.h.bf16 %v4338
    %v4348 = vunpack.c.l.bf16 %v4339
    %v4349 = vunpack.c.h.bf16 %v4339
    %v4350 = vunpack.c.l.bf16 %v4340
    %v4351 = vunpack.c.h.bf16 %v4340
    %v4352 = vunpack.c.l.bf16 %v4341
    %v4353 = vunpack.c.h.bf16 %v4341
    %v4354 = vunpack.c.l.bf16 %v4342
    %v4355 = vunpack.c.h.bf16 %v4342
    %v4356 = vunpack.c.l.bf16 %v4343
    %v4357 = vunpack.c.h.bf16 %v4343
    %v4358 = vunpack.c.l.bf16 %v4344
    %v4359 = vunpack.c.h.bf16 %v4344
    %v4360 = vunpack.c.l.bf16 %v4345
    %v4361 = vunpack.c.h.bf16 %v4345
    %s4362 = scalar_lea.vmem %s1, 176
    %v4363 = vld [vmem:[%s4362] sm:$0xff]
    %v4364 = vld [vmem:[%s4362 + $0x8] sm:$0xff]
    %v4365 = vunpack.c.l.bf16 %v4363
    %v4366 = vunpack.c.h.bf16 %v4363
    %v4367 = vunpack.c.l.bf16 %v4364
    %v4368 = vunpack.c.h.bf16 %v4364
    %v4373 = vlaneseq
    %v4374 = vshrl.u32 %v4373, 7
    %v4375 = vsub.s32 0, %v4374
    %v4376 = vrot.slane %v4365, %v4375
    %v4377 = vlaneseq
    %v4378 = vshrl.u32 %v4377, 7
    %v4379 = vsub.s32 2, %v4378
    %v4380 = vrot.slane %v4365, %v4379
    %v4381 = vlaneseq
    %v4382 = vshrl.u32 %v4381, 7
    %v4383 = vsub.s32 4, %v4382
    %v4384 = vrot.slane %v4365, %v4383
    %v4385 = vlaneseq
    %v4386 = vshrl.u32 %v4385, 7
    %v4387 = vsub.s32 6, %v4386
    %v4388 = vrot.slane %v4365, %v4387
    %v4389 = vlaneseq
    %v4390 = vshrl.u32 %v4389, 7
    %v4391 = vsub.s32 0, %v4390
    %v4392 = vrot.slane %v4366, %v4391
    %v4393 = vlaneseq
    %v4394 = vshrl.u32 %v4393, 7
    %v4395 = vsub.s32 2, %v4394
    %v4396 = vrot.slane %v4366, %v4395
    %v4397 = vlaneseq
    %v4398 = vshrl.u32 %v4397, 7
    %v4399 = vsub.s32 4, %v4398
    %v4400 = vrot.slane %v4366, %v4399
    %v4401 = vlaneseq
    %v4402 = vshrl.u32 %v4401, 7
    %v4403 = vsub.s32 6, %v4402
    %v4404 = vrot.slane %v4366, %v4403
    %v4405 = vlaneseq
    %v4406 = vshrl.u32 %v4405, 7
    %v4407 = vsub.s32 0, %v4406
    %v4408 = vrot.slane %v4367, %v4407
    %v4409 = vlaneseq
    %v4410 = vshrl.u32 %v4409, 7
    %v4411 = vsub.s32 2, %v4410
    %v4412 = vrot.slane %v4367, %v4411
    %v4413 = vlaneseq
    %v4414 = vshrl.u32 %v4413, 7
    %v4415 = vsub.s32 4, %v4414
    %v4416 = vrot.slane %v4367, %v4415
    %v4417 = vlaneseq
    %v4418 = vshrl.u32 %v4417, 7
    %v4419 = vsub.s32 6, %v4418
    %v4420 = vrot.slane %v4367, %v4419
    %v4421 = vlaneseq
    %v4422 = vshrl.u32 %v4421, 7
    %v4423 = vsub.s32 0, %v4422
    %v4424 = vrot.slane %v4368, %v4423
    %v4425 = vlaneseq
    %v4426 = vshrl.u32 %v4425, 7
    %v4427 = vsub.s32 2, %v4426
    %v4428 = vrot.slane %v4368, %v4427
    %v4429 = vlaneseq
    %v4430 = vshrl.u32 %v4429, 7
    %v4431 = vsub.s32 4, %v4430
    %v4432 = vrot.slane %v4368, %v4431
    %v4433 = vlaneseq
    %v4434 = vshrl.u32 %v4433, 7
    %v4435 = vsub.s32 6, %v4434
    %v4436 = vrot.slane %v4368, %v4435
    %v4453 = vlaneseq
    %v4454 = vshrl.u32 %v4453, 7
    %v4455 = vsub.s32 0, %v4454
    %v4456 = vrot.slane %v4376, %v4455
    %v4457 = vlaneseq
    %v4458 = vshrl.u32 %v4457, 7
    %v4459 = vsub.s32 0, %v4458
    %v4460 = vrot.slane %v4380, %v4459
    %v4461 = vlaneseq
    %v4462 = vshrl.u32 %v4461, 7
    %v4463 = vsub.s32 0, %v4462
    %v4464 = vrot.slane %v4384, %v4463
    %v4465 = vlaneseq
    %v4466 = vshrl.u32 %v4465, 7
    %v4467 = vsub.s32 0, %v4466
    %v4468 = vrot.slane %v4388, %v4467
    %v4469 = vlaneseq
    %v4470 = vshrl.u32 %v4469, 7
    %v4471 = vsub.s32 0, %v4470
    %v4472 = vrot.slane %v4392, %v4471
    %v4473 = vlaneseq
    %v4474 = vshrl.u32 %v4473, 7
    %v4475 = vsub.s32 0, %v4474
    %v4476 = vrot.slane %v4396, %v4475
    %v4477 = vlaneseq
    %v4478 = vshrl.u32 %v4477, 7
    %v4479 = vsub.s32 0, %v4478
    %v4480 = vrot.slane %v4400, %v4479
    %v4481 = vlaneseq
    %v4482 = vshrl.u32 %v4481, 7
    %v4483 = vsub.s32 0, %v4482
    %v4484 = vrot.slane %v4404, %v4483
    %v4485 = vlaneseq
    %v4486 = vshrl.u32 %v4485, 7
    %v4487 = vsub.s32 0, %v4486
    %v4488 = vrot.slane %v4408, %v4487
    %v4489 = vlaneseq
    %v4490 = vshrl.u32 %v4489, 7
    %v4491 = vsub.s32 0, %v4490
    %v4492 = vrot.slane %v4412, %v4491
    %v4493 = vlaneseq
    %v4494 = vshrl.u32 %v4493, 7
    %v4495 = vsub.s32 0, %v4494
    %v4496 = vrot.slane %v4416, %v4495
    %v4497 = vlaneseq
    %v4498 = vshrl.u32 %v4497, 7
    %v4499 = vsub.s32 0, %v4498
    %v4500 = vrot.slane %v4420, %v4499
    %v4501 = vlaneseq
    %v4502 = vshrl.u32 %v4501, 7
    %v4503 = vsub.s32 0, %v4502
    %v4504 = vrot.slane %v4424, %v4503
    %v4505 = vlaneseq
    %v4506 = vshrl.u32 %v4505, 7
    %v4507 = vsub.s32 0, %v4506
    %v4508 = vrot.slane %v4428, %v4507
    %v4509 = vlaneseq
    %v4510 = vshrl.u32 %v4509, 7
    %v4511 = vsub.s32 0, %v4510
    %v4512 = vrot.slane %v4432, %v4511
    %v4513 = vlaneseq
    %v4514 = vshrl.u32 %v4513, 7
    %v4515 = vsub.s32 0, %v4514
    %v4516 = vrot.slane %v4436, %v4515
    %v4517 = vmul.f32 %v4346, %v4456
    %v4518 = vmul.f32 %v4347, %v4460
    %v4519 = vmul.f32 %v4348, %v4464
    %v4520 = vmul.f32 %v4349, %v4468
    %v4521 = vmul.f32 %v4350, %v4472
    %v4522 = vmul.f32 %v4351, %v4476
    %v4523 = vmul.f32 %v4352, %v4480
    %v4524 = vmul.f32 %v4353, %v4484
    %v4525 = vmul.f32 %v4354, %v4488
    %v4526 = vmul.f32 %v4355, %v4492
    %v4527 = vmul.f32 %v4356, %v4496
    %v4528 = vmul.f32 %v4357, %v4500
    %v4529 = vmul.f32 %v4358, %v4504
    %v4530 = vmul.f32 %v4359, %v4508
    %v4531 = vmul.f32 %v4360, %v4512
    %v4532 = vmul.f32 %v4361, %v4516
    %v4533 = vadd.f32 %v4517, %v4518
    %v4534 = vadd.f32 %v4533, %v4519
    %v4535 = vadd.f32 %v4534, %v4520
    %v4536 = vadd.f32 %v4535, %v4521
    %v4537 = vadd.f32 %v4536, %v4522
    %v4538 = vadd.f32 %v4537, %v4523
    %v4539 = vadd.f32 %v4538, %v4524
    %v4540 = vadd.f32 %v4539, %v4525
    %v4541 = vadd.f32 %v4540, %v4526
    %v4542 = vadd.f32 %v4541, %v4527
    %v4543 = vadd.f32 %v4542, %v4528
    %v4544 = vadd.f32 %v4543, %v4529
    %v4545 = vadd.f32 %v4544, %v4530
    %v4546 = vadd.f32 %v4545, %v4531
    %v4547 = vadd.f32 %v4546, %v4532
    %4548 = vadd.xlane.f32.xlu0 %v4547
    %v4549 = vpop.xlane.xlu0 %4548
    %v4550 = vadd.f32 %v4158, %v4549
    %v4551 = vlaneseq
    %v4552 = vshrl.u32 %v4551, 7
    %v4553 = vsub.s32 1, %v4552
    %v4554 = vrot.slane %v4365, %v4553
    %v4555 = vlaneseq
    %v4556 = vshrl.u32 %v4555, 7
    %v4557 = vsub.s32 3, %v4556
    %v4558 = vrot.slane %v4365, %v4557
    %v4559 = vlaneseq
    %v4560 = vshrl.u32 %v4559, 7
    %v4561 = vsub.s32 5, %v4560
    %v4562 = vrot.slane %v4365, %v4561
    %v4563 = vlaneseq
    %v4564 = vshrl.u32 %v4563, 7
    %v4565 = vsub.s32 7, %v4564
    %v4566 = vrot.slane %v4365, %v4565
    %v4567 = vlaneseq
    %v4568 = vshrl.u32 %v4567, 7
    %v4569 = vsub.s32 1, %v4568
    %v4570 = vrot.slane %v4366, %v4569
    %v4571 = vlaneseq
    %v4572 = vshrl.u32 %v4571, 7
    %v4573 = vsub.s32 3, %v4572
    %v4574 = vrot.slane %v4366, %v4573
    %v4575 = vlaneseq
    %v4576 = vshrl.u32 %v4575, 7
    %v4577 = vsub.s32 5, %v4576
    %v4578 = vrot.slane %v4366, %v4577
    %v4579 = vlaneseq
    %v4580 = vshrl.u32 %v4579, 7
    %v4581 = vsub.s32 7, %v4580
    %v4582 = vrot.slane %v4366, %v4581
    %v4583 = vlaneseq
    %v4584 = vshrl.u32 %v4583, 7
    %v4585 = vsub.s32 1, %v4584
    %v4586 = vrot.slane %v4367, %v4585
    %v4587 = vlaneseq
    %v4588 = vshrl.u32 %v4587, 7
    %v4589 = vsub.s32 3, %v4588
    %v4590 = vrot.slane %v4367, %v4589
    %v4591 = vlaneseq
    %v4592 = vshrl.u32 %v4591, 7
    %v4593 = vsub.s32 5, %v4592
    %v4594 = vrot.slane %v4367, %v4593
    %v4595 = vlaneseq
    %v4596 = vshrl.u32 %v4595, 7
    %v4597 = vsub.s32 7, %v4596
    %v4598 = vrot.slane %v4367, %v4597
    %v4599 = vlaneseq
    %v4600 = vshrl.u32 %v4599, 7
    %v4601 = vsub.s32 1, %v4600
    %v4602 = vrot.slane %v4368, %v4601
    %v4603 = vlaneseq
    %v4604 = vshrl.u32 %v4603, 7
    %v4605 = vsub.s32 3, %v4604
    %v4606 = vrot.slane %v4368, %v4605
    %v4607 = vlaneseq
    %v4608 = vshrl.u32 %v4607, 7
    %v4609 = vsub.s32 5, %v4608
    %v4610 = vrot.slane %v4368, %v4609
    %v4611 = vlaneseq
    %v4612 = vshrl.u32 %v4611, 7
    %v4613 = vsub.s32 7, %v4612
    %v4614 = vrot.slane %v4368, %v4613
    %v4631 = vlaneseq
    %v4632 = vshrl.u32 %v4631, 7
    %v4633 = vsub.s32 1, %v4632
    %v4634 = vrot.slane %v4554, %v4633
    %v4635 = vlaneseq
    %v4636 = vshrl.u32 %v4635, 7
    %v4637 = vsub.s32 1, %v4636
    %v4638 = vrot.slane %v4558, %v4637
    %v4639 = vlaneseq
    %v4640 = vshrl.u32 %v4639, 7
    %v4641 = vsub.s32 1, %v4640
    %v4642 = vrot.slane %v4562, %v4641
    %v4643 = vlaneseq
    %v4644 = vshrl.u32 %v4643, 7
    %v4645 = vsub.s32 1, %v4644
    %v4646 = vrot.slane %v4566, %v4645
    %v4647 = vlaneseq
    %v4648 = vshrl.u32 %v4647, 7
    %v4649 = vsub.s32 1, %v4648
    %v4650 = vrot.slane %v4570, %v4649
    %v4651 = vlaneseq
    %v4652 = vshrl.u32 %v4651, 7
    %v4653 = vsub.s32 1, %v4652
    %v4654 = vrot.slane %v4574, %v4653
    %v4655 = vlaneseq
    %v4656 = vshrl.u32 %v4655, 7
    %v4657 = vsub.s32 1, %v4656
    %v4658 = vrot.slane %v4578, %v4657
    %v4659 = vlaneseq
    %v4660 = vshrl.u32 %v4659, 7
    %v4661 = vsub.s32 1, %v4660
    %v4662 = vrot.slane %v4582, %v4661
    %v4663 = vlaneseq
    %v4664 = vshrl.u32 %v4663, 7
    %v4665 = vsub.s32 1, %v4664
    %v4666 = vrot.slane %v4586, %v4665
    %v4667 = vlaneseq
    %v4668 = vshrl.u32 %v4667, 7
    %v4669 = vsub.s32 1, %v4668
    %v4670 = vrot.slane %v4590, %v4669
    %v4671 = vlaneseq
    %v4672 = vshrl.u32 %v4671, 7
    %v4673 = vsub.s32 1, %v4672
    %v4674 = vrot.slane %v4594, %v4673
    %v4675 = vlaneseq
    %v4676 = vshrl.u32 %v4675, 7
    %v4677 = vsub.s32 1, %v4676
    %v4678 = vrot.slane %v4598, %v4677
    %v4679 = vlaneseq
    %v4680 = vshrl.u32 %v4679, 7
    %v4681 = vsub.s32 1, %v4680
    %v4682 = vrot.slane %v4602, %v4681
    %v4683 = vlaneseq
    %v4684 = vshrl.u32 %v4683, 7
    %v4685 = vsub.s32 1, %v4684
    %v4686 = vrot.slane %v4606, %v4685
    %v4687 = vlaneseq
    %v4688 = vshrl.u32 %v4687, 7
    %v4689 = vsub.s32 1, %v4688
    %v4690 = vrot.slane %v4610, %v4689
    %v4691 = vlaneseq
    %v4692 = vshrl.u32 %v4691, 7
    %v4693 = vsub.s32 1, %v4692
    %v4694 = vrot.slane %v4614, %v4693
    %v4695 = vmul.f32 %v4346, %v4634
    %v4696 = vmul.f32 %v4347, %v4638
    %v4697 = vmul.f32 %v4348, %v4642
    %v4698 = vmul.f32 %v4349, %v4646
    %v4699 = vmul.f32 %v4350, %v4650
    %v4700 = vmul.f32 %v4351, %v4654
    %v4701 = vmul.f32 %v4352, %v4658
    %v4702 = vmul.f32 %v4353, %v4662
    %v4703 = vmul.f32 %v4354, %v4666
    %v4704 = vmul.f32 %v4355, %v4670
    %v4705 = vmul.f32 %v4356, %v4674
    %v4706 = vmul.f32 %v4357, %v4678
    %v4707 = vmul.f32 %v4358, %v4682
    %v4708 = vmul.f32 %v4359, %v4686
    %v4709 = vmul.f32 %v4360, %v4690
    %v4710 = vmul.f32 %v4361, %v4694
    %v4711 = vadd.f32 %v4695, %v4696
    %v4712 = vadd.f32 %v4711, %v4697
    %v4713 = vadd.f32 %v4712, %v4698
    %v4714 = vadd.f32 %v4713, %v4699
    %v4715 = vadd.f32 %v4714, %v4700
    %v4716 = vadd.f32 %v4715, %v4701
    %v4717 = vadd.f32 %v4716, %v4702
    %v4718 = vadd.f32 %v4717, %v4703
    %v4719 = vadd.f32 %v4718, %v4704
    %v4720 = vadd.f32 %v4719, %v4705
    %v4721 = vadd.f32 %v4720, %v4706
    %v4722 = vadd.f32 %v4721, %v4707
    %v4723 = vadd.f32 %v4722, %v4708
    %v4724 = vadd.f32 %v4723, %v4709
    %v4725 = vadd.f32 %v4724, %v4710
    %4726 = vadd.xlane.f32.xlu0 %v4725
    %v4727 = vpop.xlane.xlu0 %4726
    %v4728 = vadd.f32 %v4336, %v4727
    %s4729 = scalar_lea.vmem %s0, 768
    %v4730 = vld [vmem:[%s4729] sm:$0xff]
    %v4731 = vld [vmem:[%s4729 + $0x8] sm:$0xff]
    %v4732 = vld [vmem:[%s4729 + $0x10] sm:$0xff]
    %v4733 = vld [vmem:[%s4729 + $0x18] sm:$0xff]
    %v4734 = vld [vmem:[%s4729 + $0x20] sm:$0xff]
    %v4735 = vld [vmem:[%s4729 + $0x28] sm:$0xff]
    %v4736 = vld [vmem:[%s4729 + $0x30] sm:$0xff]
    %v4737 = vld [vmem:[%s4729 + $0x38] sm:$0xff]
    %v4738 = vunpack.c.l.bf16 %v4730
    %v4739 = vunpack.c.h.bf16 %v4730
    %v4740 = vunpack.c.l.bf16 %v4731
    %v4741 = vunpack.c.h.bf16 %v4731
    %v4742 = vunpack.c.l.bf16 %v4732
    %v4743 = vunpack.c.h.bf16 %v4732
    %v4744 = vunpack.c.l.bf16 %v4733
    %v4745 = vunpack.c.h.bf16 %v4733
    %v4746 = vunpack.c.l.bf16 %v4734
    %v4747 = vunpack.c.h.bf16 %v4734
    %v4748 = vunpack.c.l.bf16 %v4735
    %v4749 = vunpack.c.h.bf16 %v4735
    %v4750 = vunpack.c.l.bf16 %v4736
    %v4751 = vunpack.c.h.bf16 %v4736
    %v4752 = vunpack.c.l.bf16 %v4737
    %v4753 = vunpack.c.h.bf16 %v4737
    %s4754 = scalar_lea.vmem %s1, 192
    %v4755 = vld [vmem:[%s4754] sm:$0xff]
    %v4756 = vld [vmem:[%s4754 + $0x8] sm:$0xff]
    %v4757 = vunpack.c.l.bf16 %v4755
    %v4758 = vunpack.c.h.bf16 %v4755
    %v4759 = vunpack.c.l.bf16 %v4756
    %v4760 = vunpack.c.h.bf16 %v4756
    %v4765 = vlaneseq
    %v4766 = vshrl.u32 %v4765, 7
    %v4767 = vsub.s32 0, %v4766
    %v4768 = vrot.slane %v4757, %v4767
    %v4769 = vlaneseq
    %v4770 = vshrl.u32 %v4769, 7
    %v4771 = vsub.s32 2, %v4770
    %v4772 = vrot.slane %v4757, %v4771
    %v4773 = vlaneseq
    %v4774 = vshrl.u32 %v4773, 7
    %v4775 = vsub.s32 4, %v4774
    %v4776 = vrot.slane %v4757, %v4775
    %v4777 = vlaneseq
    %v4778 = vshrl.u32 %v4777, 7
    %v4779 = vsub.s32 6, %v4778
    %v4780 = vrot.slane %v4757, %v4779
    %v4781 = vlaneseq
    %v4782 = vshrl.u32 %v4781, 7
    %v4783 = vsub.s32 0, %v4782
    %v4784 = vrot.slane %v4758, %v4783
    %v4785 = vlaneseq
    %v4786 = vshrl.u32 %v4785, 7
    %v4787 = vsub.s32 2, %v4786
    %v4788 = vrot.slane %v4758, %v4787
    %v4789 = vlaneseq
    %v4790 = vshrl.u32 %v4789, 7
    %v4791 = vsub.s32 4, %v4790
    %v4792 = vrot.slane %v4758, %v4791
    %v4793 = vlaneseq
    %v4794 = vshrl.u32 %v4793, 7
    %v4795 = vsub.s32 6, %v4794
    %v4796 = vrot.slane %v4758, %v4795
    %v4797 = vlaneseq
    %v4798 = vshrl.u32 %v4797, 7
    %v4799 = vsub.s32 0, %v4798
    %v4800 = vrot.slane %v4759, %v4799
    %v4801 = vlaneseq
    %v4802 = vshrl.u32 %v4801, 7
    %v4803 = vsub.s32 2, %v4802
    %v4804 = vrot.slane %v4759, %v4803
    %v4805 = vlaneseq
    %v4806 = vshrl.u32 %v4805, 7
    %v4807 = vsub.s32 4, %v4806
    %v4808 = vrot.slane %v4759, %v4807
    %v4809 = vlaneseq
    %v4810 = vshrl.u32 %v4809, 7
    %v4811 = vsub.s32 6, %v4810
    %v4812 = vrot.slane %v4759, %v4811
    %v4813 = vlaneseq
    %v4814 = vshrl.u32 %v4813, 7
    %v4815 = vsub.s32 0, %v4814
    %v4816 = vrot.slane %v4760, %v4815
    %v4817 = vlaneseq
    %v4818 = vshrl.u32 %v4817, 7
    %v4819 = vsub.s32 2, %v4818
    %v4820 = vrot.slane %v4760, %v4819
    %v4821 = vlaneseq
    %v4822 = vshrl.u32 %v4821, 7
    %v4823 = vsub.s32 4, %v4822
    %v4824 = vrot.slane %v4760, %v4823
    %v4825 = vlaneseq
    %v4826 = vshrl.u32 %v4825, 7
    %v4827 = vsub.s32 6, %v4826
    %v4828 = vrot.slane %v4760, %v4827
    %v4845 = vlaneseq
    %v4846 = vshrl.u32 %v4845, 7
    %v4847 = vsub.s32 0, %v4846
    %v4848 = vrot.slane %v4768, %v4847
    %v4849 = vlaneseq
    %v4850 = vshrl.u32 %v4849, 7
    %v4851 = vsub.s32 0, %v4850
    %v4852 = vrot.slane %v4772, %v4851
    %v4853 = vlaneseq
    %v4854 = vshrl.u32 %v4853, 7
    %v4855 = vsub.s32 0, %v4854
    %v4856 = vrot.slane %v4776, %v4855
    %v4857 = vlaneseq
    %v4858 = vshrl.u32 %v4857, 7
    %v4859 = vsub.s32 0, %v4858
    %v4860 = vrot.slane %v4780, %v4859
    %v4861 = vlaneseq
    %v4862 = vshrl.u32 %v4861, 7
    %v4863 = vsub.s32 0, %v4862
    %v4864 = vrot.slane %v4784, %v4863
    %v4865 = vlaneseq
    %v4866 = vshrl.u32 %v4865, 7
    %v4867 = vsub.s32 0, %v4866
    %v4868 = vrot.slane %v4788, %v4867
    %v4869 = vlaneseq
    %v4870 = vshrl.u32 %v4869, 7
    %v4871 = vsub.s32 0, %v4870
    %v4872 = vrot.slane %v4792, %v4871
    %v4873 = vlaneseq
    %v4874 = vshrl.u32 %v4873, 7
    %v4875 = vsub.s32 0, %v4874
    %v4876 = vrot.slane %v4796, %v4875
    %v4877 = vlaneseq
    %v4878 = vshrl.u32 %v4877, 7
    %v4879 = vsub.s32 0, %v4878
    %v4880 = vrot.slane %v4800, %v4879
    %v4881 = vlaneseq
    %v4882 = vshrl.u32 %v4881, 7
    %v4883 = vsub.s32 0, %v4882
    %v4884 = vrot.slane %v4804, %v4883
    %v4885 = vlaneseq
    %v4886 = vshrl.u32 %v4885, 7
    %v4887 = vsub.s32 0, %v4886
    %v4888 = vrot.slane %v4808, %v4887
    %v4889 = vlaneseq
    %v4890 = vshrl.u32 %v4889, 7
    %v4891 = vsub.s32 0, %v4890
    %v4892 = vrot.slane %v4812, %v4891
    %v4893 = vlaneseq
    %v4894 = vshrl.u32 %v4893, 7
    %v4895 = vsub.s32 0, %v4894
    %v4896 = vrot.slane %v4816, %v4895
    %v4897 = vlaneseq
    %v4898 = vshrl.u32 %v4897, 7
    %v4899 = vsub.s32 0, %v4898
    %v4900 = vrot.slane %v4820, %v4899
    %v4901 = vlaneseq
    %v4902 = vshrl.u32 %v4901, 7
    %v4903 = vsub.s32 0, %v4902
    %v4904 = vrot.slane %v4824, %v4903
    %v4905 = vlaneseq
    %v4906 = vshrl.u32 %v4905, 7
    %v4907 = vsub.s32 0, %v4906
    %v4908 = vrot.slane %v4828, %v4907
    %v4909 = vmul.f32 %v4738, %v4848
    %v4910 = vmul.f32 %v4739, %v4852
    %v4911 = vmul.f32 %v4740, %v4856
    %v4912 = vmul.f32 %v4741, %v4860
    %v4913 = vmul.f32 %v4742, %v4864
    %v4914 = vmul.f32 %v4743, %v4868
    %v4915 = vmul.f32 %v4744, %v4872
    %v4916 = vmul.f32 %v4745, %v4876
    %v4917 = vmul.f32 %v4746, %v4880
    %v4918 = vmul.f32 %v4747, %v4884
    %v4919 = vmul.f32 %v4748, %v4888
    %v4920 = vmul.f32 %v4749, %v4892
    %v4921 = vmul.f32 %v4750, %v4896
    %v4922 = vmul.f32 %v4751, %v4900
    %v4923 = vmul.f32 %v4752, %v4904
    %v4924 = vmul.f32 %v4753, %v4908
    %v4925 = vadd.f32 %v4909, %v4910
    %v4926 = vadd.f32 %v4925, %v4911
    %v4927 = vadd.f32 %v4926, %v4912
    %v4928 = vadd.f32 %v4927, %v4913
    %v4929 = vadd.f32 %v4928, %v4914
    %v4930 = vadd.f32 %v4929, %v4915
    %v4931 = vadd.f32 %v4930, %v4916
    %v4932 = vadd.f32 %v4931, %v4917
    %v4933 = vadd.f32 %v4932, %v4918
    %v4934 = vadd.f32 %v4933, %v4919
    %v4935 = vadd.f32 %v4934, %v4920
    %v4936 = vadd.f32 %v4935, %v4921
    %v4937 = vadd.f32 %v4936, %v4922
    %v4938 = vadd.f32 %v4937, %v4923
    %v4939 = vadd.f32 %v4938, %v4924
    %4940 = vadd.xlane.f32.xlu0 %v4939
    %v4941 = vpop.xlane.xlu0 %4940
    %v4942 = vadd.f32 %v4550, %v4941
    %v4943 = vlaneseq
    %v4944 = vshrl.u32 %v4943, 7
    %v4945 = vsub.s32 1, %v4944
    %v4946 = vrot.slane %v4757, %v4945
    %v4947 = vlaneseq
    %v4948 = vshrl.u32 %v4947, 7
    %v4949 = vsub.s32 3, %v4948
    %v4950 = vrot.slane %v4757, %v4949
    %v4951 = vlaneseq
    %v4952 = vshrl.u32 %v4951, 7
    %v4953 = vsub.s32 5, %v4952
    %v4954 = vrot.slane %v4757, %v4953
    %v4955 = vlaneseq
    %v4956 = vshrl.u32 %v4955, 7
    %v4957 = vsub.s32 7, %v4956
    %v4958 = vrot.slane %v4757, %v4957
    %v4959 = vlaneseq
    %v4960 = vshrl.u32 %v4959, 7
    %v4961 = vsub.s32 1, %v4960
    %v4962 = vrot.slane %v4758, %v4961
    %v4963 = vlaneseq
    %v4964 = vshrl.u32 %v4963, 7
    %v4965 = vsub.s32 3, %v4964
    %v4966 = vrot.slane %v4758, %v4965
    %v4967 = vlaneseq
    %v4968 = vshrl.u32 %v4967, 7
    %v4969 = vsub.s32 5, %v4968
    %v4970 = vrot.slane %v4758, %v4969
    %v4971 = vlaneseq
    %v4972 = vshrl.u32 %v4971, 7
    %v4973 = vsub.s32 7, %v4972
    %v4974 = vrot.slane %v4758, %v4973
    %v4975 = vlaneseq
    %v4976 = vshrl.u32 %v4975, 7
    %v4977 = vsub.s32 1, %v4976
    %v4978 = vrot.slane %v4759, %v4977
    %v4979 = vlaneseq
    %v4980 = vshrl.u32 %v4979, 7
    %v4981 = vsub.s32 3, %v4980
    %v4982 = vrot.slane %v4759, %v4981
    %v4983 = vlaneseq
    %v4984 = vshrl.u32 %v4983, 7
    %v4985 = vsub.s32 5, %v4984
    %v4986 = vrot.slane %v4759, %v4985
    %v4987 = vlaneseq
    %v4988 = vshrl.u32 %v4987, 7
    %v4989 = vsub.s32 7, %v4988
    %v4990 = vrot.slane %v4759, %v4989
    %v4991 = vlaneseq
    %v4992 = vshrl.u32 %v4991, 7
    %v4993 = vsub.s32 1, %v4992
    %v4994 = vrot.slane %v4760, %v4993
    %v4995 = vlaneseq
    %v4996 = vshrl.u32 %v4995, 7
    %v4997 = vsub.s32 3, %v4996
    %v4998 = vrot.slane %v4760, %v4997
    %v4999 = vlaneseq
    %v5000 = vshrl.u32 %v4999, 7
    %v5001 = vsub.s32 5, %v5000
    %v5002 = vrot.slane %v4760, %v5001
    %v5003 = vlaneseq
    %v5004 = vshrl.u32 %v5003, 7
    %v5005 = vsub.s32 7, %v5004
    %v5006 = vrot.slane %v4760, %v5005
    %v5023 = vlaneseq
    %v5024 = vshrl.u32 %v5023, 7
    %v5025 = vsub.s32 1, %v5024
    %v5026 = vrot.slane %v4946, %v5025
    %v5027 = vlaneseq
    %v5028 = vshrl.u32 %v5027, 7
    %v5029 = vsub.s32 1, %v5028
    %v5030 = vrot.slane %v4950, %v5029
    %v5031 = vlaneseq
    %v5032 = vshrl.u32 %v5031, 7
    %v5033 = vsub.s32 1, %v5032
    %v5034 = vrot.slane %v4954, %v5033
    %v5035 = vlaneseq
    %v5036 = vshrl.u32 %v5035, 7
    %v5037 = vsub.s32 1, %v5036
    %v5038 = vrot.slane %v4958, %v5037
    %v5039 = vlaneseq
    %v5040 = vshrl.u32 %v5039, 7
    %v5041 = vsub.s32 1, %v5040
    %v5042 = vrot.slane %v4962, %v5041
    %v5043 = vlaneseq
    %v5044 = vshrl.u32 %v5043, 7
    %v5045 = vsub.s32 1, %v5044
    %v5046 = vrot.slane %v4966, %v5045
    %v5047 = vlaneseq
    %v5048 = vshrl.u32 %v5047, 7
    %v5049 = vsub.s32 1, %v5048
    %v5050 = vrot.slane %v4970, %v5049
    %v5051 = vlaneseq
    %v5052 = vshrl.u32 %v5051, 7
    %v5053 = vsub.s32 1, %v5052
    %v5054 = vrot.slane %v4974, %v5053
    %v5055 = vlaneseq
    %v5056 = vshrl.u32 %v5055, 7
    %v5057 = vsub.s32 1, %v5056
    %v5058 = vrot.slane %v4978, %v5057
    %v5059 = vlaneseq
    %v5060 = vshrl.u32 %v5059, 7
    %v5061 = vsub.s32 1, %v5060
    %v5062 = vrot.slane %v4982, %v5061
    %v5063 = vlaneseq
    %v5064 = vshrl.u32 %v5063, 7
    %v5065 = vsub.s32 1, %v5064
    %v5066 = vrot.slane %v4986, %v5065
    %v5067 = vlaneseq
    %v5068 = vshrl.u32 %v5067, 7
    %v5069 = vsub.s32 1, %v5068
    %v5070 = vrot.slane %v4990, %v5069
    %v5071 = vlaneseq
    %v5072 = vshrl.u32 %v5071, 7
    %v5073 = vsub.s32 1, %v5072
    %v5074 = vrot.slane %v4994, %v5073
    %v5075 = vlaneseq
    %v5076 = vshrl.u32 %v5075, 7
    %v5077 = vsub.s32 1, %v5076
    %v5078 = vrot.slane %v4998, %v5077
    %v5079 = vlaneseq
    %v5080 = vshrl.u32 %v5079, 7
    %v5081 = vsub.s32 1, %v5080
    %v5082 = vrot.slane %v5002, %v5081
    %v5083 = vlaneseq
    %v5084 = vshrl.u32 %v5083, 7
    %v5085 = vsub.s32 1, %v5084
    %v5086 = vrot.slane %v5006, %v5085
    %v5087 = vmul.f32 %v4738, %v5026
    %v5088 = vmul.f32 %v4739, %v5030
    %v5089 = vmul.f32 %v4740, %v5034
    %v5090 = vmul.f32 %v4741, %v5038
    %v5091 = vmul.f32 %v4742, %v5042
    %v5092 = vmul.f32 %v4743, %v5046
    %v5093 = vmul.f32 %v4744, %v5050
    %v5094 = vmul.f32 %v4745, %v5054
    %v5095 = vmul.f32 %v4746, %v5058
    %v5096 = vmul.f32 %v4747, %v5062
    %v5097 = vmul.f32 %v4748, %v5066
    %v5098 = vmul.f32 %v4749, %v5070
    %v5099 = vmul.f32 %v4750, %v5074
    %v5100 = vmul.f32 %v4751, %v5078
    %v5101 = vmul.f32 %v4752, %v5082
    %v5102 = vmul.f32 %v4753, %v5086
    %v5103 = vadd.f32 %v5087, %v5088
    %v5104 = vadd.f32 %v5103, %v5089
    %v5105 = vadd.f32 %v5104, %v5090
    %v5106 = vadd.f32 %v5105, %v5091
    %v5107 = vadd.f32 %v5106, %v5092
    %v5108 = vadd.f32 %v5107, %v5093
    %v5109 = vadd.f32 %v5108, %v5094
    %v5110 = vadd.f32 %v5109, %v5095
    %v5111 = vadd.f32 %v5110, %v5096
    %v5112 = vadd.f32 %v5111, %v5097
    %v5113 = vadd.f32 %v5112, %v5098
    %v5114 = vadd.f32 %v5113, %v5099
    %v5115 = vadd.f32 %v5114, %v5100
    %v5116 = vadd.f32 %v5115, %v5101
    %v5117 = vadd.f32 %v5116, %v5102
    %5118 = vadd.xlane.f32.xlu0 %v5117
    %v5119 = vpop.xlane.xlu0 %5118
    %v5120 = vadd.f32 %v4728, %v5119
    %s5121 = scalar_lea.vmem %s0, 832
    %v5122 = vld [vmem:[%s5121] sm:$0xff]
    %v5123 = vld [vmem:[%s5121 + $0x8] sm:$0xff]
    %v5124 = vld [vmem:[%s5121 + $0x10] sm:$0xff]
    %v5125 = vld [vmem:[%s5121 + $0x18] sm:$0xff]
    %v5126 = vld [vmem:[%s5121 + $0x20] sm:$0xff]
    %v5127 = vld [vmem:[%s5121 + $0x28] sm:$0xff]
    %v5128 = vld [vmem:[%s5121 + $0x30] sm:$0xff]
    %v5129 = vld [vmem:[%s5121 + $0x38] sm:$0xff]
    %v5130 = vunpack.c.l.bf16 %v5122
    %v5131 = vunpack.c.h.bf16 %v5122
    %v5132 = vunpack.c.l.bf16 %v5123
    %v5133 = vunpack.c.h.bf16 %v5123
    %v5134 = vunpack.c.l.bf16 %v5124
    %v5135 = vunpack.c.h.bf16 %v5124
    %v5136 = vunpack.c.l.bf16 %v5125
    %v5137 = vunpack.c.h.bf16 %v5125
    %v5138 = vunpack.c.l.bf16 %v5126
    %v5139 = vunpack.c.h.bf16 %v5126
    %v5140 = vunpack.c.l.bf16 %v5127
    %v5141 = vunpack.c.h.bf16 %v5127
    %v5142 = vunpack.c.l.bf16 %v5128
    %v5143 = vunpack.c.h.bf16 %v5128
    %v5144 = vunpack.c.l.bf16 %v5129
    %v5145 = vunpack.c.h.bf16 %v5129
    %s5146 = scalar_lea.vmem %s1, 208
    %v5147 = vld [vmem:[%s5146] sm:$0xff]
    %v5148 = vld [vmem:[%s5146 + $0x8] sm:$0xff]
    %v5149 = vunpack.c.l.bf16 %v5147
    %v5150 = vunpack.c.h.bf16 %v5147
    %v5151 = vunpack.c.l.bf16 %v5148
    %v5152 = vunpack.c.h.bf16 %v5148
    %v5157 = vlaneseq
    %v5158 = vshrl.u32 %v5157, 7
    %v5159 = vsub.s32 0, %v5158
    %v5160 = vrot.slane %v5149, %v5159
    %v5161 = vlaneseq
    %v5162 = vshrl.u32 %v5161, 7
    %v5163 = vsub.s32 2, %v5162
    %v5164 = vrot.slane %v5149, %v5163
    %v5165 = vlaneseq
    %v5166 = vshrl.u32 %v5165, 7
    %v5167 = vsub.s32 4, %v5166
    %v5168 = vrot.slane %v5149, %v5167
    %v5169 = vlaneseq
    %v5170 = vshrl.u32 %v5169, 7
    %v5171 = vsub.s32 6, %v5170
    %v5172 = vrot.slane %v5149, %v5171
    %v5173 = vlaneseq
    %v5174 = vshrl.u32 %v5173, 7
    %v5175 = vsub.s32 0, %v5174
    %v5176 = vrot.slane %v5150, %v5175
    %v5177 = vlaneseq
    %v5178 = vshrl.u32 %v5177, 7
    %v5179 = vsub.s32 2, %v5178
    %v5180 = vrot.slane %v5150, %v5179
    %v5181 = vlaneseq
    %v5182 = vshrl.u32 %v5181, 7
    %v5183 = vsub.s32 4, %v5182
    %v5184 = vrot.slane %v5150, %v5183
    %v5185 = vlaneseq
    %v5186 = vshrl.u32 %v5185, 7
    %v5187 = vsub.s32 6, %v5186
    %v5188 = vrot.slane %v5150, %v5187
    %v5189 = vlaneseq
    %v5190 = vshrl.u32 %v5189, 7
    %v5191 = vsub.s32 0, %v5190
    %v5192 = vrot.slane %v5151, %v5191
    %v5193 = vlaneseq
    %v5194 = vshrl.u32 %v5193, 7
    %v5195 = vsub.s32 2, %v5194
    %v5196 = vrot.slane %v5151, %v5195
    %v5197 = vlaneseq
    %v5198 = vshrl.u32 %v5197, 7
    %v5199 = vsub.s32 4, %v5198
    %v5200 = vrot.slane %v5151, %v5199
    %v5201 = vlaneseq
    %v5202 = vshrl.u32 %v5201, 7
    %v5203 = vsub.s32 6, %v5202
    %v5204 = vrot.slane %v5151, %v5203
    %v5205 = vlaneseq
    %v5206 = vshrl.u32 %v5205, 7
    %v5207 = vsub.s32 0, %v5206
    %v5208 = vrot.slane %v5152, %v5207
    %v5209 = vlaneseq
    %v5210 = vshrl.u32 %v5209, 7
    %v5211 = vsub.s32 2, %v5210
    %v5212 = vrot.slane %v5152, %v5211
    %v5213 = vlaneseq
    %v5214 = vshrl.u32 %v5213, 7
    %v5215 = vsub.s32 4, %v5214
    %v5216 = vrot.slane %v5152, %v5215
    %v5217 = vlaneseq
    %v5218 = vshrl.u32 %v5217, 7
    %v5219 = vsub.s32 6, %v5218
    %v5220 = vrot.slane %v5152, %v5219
    %v5237 = vlaneseq
    %v5238 = vshrl.u32 %v5237, 7
    %v5239 = vsub.s32 0, %v5238
    %v5240 = vrot.slane %v5160, %v5239
    %v5241 = vlaneseq
    %v5242 = vshrl.u32 %v5241, 7
    %v5243 = vsub.s32 0, %v5242
    %v5244 = vrot.slane %v5164, %v5243
    %v5245 = vlaneseq
    %v5246 = vshrl.u32 %v5245, 7
    %v5247 = vsub.s32 0, %v5246
    %v5248 = vrot.slane %v5168, %v5247
    %v5249 = vlaneseq
    %v5250 = vshrl.u32 %v5249, 7
    %v5251 = vsub.s32 0, %v5250
    %v5252 = vrot.slane %v5172, %v5251
    %v5253 = vlaneseq
    %v5254 = vshrl.u32 %v5253, 7
    %v5255 = vsub.s32 0, %v5254
    %v5256 = vrot.slane %v5176, %v5255
    %v5257 = vlaneseq
    %v5258 = vshrl.u32 %v5257, 7
    %v5259 = vsub.s32 0, %v5258
    %v5260 = vrot.slane %v5180, %v5259
    %v5261 = vlaneseq
    %v5262 = vshrl.u32 %v5261, 7
    %v5263 = vsub.s32 0, %v5262
    %v5264 = vrot.slane %v5184, %v5263
    %v5265 = vlaneseq
    %v5266 = vshrl.u32 %v5265, 7
    %v5267 = vsub.s32 0, %v5266
    %v5268 = vrot.slane %v5188, %v5267
    %v5269 = vlaneseq
    %v5270 = vshrl.u32 %v5269, 7
    %v5271 = vsub.s32 0, %v5270
    %v5272 = vrot.slane %v5192, %v5271
    %v5273 = vlaneseq
    %v5274 = vshrl.u32 %v5273, 7
    %v5275 = vsub.s32 0, %v5274
    %v5276 = vrot.slane %v5196, %v5275
    %v5277 = vlaneseq
    %v5278 = vshrl.u32 %v5277, 7
    %v5279 = vsub.s32 0, %v5278
    %v5280 = vrot.slane %v5200, %v5279
    %v5281 = vlaneseq
    %v5282 = vshrl.u32 %v5281, 7
    %v5283 = vsub.s32 0, %v5282
    %v5284 = vrot.slane %v5204, %v5283
    %v5285 = vlaneseq
    %v5286 = vshrl.u32 %v5285, 7
    %v5287 = vsub.s32 0, %v5286
    %v5288 = vrot.slane %v5208, %v5287
    %v5289 = vlaneseq
    %v5290 = vshrl.u32 %v5289, 7
    %v5291 = vsub.s32 0, %v5290
    %v5292 = vrot.slane %v5212, %v5291
    %v5293 = vlaneseq
    %v5294 = vshrl.u32 %v5293, 7
    %v5295 = vsub.s32 0, %v5294
    %v5296 = vrot.slane %v5216, %v5295
    %v5297 = vlaneseq
    %v5298 = vshrl.u32 %v5297, 7
    %v5299 = vsub.s32 0, %v5298
    %v5300 = vrot.slane %v5220, %v5299
    %v5301 = vmul.f32 %v5130, %v5240
    %v5302 = vmul.f32 %v5131, %v5244
    %v5303 = vmul.f32 %v5132, %v5248
    %v5304 = vmul.f32 %v5133, %v5252
    %v5305 = vmul.f32 %v5134, %v5256
    %v5306 = vmul.f32 %v5135, %v5260
    %v5307 = vmul.f32 %v5136, %v5264
    %v5308 = vmul.f32 %v5137, %v5268
    %v5309 = vmul.f32 %v5138, %v5272
    %v5310 = vmul.f32 %v5139, %v5276
    %v5311 = vmul.f32 %v5140, %v5280
    %v5312 = vmul.f32 %v5141, %v5284
    %v5313 = vmul.f32 %v5142, %v5288
    %v5314 = vmul.f32 %v5143, %v5292
    %v5315 = vmul.f32 %v5144, %v5296
    %v5316 = vmul.f32 %v5145, %v5300
    %v5317 = vadd.f32 %v5301, %v5302
    %v5318 = vadd.f32 %v5317, %v5303
    %v5319 = vadd.f32 %v5318, %v5304
    %v5320 = vadd.f32 %v5319, %v5305
    %v5321 = vadd.f32 %v5320, %v5306
    %v5322 = vadd.f32 %v5321, %v5307
    %v5323 = vadd.f32 %v5322, %v5308
    %v5324 = vadd.f32 %v5323, %v5309
    %v5325 = vadd.f32 %v5324, %v5310
    %v5326 = vadd.f32 %v5325, %v5311
    %v5327 = vadd.f32 %v5326, %v5312
    %v5328 = vadd.f32 %v5327, %v5313
    %v5329 = vadd.f32 %v5328, %v5314
    %v5330 = vadd.f32 %v5329, %v5315
    %v5331 = vadd.f32 %v5330, %v5316
    %5332 = vadd.xlane.f32.xlu0 %v5331
    %v5333 = vpop.xlane.xlu0 %5332
    %v5334 = vadd.f32 %v4942, %v5333
    %v5335 = vlaneseq
    %v5336 = vshrl.u32 %v5335, 7
    %v5337 = vsub.s32 1, %v5336
    %v5338 = vrot.slane %v5149, %v5337
    %v5339 = vlaneseq
    %v5340 = vshrl.u32 %v5339, 7
    %v5341 = vsub.s32 3, %v5340
    %v5342 = vrot.slane %v5149, %v5341
    %v5343 = vlaneseq
    %v5344 = vshrl.u32 %v5343, 7
    %v5345 = vsub.s32 5, %v5344
    %v5346 = vrot.slane %v5149, %v5345
    %v5347 = vlaneseq
    %v5348 = vshrl.u32 %v5347, 7
    %v5349 = vsub.s32 7, %v5348
    %v5350 = vrot.slane %v5149, %v5349
    %v5351 = vlaneseq
    %v5352 = vshrl.u32 %v5351, 7
    %v5353 = vsub.s32 1, %v5352
    %v5354 = vrot.slane %v5150, %v5353
    %v5355 = vlaneseq
    %v5356 = vshrl.u32 %v5355, 7
    %v5357 = vsub.s32 3, %v5356
    %v5358 = vrot.slane %v5150, %v5357
    %v5359 = vlaneseq
    %v5360 = vshrl.u32 %v5359, 7
    %v5361 = vsub.s32 5, %v5360
    %v5362 = vrot.slane %v5150, %v5361
    %v5363 = vlaneseq
    %v5364 = vshrl.u32 %v5363, 7
    %v5365 = vsub.s32 7, %v5364
    %v5366 = vrot.slane %v5150, %v5365
    %v5367 = vlaneseq
    %v5368 = vshrl.u32 %v5367, 7
    %v5369 = vsub.s32 1, %v5368
    %v5370 = vrot.slane %v5151, %v5369
    %v5371 = vlaneseq
    %v5372 = vshrl.u32 %v5371, 7
    %v5373 = vsub.s32 3, %v5372
    %v5374 = vrot.slane %v5151, %v5373
    %v5375 = vlaneseq
    %v5376 = vshrl.u32 %v5375, 7
    %v5377 = vsub.s32 5, %v5376
    %v5378 = vrot.slane %v5151, %v5377
    %v5379 = vlaneseq
    %v5380 = vshrl.u32 %v5379, 7
    %v5381 = vsub.s32 7, %v5380
    %v5382 = vrot.slane %v5151, %v5381
    %v5383 = vlaneseq
    %v5384 = vshrl.u32 %v5383, 7
    %v5385 = vsub.s32 1, %v5384
    %v5386 = vrot.slane %v5152, %v5385
    %v5387 = vlaneseq
    %v5388 = vshrl.u32 %v5387, 7
    %v5389 = vsub.s32 3, %v5388
    %v5390 = vrot.slane %v5152, %v5389
    %v5391 = vlaneseq
    %v5392 = vshrl.u32 %v5391, 7
    %v5393 = vsub.s32 5, %v5392
    %v5394 = vrot.slane %v5152, %v5393
    %v5395 = vlaneseq
    %v5396 = vshrl.u32 %v5395, 7
    %v5397 = vsub.s32 7, %v5396
    %v5398 = vrot.slane %v5152, %v5397
    %v5415 = vlaneseq
    %v5416 = vshrl.u32 %v5415, 7
    %v5417 = vsub.s32 1, %v5416
    %v5418 = vrot.slane %v5338, %v5417
    %v5419 = vlaneseq
    %v5420 = vshrl.u32 %v5419, 7
    %v5421 = vsub.s32 1, %v5420
    %v5422 = vrot.slane %v5342, %v5421
    %v5423 = vlaneseq
    %v5424 = vshrl.u32 %v5423, 7
    %v5425 = vsub.s32 1, %v5424
    %v5426 = vrot.slane %v5346, %v5425
    %v5427 = vlaneseq
    %v5428 = vshrl.u32 %v5427, 7
    %v5429 = vsub.s32 1, %v5428
    %v5430 = vrot.slane %v5350, %v5429
    %v5431 = vlaneseq
    %v5432 = vshrl.u32 %v5431, 7
    %v5433 = vsub.s32 1, %v5432
    %v5434 = vrot.slane %v5354, %v5433
    %v5435 = vlaneseq
    %v5436 = vshrl.u32 %v5435, 7
    %v5437 = vsub.s32 1, %v5436
    %v5438 = vrot.slane %v5358, %v5437
    %v5439 = vlaneseq
    %v5440 = vshrl.u32 %v5439, 7
    %v5441 = vsub.s32 1, %v5440
    %v5442 = vrot.slane %v5362, %v5441
    %v5443 = vlaneseq
    %v5444 = vshrl.u32 %v5443, 7
    %v5445 = vsub.s32 1, %v5444
    %v5446 = vrot.slane %v5366, %v5445
    %v5447 = vlaneseq
    %v5448 = vshrl.u32 %v5447, 7
    %v5449 = vsub.s32 1, %v5448
    %v5450 = vrot.slane %v5370, %v5449
    %v5451 = vlaneseq
    %v5452 = vshrl.u32 %v5451, 7
    %v5453 = vsub.s32 1, %v5452
    %v5454 = vrot.slane %v5374, %v5453
    %v5455 = vlaneseq
    %v5456 = vshrl.u32 %v5455, 7
    %v5457 = vsub.s32 1, %v5456
    %v5458 = vrot.slane %v5378, %v5457
    %v5459 = vlaneseq
    %v5460 = vshrl.u32 %v5459, 7
    %v5461 = vsub.s32 1, %v5460
    %v5462 = vrot.slane %v5382, %v5461
    %v5463 = vlaneseq
    %v5464 = vshrl.u32 %v5463, 7
    %v5465 = vsub.s32 1, %v5464
    %v5466 = vrot.slane %v5386, %v5465
    %v5467 = vlaneseq
    %v5468 = vshrl.u32 %v5467, 7
    %v5469 = vsub.s32 1, %v5468
    %v5470 = vrot.slane %v5390, %v5469
    %v5471 = vlaneseq
    %v5472 = vshrl.u32 %v5471, 7
    %v5473 = vsub.s32 1, %v5472
    %v5474 = vrot.slane %v5394, %v5473
    %v5475 = vlaneseq
    %v5476 = vshrl.u32 %v5475, 7
    %v5477 = vsub.s32 1, %v5476
    %v5478 = vrot.slane %v5398, %v5477
    %v5479 = vmul.f32 %v5130, %v5418
    %v5480 = vmul.f32 %v5131, %v5422
    %v5481 = vmul.f32 %v5132, %v5426
    %v5482 = vmul.f32 %v5133, %v5430
    %v5483 = vmul.f32 %v5134, %v5434
    %v5484 = vmul.f32 %v5135, %v5438
    %v5485 = vmul.f32 %v5136, %v5442
    %v5486 = vmul.f32 %v5137, %v5446
    %v5487 = vmul.f32 %v5138, %v5450
    %v5488 = vmul.f32 %v5139, %v5454
    %v5489 = vmul.f32 %v5140, %v5458
    %v5490 = vmul.f32 %v5141, %v5462
    %v5491 = vmul.f32 %v5142, %v5466
    %v5492 = vmul.f32 %v5143, %v5470
    %v5493 = vmul.f32 %v5144, %v5474
    %v5494 = vmul.f32 %v5145, %v5478
    %v5495 = vadd.f32 %v5479, %v5480
    %v5496 = vadd.f32 %v5495, %v5481
    %v5497 = vadd.f32 %v5496, %v5482
    %v5498 = vadd.f32 %v5497, %v5483
    %v5499 = vadd.f32 %v5498, %v5484
    %v5500 = vadd.f32 %v5499, %v5485
    %v5501 = vadd.f32 %v5500, %v5486
    %v5502 = vadd.f32 %v5501, %v5487
    %v5503 = vadd.f32 %v5502, %v5488
    %v5504 = vadd.f32 %v5503, %v5489
    %v5505 = vadd.f32 %v5504, %v5490
    %v5506 = vadd.f32 %v5505, %v5491
    %v5507 = vadd.f32 %v5506, %v5492
    %v5508 = vadd.f32 %v5507, %v5493
    %v5509 = vadd.f32 %v5508, %v5494
    %5510 = vadd.xlane.f32.xlu0 %v5509
    %v5511 = vpop.xlane.xlu0 %5510
    %v5512 = vadd.f32 %v5120, %v5511
    %v5513 = vld [vmem:[%s0 + $0x380] sm:$0xff]
    %v5514 = vld [vmem:[%s0 + $0x388] sm:$0xff]
    %v5515 = vld [vmem:[%s0 + $0x390] sm:$0xff]
    %v5516 = vld [vmem:[%s0 + $0x398] sm:$0xff]
    %v5517 = vld [vmem:[%s0 + $0x3a0] sm:$0xff]
    %v5518 = vld [vmem:[%s0 + $0x3a8] sm:$0xff]
    %v5519 = vld [vmem:[%s0 + $0x3b0] sm:$0xff]
    %v5520 = vld [vmem:[%s0 + $0x3b8] sm:$0xf]
    %v5521 = vunpack.c.l.bf16 %v5513
    %v5522 = vunpack.c.h.bf16 %v5513
    %v5523 = vunpack.c.l.bf16 %v5514
    %v5524 = vunpack.c.h.bf16 %v5514
    %v5525 = vunpack.c.l.bf16 %v5515
    %v5526 = vunpack.c.h.bf16 %v5515
    %v5527 = vunpack.c.l.bf16 %v5516
    %v5528 = vunpack.c.h.bf16 %v5516
    %v5529 = vunpack.c.l.bf16 %v5517
    %v5530 = vunpack.c.h.bf16 %v5517
    %v5531 = vunpack.c.l.bf16 %v5518
    %v5532 = vunpack.c.h.bf16 %v5518
    %v5533 = vunpack.c.l.bf16 %v5519
    %v5534 = vunpack.c.h.bf16 %v5519
    %v5535 = vunpack.c.l.bf16 %v5520
    %v5536 = vld [vmem:[%s1 + $0xe0] sm:$0xff]
    %v5537 = vld [vmem:[%s1 + $0xe8] sm:$0x7f]
    %v5538 = vunpack.c.l.bf16 %v5536
    %v5539 = vunpack.c.h.bf16 %v5536
    %v5540 = vunpack.c.l.bf16 %v5537
    %v5541 = vunpack.c.h.bf16 %v5537
    %v5546 = vlaneseq
    %v5547 = vshrl.u32 %v5546, 7
    %v5548 = vsub.s32 0, %v5547
    %v5549 = vrot.slane %v5538, %v5548
    %v5550 = vlaneseq
    %v5551 = vshrl.u32 %v5550, 7
    %v5552 = vsub.s32 2, %v5551
    %v5553 = vrot.slane %v5538, %v5552
    %v5554 = vlaneseq
    %v5555 = vshrl.u32 %v5554, 7
    %v5556 = vsub.s32 4, %v5555
    %v5557 = vrot.slane %v5538, %v5556
    %v5558 = vlaneseq
    %v5559 = vshrl.u32 %v5558, 7
    %v5560 = vsub.s32 6, %v5559
    %v5561 = vrot.slane %v5538, %v5560
    %v5562 = vlaneseq
    %v5563 = vshrl.u32 %v5562, 7
    %v5564 = vsub.s32 0, %v5563
    %v5565 = vrot.slane %v5539, %v5564
    %v5566 = vlaneseq
    %v5567 = vshrl.u32 %v5566, 7
    %v5568 = vsub.s32 2, %v5567
    %v5569 = vrot.slane %v5539, %v5568
    %v5570 = vlaneseq
    %v5571 = vshrl.u32 %v5570, 7
    %v5572 = vsub.s32 4, %v5571
    %v5573 = vrot.slane %v5539, %v5572
    %v5574 = vlaneseq
    %v5575 = vshrl.u32 %v5574, 7
    %v5576 = vsub.s32 6, %v5575
    %v5577 = vrot.slane %v5539, %v5576
    %v5578 = vlaneseq
    %v5579 = vshrl.u32 %v5578, 7
    %v5580 = vsub.s32 0, %v5579
    %v5581 = vrot.slane %v5540, %v5580
    %v5582 = vlaneseq
    %v5583 = vshrl.u32 %v5582, 7
    %v5584 = vsub.s32 2, %v5583
    %v5585 = vrot.slane %v5540, %v5584
    %v5586 = vlaneseq
    %v5587 = vshrl.u32 %v5586, 7
    %v5588 = vsub.s32 4, %v5587
    %v5589 = vrot.slane %v5540, %v5588
    %v5590 = vlaneseq
    %v5591 = vshrl.u32 %v5590, 7
    %v5592 = vsub.s32 6, %v5591
    %v5593 = vrot.slane %v5540, %v5592
    %v5594 = vlaneseq
    %v5595 = vshrl.u32 %v5594, 7
    %v5596 = vsub.s32 0, %v5595
    %v5597 = vrot.slane %v5541, %v5596
    %v5598 = vlaneseq
    %v5599 = vshrl.u32 %v5598, 7
    %v5600 = vsub.s32 2, %v5599
    %v5601 = vrot.slane %v5541, %v5600
    %v5602 = vlaneseq
    %v5603 = vshrl.u32 %v5602, 7
    %v5604 = vsub.s32 4, %v5603
    %v5605 = vrot.slane %v5541, %v5604
    %v5621 = vlaneseq
    %v5622 = vshrl.u32 %v5621, 7
    %v5623 = vsub.s32 0, %v5622
    %v5624 = vrot.slane %v5549, %v5623
    %v5625 = vlaneseq
    %v5626 = vshrl.u32 %v5625, 7
    %v5627 = vsub.s32 0, %v5626
    %v5628 = vrot.slane %v5553, %v5627
    %v5629 = vlaneseq
    %v5630 = vshrl.u32 %v5629, 7
    %v5631 = vsub.s32 0, %v5630
    %v5632 = vrot.slane %v5557, %v5631
    %v5633 = vlaneseq
    %v5634 = vshrl.u32 %v5633, 7
    %v5635 = vsub.s32 0, %v5634
    %v5636 = vrot.slane %v5561, %v5635
    %v5637 = vlaneseq
    %v5638 = vshrl.u32 %v5637, 7
    %v5639 = vsub.s32 0, %v5638
    %v5640 = vrot.slane %v5565, %v5639
    %v5641 = vlaneseq
    %v5642 = vshrl.u32 %v5641, 7
    %v5643 = vsub.s32 0, %v5642
    %v5644 = vrot.slane %v5569, %v5643
    %v5645 = vlaneseq
    %v5646 = vshrl.u32 %v5645, 7
    %v5647 = vsub.s32 0, %v5646
    %v5648 = vrot.slane %v5573, %v5647
    %v5649 = vlaneseq
    %v5650 = vshrl.u32 %v5649, 7
    %v5651 = vsub.s32 0, %v5650
    %v5652 = vrot.slane %v5577, %v5651
    %v5653 = vlaneseq
    %v5654 = vshrl.u32 %v5653, 7
    %v5655 = vsub.s32 0, %v5654
    %v5656 = vrot.slane %v5581, %v5655
    %v5657 = vlaneseq
    %v5658 = vshrl.u32 %v5657, 7
    %v5659 = vsub.s32 0, %v5658
    %v5660 = vrot.slane %v5585, %v5659
    %v5661 = vlaneseq
    %v5662 = vshrl.u32 %v5661, 7
    %v5663 = vsub.s32 0, %v5662
    %v5664 = vrot.slane %v5589, %v5663
    %v5665 = vlaneseq
    %v5666 = vshrl.u32 %v5665, 7
    %v5667 = vsub.s32 0, %v5666
    %v5668 = vrot.slane %v5593, %v5667
    %v5669 = vlaneseq
    %v5670 = vshrl.u32 %v5669, 7
    %v5671 = vsub.s32 0, %v5670
    %v5672 = vrot.slane %v5597, %v5671
    %v5673 = vlaneseq
    %v5674 = vshrl.u32 %v5673, 7
    %v5675 = vsub.s32 0, %v5674
    %v5676 = vrot.slane %v5601, %v5675
    %v5677 = vlaneseq
    %v5678 = vshrl.u32 %v5677, 7
    %v5679 = vsub.s32 0, %v5678
    %v5680 = vrot.slane %v5605, %v5679
    %v5681 = vmul.f32 %v5521, %v5624
    %v5682 = vmul.f32 %v5522, %v5628
    %v5683 = vmul.f32 %v5523, %v5632
    %v5684 = vmul.f32 %v5524, %v5636
    %v5685 = vmul.f32 %v5525, %v5640
    %v5686 = vmul.f32 %v5526, %v5644
    %v5687 = vmul.f32 %v5527, %v5648
    %v5688 = vmul.f32 %v5528, %v5652
    %v5689 = vmul.f32 %v5529, %v5656
    %v5690 = vmul.f32 %v5530, %v5660
    %v5691 = vmul.f32 %v5531, %v5664
    %v5692 = vmul.f32 %v5532, %v5668
    %v5693 = vmul.f32 %v5533, %v5672
    %v5694 = vmul.f32 %v5534, %v5676
    %v5695 = vmul.f32 %v5535, %v5680
    %v5696 = vadd.f32 %v5681, %v5682
    %v5697 = vadd.f32 %v5696, %v5683
    %v5698 = vadd.f32 %v5697, %v5684
    %v5699 = vadd.f32 %v5698, %v5685
    %v5700 = vadd.f32 %v5699, %v5686
    %v5701 = vadd.f32 %v5700, %v5687
    %v5702 = vadd.f32 %v5701, %v5688
    %v5703 = vadd.f32 %v5702, %v5689
    %v5704 = vadd.f32 %v5703, %v5690
    %v5705 = vadd.f32 %v5704, %v5691
    %v5706 = vadd.f32 %v5705, %v5692
    %v5707 = vadd.f32 %v5706, %v5693
    %v5708 = vadd.f32 %v5707, %v5694
    %vm5709 = vcmask 474112
    %v5710 = vsel %vm5709, %v5695, 0.0
    %v5711 = vadd.f32 %v5708, %v5710
    %5712 = vadd.xlane.f32.xlu0 %v5711
    %v5713 = vpop.xlane.xlu0 %5712
    %v5714 = vadd.f32 %v5334, %v5713
    %v5715 = vlaneseq
    %v5716 = vshrl.u32 %v5715, 7
    %v5717 = vsub.s32 1, %v5716
    %v5718 = vrot.slane %v5538, %v5717
    %v5719 = vlaneseq
    %v5720 = vshrl.u32 %v5719, 7
    %v5721 = vsub.s32 3, %v5720
    %v5722 = vrot.slane %v5538, %v5721
    %v5723 = vlaneseq
    %v5724 = vshrl.u32 %v5723, 7
    %v5725 = vsub.s32 5, %v5724
    %v5726 = vrot.slane %v5538, %v5725
    %v5727 = vlaneseq
    %v5728 = vshrl.u32 %v5727, 7
    %v5729 = vsub.s32 7, %v5728
    %v5730 = vrot.slane %v5538, %v5729
    %v5731 = vlaneseq
    %v5732 = vshrl.u32 %v5731, 7
    %v5733 = vsub.s32 1, %v5732
    %v5734 = vrot.slane %v5539, %v5733
    %v5735 = vlaneseq
    %v5736 = vshrl.u32 %v5735, 7
    %v5737 = vsub.s32 3, %v5736
    %v5738 = vrot.slane %v5539, %v5737
    %v5739 = vlaneseq
    %v5740 = vshrl.u32 %v5739, 7
    %v5741 = vsub.s32 5, %v5740
    %v5742 = vrot.slane %v5539, %v5741
    %v5743 = vlaneseq
    %v5744 = vshrl.u32 %v5743, 7
    %v5745 = vsub.s32 7, %v5744
    %v5746 = vrot.slane %v5539, %v5745
    %v5747 = vlaneseq
    %v5748 = vshrl.u32 %v5747, 7
    %v5749 = vsub.s32 1, %v5748
    %v5750 = vrot.slane %v5540, %v5749
    %v5751 = vlaneseq
    %v5752 = vshrl.u32 %v5751, 7
    %v5753 = vsub.s32 3, %v5752
    %v5754 = vrot.slane %v5540, %v5753
    %v5755 = vlaneseq
    %v5756 = vshrl.u32 %v5755, 7
    %v5757 = vsub.s32 5, %v5756
    %v5758 = vrot.slane %v5540, %v5757
    %v5759 = vlaneseq
    %v5760 = vshrl.u32 %v5759, 7
    %v5761 = vsub.s32 7, %v5760
    %v5762 = vrot.slane %v5540, %v5761
    %v5763 = vlaneseq
    %v5764 = vshrl.u32 %v5763, 7
    %v5765 = vsub.s32 1, %v5764
    %v5766 = vrot.slane %v5541, %v5765
    %v5767 = vlaneseq
    %v5768 = vshrl.u32 %v5767, 7
    %v5769 = vsub.s32 3, %v5768
    %v5770 = vrot.slane %v5541, %v5769
    %v5771 = vlaneseq
    %v5772 = vshrl.u32 %v5771, 7
    %v5773 = vsub.s32 5, %v5772
    %v5774 = vrot.slane %v5541, %v5773
    %v5790 = vlaneseq
    %v5791 = vshrl.u32 %v5790, 7
    %v5792 = vsub.s32 1, %v5791
    %v5793 = vrot.slane %v5718, %v5792
    %v5794 = vlaneseq
    %v5795 = vshrl.u32 %v5794, 7
    %v5796 = vsub.s32 1, %v5795
    %v5797 = vrot.slane %v5722, %v5796
    %v5798 = vlaneseq
    %v5799 = vshrl.u32 %v5798, 7
    %v5800 = vsub.s32 1, %v5799
    %v5801 = vrot.slane %v5726, %v5800
    %v5802 = vlaneseq
    %v5803 = vshrl.u32 %v5802, 7
    %v5804 = vsub.s32 1, %v5803
    %v5805 = vrot.slane %v5730, %v5804
    %v5806 = vlaneseq
    %v5807 = vshrl.u32 %v5806, 7
    %v5808 = vsub.s32 1, %v5807
    %v5809 = vrot.slane %v5734, %v5808
    %v5810 = vlaneseq
    %v5811 = vshrl.u32 %v5810, 7
    %v5812 = vsub.s32 1, %v5811
    %v5813 = vrot.slane %v5738, %v5812
    %v5814 = vlaneseq
    %v5815 = vshrl.u32 %v5814, 7
    %v5816 = vsub.s32 1, %v5815
    %v5817 = vrot.slane %v5742, %v5816
    %v5818 = vlaneseq
    %v5819 = vshrl.u32 %v5818, 7
    %v5820 = vsub.s32 1, %v5819
    %v5821 = vrot.slane %v5746, %v5820
    %v5822 = vlaneseq
    %v5823 = vshrl.u32 %v5822, 7
    %v5824 = vsub.s32 1, %v5823
    %v5825 = vrot.slane %v5750, %v5824
    %v5826 = vlaneseq
    %v5827 = vshrl.u32 %v5826, 7
    %v5828 = vsub.s32 1, %v5827
    %v5829 = vrot.slane %v5754, %v5828
    %v5830 = vlaneseq
    %v5831 = vshrl.u32 %v5830, 7
    %v5832 = vsub.s32 1, %v5831
    %v5833 = vrot.slane %v5758, %v5832
    %v5834 = vlaneseq
    %v5835 = vshrl.u32 %v5834, 7
    %v5836 = vsub.s32 1, %v5835
    %v5837 = vrot.slane %v5762, %v5836
    %v5838 = vlaneseq
    %v5839 = vshrl.u32 %v5838, 7
    %v5840 = vsub.s32 1, %v5839
    %v5841 = vrot.slane %v5766, %v5840
    %v5842 = vlaneseq
    %v5843 = vshrl.u32 %v5842, 7
    %v5844 = vsub.s32 1, %v5843
    %v5845 = vrot.slane %v5770, %v5844
    %v5846 = vlaneseq
    %v5847 = vshrl.u32 %v5846, 7
    %v5848 = vsub.s32 1, %v5847
    %v5849 = vrot.slane %v5774, %v5848
    %v5850 = vmul.f32 %v5521, %v5793
    %v5851 = vmul.f32 %v5522, %v5797
    %v5852 = vmul.f32 %v5523, %v5801
    %v5853 = vmul.f32 %v5524, %v5805
    %v5854 = vmul.f32 %v5525, %v5809
    %v5855 = vmul.f32 %v5526, %v5813
    %v5856 = vmul.f32 %v5527, %v5817
    %v5857 = vmul.f32 %v5528, %v5821
    %v5858 = vmul.f32 %v5529, %v5825
    %v5859 = vmul.f32 %v5530, %v5829
    %v5860 = vmul.f32 %v5531, %v5833
    %v5861 = vmul.f32 %v5532, %v5837
    %v5862 = vmul.f32 %v5533, %v5841
    %v5863 = vmul.f32 %v5534, %v5845
    %v5864 = vmul.f32 %v5535, %v5849
    %v5865 = vadd.f32 %v5850, %v5851
    %v5866 = vadd.f32 %v5865, %v5852
    %v5867 = vadd.f32 %v5866, %v5853
    %v5868 = vadd.f32 %v5867, %v5854
    %v5869 = vadd.f32 %v5868, %v5855
    %v5870 = vadd.f32 %v5869, %v5856
    %v5871 = vadd.f32 %v5870, %v5857
    %v5872 = vadd.f32 %v5871, %v5858
    %v5873 = vadd.f32 %v5872, %v5859
    %v5874 = vadd.f32 %v5873, %v5860
    %v5875 = vadd.f32 %v5874, %v5861
    %v5876 = vadd.f32 %v5875, %v5862
    %v5877 = vadd.f32 %v5876, %v5863
    %v5878 = vsel %vm5709, %v5864, 0.0
    %v5879 = vadd.f32 %v5877, %v5878
    %5880 = vadd.xlane.f32.xlu0 %v5879
    %v5881 = vpop.xlane.xlu0 %5880
    %v5882 = vadd.f32 %v5512, %v5881
    %s5883 = sld [smem:[#allocation2]]
    %v5884 = vstv %s5883
    %v5885 = vadd.f32 %v5714, %v5884
    %s5886 = sld [smem:[#allocation2 + $0x1]]
    %v5887 = vstv %s5886
    %v5888 = vadd.f32 %v5882, %v5887
    %v5889 = vxor.u32 %v5885, 2147483648
    %v5890 = vmul.f32 %v5889, 1.442695
    %v5891 = vpow.pop %v5890
    %v5892 = vadd.f32 %v5891, 1.0
    %v5893 = vrcp.pop %v5892
    %v5894 = vmul.f32 1.0, %v5893
    %v5895 = vxor.u32 %v5888, 2147483648
    %v5896 = vmul.f32 %v5895, 1.442695
    %v5897 = vpow.pop %v5896
    %v5898 = vadd.f32 %v5897, 1.0
    %v5899 = vrcp.pop %v5898
    %v5900 = vmul.f32 1.0, %v5899
    %v5901 = vsub.f32 %v5900, %v5894
    %v5902 = vxor.u32 %v5901, 2147483648
    %v5903 = vmul.f32 %v5902, 1.442695
    %v5904 = vpow.pop %v5903
    %v5905 = vadd.f32 %v5904, 1.0
    %v5906 = vrcp.pop %v5905
    %v5907 = vmul.f32 1.0, %v5906
    %v5908 = vsub.f32 1.0, %v5907
    %vm5909 = vcmask 7168
    %5910 = vst.msk [vmem:[%s3] sm:$0xff] %vm5909, %v5908
    %vm5911 = vcmask 15368
    %5912 = vst.msk [vmem:[%s3] sm:$0xff] %vm5911, %v5907
    // Predicated region
    $region18: #{mlp_forward.1} parent=1 // pred_check
      _
    $region19: #{mlp_forward.1} parent=1 // pred_check_branch
      %5914 = sbr.rel (0) target = $region21
    $region20: #{mlp_forward.1} parent=1 // pred_region
      _
    $region21: #{mlp_forward.1} parent=1 // pred_fallthru
      _
    // Predicated region
    $region22: #{mlp_forward.1} parent=1 // pred_check
      _
    $region23: #{mlp_forward.1} parent=1 // pred_check_branch
      %5916 = sbr.rel (0) target = $region25
    $region24: #{mlp_forward.1} parent=1 // pred_region
      _
    $region25: #{mlp_forward.1} parent=1 // pred_fallthru
      _
    %5917 = vsyncpa [#allocation3], 1

</llo_original>
